<compile_context>
chip_gen: v6e
topology: v6e:2x2x1
jax: 0.10.0
libtpu: 0.0.40
codegen_flags: <defaults>
</compile_context>

<pallas_src>
import math
import numpy as np

import jax
import jax.numpy as jnp
from jax import lax
from jax.experimental import pallas as pl
from jax.experimental.pallas import tpu as pltpu

BN_EPS = 1e-5
LANE = 128
MAX_BLOCK_ROWS = 4096           # target rows (MXU M) per kernel block


def _round_up(x, m):
    return (x + m - 1) // m * m


def _vmem_limit_bytes():
    try:
        cap = int(pltpu.get_tpu_info().vmem_capacity_bytes)
        return min((cap * 3) // 4, 96 * 1024 * 1024)
    except Exception:
        return 48 * 1024 * 1024


_VMEM_LIMIT = _vmem_limit_bytes()


def _pick_hb(H, eff_w, max_rows=MAX_BLOCK_ROWS):
    """Largest divisor-of-H row block with hb*eff_w <= max_rows.  Only tiles
    when eff_w is a multiple of 8 so the output block stays (8,128)-legal."""
    hb = H
    if eff_w % 8 != 0:
        return hb
    while hb % 2 == 0 and hb * eff_w > max_rows:
        hb //= 2
    return hb


# ---------------------------------------------------------------------------
# Kernel 1: zero-offset DCN 3x3 + folded BN + ReLU (+ optional fused skip add)
# ---------------------------------------------------------------------------
def _make_dcn_kernel(H, W, Hb, fuse_add):
    """Blocks:
         x   : (1, H*W, Ci)  bf16  full flat image (constant over the hb axis)
         res : (1, H*W, Ci)  bf16  optional (added to x while filling scratch)
         w   : (9, Ci, Co)   bf16  (BN scale + 0.5 DCN mask folded in)
         b   : (1, Co)       f32   folded BN shift
         out : (1, Hb*W, Co) bf16
       scratch: ((Hb+2)*W + 2, Ci) bf16 spatially padded tile."""
    M = Hb * W
    R = (Hb + 2) * W + 2
    nhb = H // Hb

    def kernel(*refs):
        if fuse_add:
            x_ref, r_ref, w_ref, b_ref, o_ref, xp_ref = refs
        else:
            x_ref, w_ref, b_ref, o_ref, xp_ref = refs
        ci = x_ref.shape[-1]
        hb = pl.program_id(1)
        h0 = hb * Hb

        def load_rows(start, rows):
            v = x_ref[0, pl.ds(start, rows), :]
            if fuse_add:
                v = v + r_ref[0, pl.ds(start, rows), :]   # hoisted skip add, bf16
            return v

        # ---- build the spatially padded tile in VMEM (no wrapper jnp.pad) ----
        zrow = jnp.zeros((1, ci), jnp.bfloat16)
        xp_ref[0:1, :] = zrow
        xp_ref[R - 1:R, :] = zrow
        xp_ref[pl.ds(1 + W, M), :] = load_rows(h0 * W, M)

        @pl.when(hb > 0)
        def _():
            xp_ref[pl.ds(1, W), :] = load_rows((h0 - 1) * W, W)

        @pl.when(hb == 0)
        def _():
            xp_ref[pl.ds(1, W), :] = jnp.zeros((W, ci), jnp.bfloat16)

        @pl.when(hb < nhb - 1)
        def _():
            xp_ref[pl.ds(1 + (Hb + 1) * W, W), :] = load_rows((h0 + Hb) * W, W)

        @pl.when(hb == nhb - 1)
        def _():
            xp_ref[pl.ds(1 + (Hb + 1) * W, W), :] = jnp.zeros((W, ci), jnp.bfloat16)

        # constant masks for the dx = -1 / +1 taps (out-of-image columns)
        col = lax.broadcasted_iota(jnp.int32, (M, 1), 0) % W
        mask_l = (col != 0).astype(jnp.bfloat16)
        mask_r = (col != W - 1).astype(jnp.bfloat16)

        shift = b_ref[...]                                   # (1, Co) f32
        co = shift.shape[-1]
        acc = jnp.zeros((M, co), jnp.float32)
        for dy in range(3):                                  # static unroll: 9 MXU taps
            for dx in (-1, 0, 1):
                win = xp_ref[pl.ds(1 + dy * W + dx, M), :]   # (M, Ci) bf16
                if dx == -1:
                    win = win * mask_l
                elif dx == 1:
                    win = win * mask_r
                acc = acc + jnp.dot(win, w_ref[dy * 3 + dx + 1],
                                    preferred_element_type=jnp.float32)
        out = jnp.maximum(acc + shift, 0.0)
        o_ref[0, :, :] = out.astype(o_ref.dtype)

    return kernel


def deform_conv_bn_relu(x, params, H, W, residual=None):
    """x: (N, H*W, Ci_pad) bf16 flat NHWC -> (N, H*W, Co_pad) bf16 flat NHWC."""
    N, HW, Ci = x.shape
    assert HW == H * W
    w9, shift = params['w9'], params['shift']
    Co = w9.shape[-1]
    Hb = _pick_hb(H, W)
    nhb = H // Hb
    M = Hb * W
    scratch_rows = (Hb + 2) * W + 2

    ops = [x]
    in_specs = [pl.BlockSpec((1, HW, Ci), lambda n, hb: (n, 0, 0))]
    if residual is not None:
        assert residual.shape == x.shape
        ops.append(residual)
        in_specs.append(pl.BlockSpec((1, HW, Ci), lambda n, hb: (n, 0, 0)))
    ops += [w9, shift]
    # TODO(synk): pipeline_mode=pl.Buffered(1) on these constant-index blocks
    # would save one weight-copy of VMEM at the 256/512-channel levels (v7x).
    in_specs += [pl.BlockSpec((9, Ci, Co), lambda n, hb: (0, 0, 0)),
                 pl.BlockSpec((1, Co), lambda n, hb: (0, 0))]

    # TODO(synk): for extremely large feature maps also halo-tile the *input*
    # block (currently whole-image per batch element) to bound VMEM further.
    return pl.pallas_call(
        _make_dcn_kernel(H, W, Hb, residual is not None),
        out_shape=jax.ShapeDtypeStruct((N, HW, Co), jnp.bfloat16),
        grid=(N, nhb),
        in_specs=in_specs,
        out_specs=pl.BlockSpec((1, M, Co), lambda n, hb: (n, hb, 0)),
        scratch_shapes=[pltpu.VMEM((scratch_rows, Ci), jnp.bfloat16)],
        compiler_params=pltpu.CompilerParams(
            dimension_semantics=("parallel", "parallel"),
            vmem_limit_bytes=_VMEM_LIMIT),
    )(*ops)


# ---------------------------------------------------------------------------
# Kernel 2: bilinear depthwise ConvTranspose2d (fill_up_weights), polyphase
# ---------------------------------------------------------------------------
def _bilinear_phase_taps(f):
    """Polyphase taps of the fill_up_weights bilinear transposed-conv kernel.
    For output index o = q*f + r, ConvTranspose(kernel=2f, stride=f, pad=f//2)
    contributes exactly two taps per axis: taps[r] = [(off, weight), (off, weight)]."""
    ks = 2 * f
    fc = math.ceil(ks / 2)
    c = (2 * fc - 1 - fc % 2) / (2.0 * fc)
    wu = [1.0 - abs(i / fc - c) for i in range(ks)]
    pad = f // 2
    taps = []
    for r in range(f):
        tr = []
        for k in range(ks):
            d = r + pad - k
            if d % f == 0:
                tr.append((d // f, wu[k]))
        taps.append(tr)
    assert all(len(t) == 2 for t in taps)
    return taps


def _make_rx_matrix(W, f, taps):
    """Constant (W*f, W) matrix folding the horizontal bilinear taps AND the
    column interleave: out_row = Rx @ xrow gives the full W*f-wide output row."""
    Wf = W * f
    rx = np.zeros((Wf, W), np.float32)
    for w in range(W):
        for r in range(f):
            for ox, wx in taps[r]:
                q = w + ox
                if 0 <= q < W:
                    rx[w * f + r, q] += wx
    return jnp.asarray(rx, dtype=jnp.bfloat16)


def _make_upsample_kernel(H, W, C, Hb, f, taps):
    """Blocks:
         x  : (1, H*W, C)        bf16  full flat image (constant over hb)
         rx : (W*f, W)           bf16  constant horizontal tap/interleave matrix
         out: (1, Hb*f*W*f, C)   bf16  flat NHWC rows, written densely
       scratch: ((Hb+2)*W, C) bf16 vertically padded tile."""
    Wf = W * f
    nhb = H // Hb

    def kernel(x_ref, rx_ref, o_ref, xp_ref):
        hb = pl.program_id(1)
        h0 = hb * Hb

        # vertically padded tile (1-row halo), no wrapper jnp.pad
        xp_ref[pl.ds(W, Hb * W), :] = x_ref[0, pl.ds(h0 * W, Hb * W), :]

        @pl.when(hb > 0)
        def _():
            xp_ref[pl.ds(0, W), :] = x_ref[0, pl.ds((h0 - 1) * W, W), :]

        @pl.when(hb == 0)
        def _():
            xp_ref[pl.ds(0, W), :] = jnp.zeros((W, C), jnp.bfloat16)

        @pl.when(hb < nhb - 1)
        def _():
            xp_ref[pl.ds((Hb + 1) * W, W), :] = x_ref[0, pl.ds((h0 + Hb) * W, W), :]

        @pl.when(hb == nhb - 1)
        def _():
            xp_ref[pl.ds((Hb + 1) * W, W), :] = jnp.zeros((W, C), jnp.bfloat16)

        rx = rx_ref[...]                                      # (Wf, W) bf16

        def h_body(h, carry):
            cols = []
            for ry in range(f):                               # static unroll over phases
                (oy0, wy0), (oy1, wy1) = taps[ry]
                a0 = xp_ref[pl.ds((h + 1 + oy0) * W, W), :]
                a1 = xp_ref[pl.ds((h + 1 + oy1) * W, W), :]
                cols.append(a0 * wy0 + a1 * wy1)              # bf16 vertical mix
            vt = jnp.concatenate(cols, axis=-1)               # (W, f*C)
            res = jnp.dot(rx, vt, preferred_element_type=jnp.float32)  # (Wf, f*C)
            for ry in range(f):
                o_ref[0, pl.ds((h * f + ry) * Wf, Wf), :] = \
                    res[:, ry * C:(ry + 1) * C].astype(o_ref.dtype)
            return carry

        lax.fori_loop(0, Hb, h_body, 0)

    return kernel


def bilinear_upsample(x, H, W, f):
    """nn.ConvTranspose2d(C, C, 2f, stride=f, padding=f//2, groups=C, bias=False)
    with fill_up_weights init.  x: (N, H*W, C) bf16 -> (N, H*f*W*f, C) bf16."""
    assert f >= 2 and f % 2 == 0, "IDAUp only instantiates even up factors >= 2"
    N, HW, C = x.shape
    assert HW == H * W
    taps = _bilinear_phase_taps(f)
    rx_mat = _make_rx_matrix(W, f, taps)
    Wf = W * f
    Hb = _pick_hb(H, W * f * f)
    nhb = H // Hb

    return pl.pallas_call(
        _make_upsample_kernel(H, W, C, Hb, f, taps),
        out_shape=jax.ShapeDtypeStruct((N, H * f * Wf, C), jnp.bfloat16),
        grid=(N, nhb),
        in_specs=[pl.BlockSpec((1, HW, C), lambda n, hb: (n, 0, 0)),
                  pl.BlockSpec((Wf, W), lambda n, hb: (0, 0))],
        out_specs=pl.BlockSpec((1, Hb * f * Wf, C), lambda n, hb: (n, hb, 0)),
        scratch_shapes=[pltpu.VMEM(((Hb + 2) * W, C), jnp.bfloat16)],
        compiler_params=pltpu.CompilerParams(
            dimension_semantics=("parallel", "parallel"),
            vmem_limit_bytes=_VMEM_LIMIT),
    )(x, rx_mat)


# ---------------------------------------------------------------------------
# Parameter construction (deterministic) + module-level glue
# ---------------------------------------------------------------------------
def make_deform_conv_params(chi, cho, key):
    """DeformConv = DCN(chi, cho, 3x3, zero-init offsets) + BN(eval) + ReLU.
    The 0.5 DCN mask (sigmoid(0)) and the BN scale are folded into the conv
    weights; bias/BN shift become a per-output-channel f32 shift.  Weights are
    channel-padded to multiples of 128 and laid out (9, Ci_p, Co_p) bf16."""
    kw, kb = jax.random.split(key)
    weight = 0.1 * jax.random.normal(kw, (cho, chi, 3, 3), jnp.float32)
    bias = 0.1 * jax.random.normal(kb, (cho,), jnp.float32)
    gamma = jnp.ones((cho,), jnp.float32)
    beta = jnp.zeros((cho,), jnp.float32)
    run_mean = jnp.zeros((cho,), jnp.float32)
    run_var = jnp.ones((cho,), jnp.float32)

    inv_std = gamma / jnp.sqrt(run_var + BN_EPS)
    eff_scale = 0.5 * inv_std                      # 0.5 = sigmoid(0) DCN mask
    eff_shift = (bias - run_mean) * inv_std + beta

    ci_p, co_p = _round_up(chi, LANE), _round_up(cho, LANE)
    w = weight * eff_scale[:, None, None, None]                  # (cho, chi, 3, 3)
    w = jnp.transpose(w, (2, 3, 1, 0)).reshape(9, chi, cho)      # (ky*3+kx, ci, co)
    w9 = jnp.zeros((9, ci_p, co_p), jnp.float32).at[:, :chi, :cho].set(w)
    shift = jnp.zeros((1, co_p), jnp.float32).at[0, :cho].set(eff_shift)
    return {'w9': w9.astype(jnp.bfloat16), 'shift': shift}


def _to_flat(x):
    """NCHW f32 -> (N, H*W, C_pad) bf16 flat NHWC (one-time entry conversion)."""
    N, C, H, W = x.shape
    cp = _round_up(C, LANE)
    xh = jnp.transpose(x, (0, 2, 3, 1)).reshape(N, H * W, C).astype(jnp.bfloat16)
    return jnp.pad(xh, ((0, 0), (0, 0), (0, cp - C))), H, W


def _from_flat(x, H, W, c):
    N = x.shape[0]
    return jnp.transpose(x[:, :, :c].reshape(N, H, W, c).astype(jnp.float32),
                         (0, 3, 1, 2))


class IDAUpPallas:
    def __init__(self, o, channels, up_f, key):
        self.params = {}
        for i in range(1, len(channels)):
            c = int(channels[i])
            key, k1, k2 = jax.random.split(key, 3)
            self.params['proj_%d' % i] = make_deform_conv_params(c, o, k1)
            self.params['node_%d' % i] = make_deform_conv_params(o, o, k2)
            self.params['up_f_%d' % i] = int(up_f[i])

    def forward(self, layers, startp, endp):
        # layers: list of (flat bf16 (N, H*W, C_pad), H, W); modified in place
        for i in range(startp + 1, endp):
            idx = i - startp
            proj = self.params['proj_%d' % idx]
            node = self.params['node_%d' % idx]
            f = self.params['up_f_%d' % idx]
            x, H, W = layers[i]
            r, Hr, Wr = layers[i - 1]
            y = deform_conv_bn_relu(x, proj, H, W)
            if f > 1:
                y = bilinear_upsample(y, H, W, f)
                H, W = H * f, W * f
            # TODO(synk): f == 1 (ConvTranspose 2x2 stride 1 pad 0) never occurs in DLAUp.
            assert (H, W) == (Hr, Wr)
            # node(layers[i] + layers[i-1]) with the skip add fused in-kernel.
            layers[i] = (deform_conv_bn_relu(y, node, H, W, residual=r), H, W)


class DLAUpPallas:
    def __init__(self, startp, channels, scales, key, in_channels=None):
        self.startp = startp
        self.channels = list(channels)
        if in_channels is None:
            in_channels = list(channels)
        else:
            in_channels = list(in_channels)
        channels = list(channels)
        scales = np.array(scales, dtype=int)
        self.idas = []
        for i in range(len(channels) - 1):
            j = -i - 2
            key, sub = jax.random.split(key)
            self.idas.append(
                IDAUpPallas(channels[j], in_channels[j:],
                            list(scales[j:] // scales[j]), sub))
            scales[j + 1:] = scales[j]
            in_channels[j + 1:] = [channels[j] for _ in channels[j + 1:]]

    def forward(self, layers):
        lay = []
        for l in layers:
            a, H, W = _to_flat(l)
            lay.append((a, H, W))
        out = [lay[-1]]
        out_c = [int(layers[-1].shape[1])]
        for i in range(len(lay) - self.startp - 1):
            self.idas[i].forward(lay, len(lay) - i - 2, len(lay))
            out.insert(0, lay[-1])
            out_c.insert(0, int(self.channels[-i - 2]))
        return [_from_flat(a, H, W, c) for (a, H, W), c in zip(out, out_c)]


# ---------------------------------------------------------------------------
# Pure-JAX references (for in-script numeric checks)
# ---------------------------------------------------------------------------
def _ref_dcn(x, params, H, W, residual=None):
    xf = x.astype(jnp.float32)
    if residual is not None:
        xf = xf + residual.astype(jnp.float32)
    N, HW, Ci = xf.shape
    img = xf.reshape(N, H, W, Ci)
    pad = jnp.pad(img, ((0, 0), (1, 1), (1, 1), (0, 0)))
    w9 = params['w9'].astype(jnp.float32)
    Co = w9.shape[-1]
    acc = jnp.zeros((N, H, W, Co), jnp.float32)
    for ky in range(3):
        for kx in range(3):
            acc = acc + jnp.einsum('nhwc,cd->nhwd',
                                   pad[:, ky:ky + H, kx:kx + W, :], w9[ky * 3 + kx])
    return jnp.maximum(acc + params['shift'][0], 0.0).reshape(N, HW, Co)


def _ref_upsample(x, H, W, f):
    N, HW, C = x.shape
    img = x.astype(jnp.float32).reshape(N, H, W, C)
    pad = jnp.pad(img, ((0, 0), (1, 1), (1, 1), (0, 0)))
    taps = _bilinear_phase_taps(f)
    rows = []
    for ry in range(f):
        cols = []
        for rx in range(f):
            acc = jnp.zeros((N, H, W, C), jnp.float32)
            for oy, wy in taps[ry]:
                for ox, wx in taps[rx]:
                    acc = acc + (wy * wx) * pad[:, 1 + oy:1 + oy + H,
                                                1 + ox:1 + ox + W, :]
            cols.append(acc)
        rows.append(jnp.stack(cols, axis=3))          # (N, H, W, f, C)
    up = jnp.stack(rows, axis=2)                      # (N, H, f, W, f, C)
    return up.reshape(N, H * f * W * f, C)


# ---------------------------------------------------------------------------
if __name__ == "__main__":
    key = jax.random.PRNGKey(0)
    kmod, k0, k1, k2, kc, kx, kr, ku = jax.random.split(key, 8)

    # ---- per-kernel numeric checks vs. pure-JAX references -----------------
    chi, cho, Ht, Wt = 8, 4, 8, 16
    p_t = make_deform_conv_params(chi, cho, kc)
    x_t, _, _ = _to_flat(jax.random.normal(kx, (2, chi, Ht, Wt), jnp.float32))
    r_t, _, _ = _to_flat(jax.random.normal(kr, (2, chi, Ht, Wt), jnp.float32))
    got = deform_conv_bn_relu(x_t, p_t, Ht, Wt, residual=r_t)
    ref = _ref_dcn(x_t, p_t, Ht, Wt, residual=r_t)
    np.testing.assert_allclose(np.asarray(got.astype(jnp.float32)),
                               np.asarray(ref), atol=6e-2, rtol=6e-2)

    u_t, _, _ = _to_flat(jax.random.normal(ku, (2, 4, 4, 8), jnp.float32))
    for f in (2, 4):
        got_u = bilinear_upsample(u_t, 4, 8, f)
        ref_u = _ref_upsample(u_t, 4, 8, f)
        np.testing.assert_allclose(np.asarray(got_u.astype(jnp.float32)),
                                   np.asarray(ref_u), atol=3e-2, rtol=3e-2)

    # ---- full DLAUp forward on a small DLA-style pyramid --------------------
    startp = 0
    channels = [4, 8, 16]
    scales = [1, 2, 4]
    N, base = 2, 16
    layers = [
        jax.random.normal(k0, (N, channels[0], base, base), jnp.float32),
        jax.random.normal(k1, (N, channels[1], base // 2, base // 2), jnp.float32),
        jax.random.normal(k2, (N, channels[2], base // 4, base // 4), jnp.float32),
    ]

    dla_up = DLAUpPallas(startp, channels, scales, kmod)
    out = dla_up.forward(layers)
    out = jax.block_until_ready(out)

    expected_shapes = [(N, 4, 16, 16), (N, 8, 8, 8), (N, 16, 4, 4)]
    assert [tuple(o.shape) for o in out] == expected_shapes, \
        [tuple(o.shape) for o in out]
    assert all(bool(jnp.all(jnp.isfinite(o))) for o in out)
    print("KERNEL_OK")
</pallas_src>

<mosaic_0001>
module attributes {stable_mosaic.version = 11 : i64} {
  func.func @kernel(%arg0: i32, %arg1: i32, %arg2: memref<1x128x128xbf16, #tpu.memory_space<vmem>>, %arg3: memref<1x128x128xbf16, #tpu.memory_space<vmem>>, %arg4: memref<9x128x128xbf16, #tpu.memory_space<vmem>>, %arg5: memref<1x128xf32, #tpu.memory_space<vmem>>, %arg6: memref<1x128x128xbf16, #tpu.memory_space<vmem>>, %arg7: memref<162x128xbf16, #tpu.memory_space<vmem>>) attributes {dimension_semantics = [#tpu.dimension_semantics<parallel>, #tpu.dimension_semantics<parallel>], iteration_bounds = array<i64: 2, 1>, scalar_prefetch = 0 : i64, scratch_operands = 1 : i64, tpu.core_type = #tpu.core_type<tc>, window_params = [{transform_indices = @transform_0, window_bounds = array<i64: 1, 128, 128>}, {transform_indices = @transform_1, window_bounds = array<i64: 1, 128, 128>}, {pipeline_mode = #tpu.pipeline_mode<synchronous>, transform_indices = @transform_2, window_bounds = array<i64: 9, 128, 128>}, {pipeline_mode = #tpu.pipeline_mode<synchronous>, transform_indices = @transform_3, window_bounds = array<i64: 1, 128>}, {transform_indices = @transform_4, window_bounds = array<i64: 1, 128, 128>}]} {
    %c8_i32 = arith.constant 8 : i32
    %0 = arith.muli %arg1, %c8_i32 : i32
    %cst = arith.constant 0.000000e+00 : bf16
    %1 = vector.broadcast %cst : bf16 to vector<1x128xbf16>
    %c0 = arith.constant 0 : index
    %c0_0 = arith.constant 0 : index
    %2 = vector.load %arg7[%c0, %c0_0] : memref<162x128xbf16, #tpu.memory_space<vmem>>, vector<1x128xbf16>
    tpu.vector_store %arg7[%c0, %c0_0], %1 {strides = array<i32>} : memref<162x128xbf16, #tpu.memory_space<vmem>>, vector<1x128xbf16>,
    %c161 = arith.constant 161 : index
    %c0_1 = arith.constant 0 : index
    %3 = vector.load %arg7[%c161, %c0_1] : memref<162x128xbf16, #tpu.memory_space<vmem>>, vector<1x128xbf16>
    tpu.vector_store %arg7[%c161, %c0_1], %1 {strides = array<i32>} : memref<162x128xbf16, #tpu.memory_space<vmem>>, vector<1x128xbf16>,
    %c16_i32 = arith.constant 16 : i32
    %4 = arith.muli %0, %c16_i32 : i32
    %c0_2 = arith.constant 0 : index
    %5 = arith.index_cast %4 : i32 to index
    %c0_3 = arith.constant 0 : index
    %6 = vector.load %arg2[%c0_2, %5, %c0_3] : memref<1x128x128xbf16, #tpu.memory_space<vmem>>, vector<1x128x128xbf16>
    %7 = vector.shape_cast %6 : vector<1x128x128xbf16> to vector<128x128xbf16>
    %c0_4 = arith.constant 0 : index
    %8 = arith.index_cast %4 : i32 to index
    %c0_5 = arith.constant 0 : index
    %9 = vector.load %arg3[%c0_4, %8, %c0_5] : memref<1x128x128xbf16, #tpu.memory_space<vmem>>, vector<1x128x128xbf16>
    %10 = vector.shape_cast %9 : vector<1x128x128xbf16> to vector<128x128xbf16>
    %11 = arith.addf %7, %10 : vector<128x128xbf16>
    %c17 = arith.constant 17 : index
    %c0_6 = arith.constant 0 : index
    %12 = vector.load %arg7[%c17, %c0_6] : memref<162x128xbf16, #tpu.memory_space<vmem>>, vector<128x128xbf16>
    tpu.vector_store %arg7[%c17, %c0_6], %11 {strides = array<i32>} : memref<162x128xbf16, #tpu.memory_space<vmem>>, vector<128x128xbf16>,
    %c0_i32 = arith.constant 0 : i32
    %13 = arith.cmpi sgt, %arg1, %c0_i32 : i32
    %14 = arith.extui %13 : i1 to i32
    %c0_i32_7 = arith.constant 0 : i32
    %15 = arith.cmpi ne, %14, %c0_i32_7 : i32
    scf.if %15 {
      %c1_i32_68 = arith.constant 1 : i32
      %119 = arith.subi %0, %c1_i32_68 : i32
      %c16_i32_69 = arith.constant 16 : i32
      %120 = arith.muli %119, %c16_i32_69 : i32
      %c0_70 = arith.constant 0 : index
      %121 = arith.index_cast %120 : i32 to index
      %c0_71 = arith.constant 0 : index
      %122 = vector.load %arg2[%c0_70, %121, %c0_71] : memref<1x128x128xbf16, #tpu.memory_space<vmem>>, vector<1x16x128xbf16>
      %123 = vector.shape_cast %122 : vector<1x16x128xbf16> to vector<16x128xbf16>
      %c0_72 = arith.constant 0 : index
      %124 = arith.index_cast %120 : i32 to index
      %c0_73 = arith.constant 0 : index
      %125 = vector.load %arg3[%c0_72, %124, %c0_73] : memref<1x128x128xbf16, #tpu.memory_space<vmem>>, vector<1x16x128xbf16>
      %126 = vector.shape_cast %125 : vector<1x16x128xbf16> to vector<16x128xbf16>
      %127 = arith.addf %123, %126 : vector<16x128xbf16>
      %c1_74 = arith.constant 1 : index
      %c0_75 = arith.constant 0 : index
      %128 = vector.load %arg7[%c1_74, %c0_75] : memref<162x128xbf16, #tpu.memory_space<vmem>>, vector<16x128xbf16>
      tpu.vector_store %arg7[%c1_74, %c0_75], %127 {strides = array<i32>} : memref<162x128xbf16, #tpu.memory_space<vmem>>, vector<16x128xbf16>,
    } else {
    }
    %c0_i32_8 = arith.constant 0 : i32
    %16 = arith.cmpi eq, %arg1, %c0_i32_8 : i32
    %17 = arith.extui %16 : i1 to i32
    %c0_i32_9 = arith.constant 0 : i32
    %18 = arith.cmpi ne, %17, %c0_i32_9 : i32
    scf.if %18 {
      %cst_68 = arith.constant 0.000000e+00 : bf16
      %119 = vector.broadcast %cst_68 : bf16 to vector<16x128xbf16>
      %c1_69 = arith.constant 1 : index
      %c0_70 = arith.constant 0 : index
      %120 = vector.load %arg7[%c1_69, %c0_70] : memref<162x128xbf16, #tpu.memory_space<vmem>>, vector<16x128xbf16>
      tpu.vector_store %arg7[%c1_69, %c0_70], %119 {strides = array<i32>} : memref<162x128xbf16, #tpu.memory_space<vmem>>, vector<16x128xbf16>,
    } else {
    }
    %c0_i32_10 = arith.constant 0 : i32
    %19 = arith.cmpi slt, %arg1, %c0_i32_10 : i32
    %20 = arith.extui %19 : i1 to i32
    %c0_i32_11 = arith.constant 0 : i32
    %21 = arith.cmpi ne, %20, %c0_i32_11 : i32
    scf.if %21 {
      %c8_i32_68 = arith.constant 8 : i32
      %119 = arith.addi %0, %c8_i32_68 : i32
      %c16_i32_69 = arith.constant 16 : i32
      %120 = arith.muli %119, %c16_i32_69 : i32
      %c0_70 = arith.constant 0 : index
      %121 = arith.index_cast %120 : i32 to index
      %c0_71 = arith.constant 0 : index
      %122 = vector.load %arg2[%c0_70, %121, %c0_71] : memref<1x128x128xbf16, #tpu.memory_space<vmem>>, vector<1x16x128xbf16>
      %123 = vector.shape_cast %122 : vector<1x16x128xbf16> to vector<16x128xbf16>
      %c0_72 = arith.constant 0 : index
      %124 = arith.index_cast %120 : i32 to index
      %c0_73 = arith.constant 0 : index
      %125 = vector.load %arg3[%c0_72, %124, %c0_73] : memref<1x128x128xbf16, #tpu.memory_space<vmem>>, vector<1x16x128xbf16>
      %126 = vector.shape_cast %125 : vector<1x16x128xbf16> to vector<16x128xbf16>
      %127 = arith.addf %123, %126 : vector<16x128xbf16>
      %c145 = arith.constant 145 : index
      %c0_74 = arith.constant 0 : index
      %128 = vector.load %arg7[%c145, %c0_74] : memref<162x128xbf16, #tpu.memory_space<vmem>>, vector<16x128xbf16>
      tpu.vector_store %arg7[%c145, %c0_74], %127 {strides = array<i32>} : memref<162x128xbf16, #tpu.memory_space<vmem>>, vector<16x128xbf16>,
    } else {
    }
    %c0_i32_12 = arith.constant 0 : i32
    %22 = arith.cmpi eq, %arg1, %c0_i32_12 : i32
    %23 = arith.extui %22 : i1 to i32
    %c0_i32_13 = arith.constant 0 : i32
    %24 = arith.cmpi ne, %23, %c0_i32_13 : i32
    scf.if %24 {
      %cst_68 = arith.constant 0.000000e+00 : bf16
      %119 = vector.broadcast %cst_68 : bf16 to vector<16x128xbf16>
      %c145 = arith.constant 145 : index
      %c0_69 = arith.constant 0 : index
      %120 = vector.load %arg7[%c145, %c0_69] : memref<162x128xbf16, #tpu.memory_space<vmem>>, vector<16x128xbf16>
      tpu.vector_store %arg7[%c145, %c0_69], %119 {strides = array<i32>} : memref<162x128xbf16, #tpu.memory_space<vmem>>, vector<16x128xbf16>,
    } else {
    }
    %25 = tpu.iota {dimensions = array<i32: 0>} : vector<128x1xi32>
    %c16_i32_14 = arith.constant 16 : i32
    %c0_i32_15 = arith.constant 0 : i32
    %26 = arith.cmpi eq, %c16_i32_14, %c0_i32_15 : i32
    %c1_i32 = arith.constant 1 : i32
    %27 = arith.select %26, %c1_i32, %c16_i32_14 : i32
    %28 = vector.broadcast %27 : i32 to vector<128x1xi32>
    %29 = arith.remsi %25, %28 : vector<128x1xi32>
    %c0_i32_16 = arith.constant 0 : i32
    %30 = vector.broadcast %c0_i32_16 : i32 to vector<128x1xi32>
    %31 = arith.cmpi ne, %29, %30 : vector<128x1xi32>
    %c0_i32_17 = arith.constant 0 : i32
    %32 = vector.broadcast %c0_i32_17 : i32 to vector<128x1xi32>
    %33 = arith.cmpi slt, %29, %32 : vector<128x1xi32>
    %c0_i32_18 = arith.constant 0 : i32
    %34 = arith.cmpi slt, %27, %c0_i32_18 : i32
    %35 = vector.broadcast %34 : i1 to vector<128x1xi1>
    %36 = vector.broadcast %35 : vector<128x1xi1> to vector<128x1xi1>
    %37 = arith.xori %33, %36 : vector<128x1xi1>
    %38 = arith.andi %37, %31 : vector<128x1xi1>
    %39 = vector.broadcast %27 : i32 to vector<128x1xi32>
    %40 = arith.addi %29, %39 : vector<128x1xi32>
    %41 = arith.select %38, %40, %29 : vector<128x1xi1>, vector<128x1xi32>
    %c0_i32_19 = arith.constant 0 : i32
    %42 = vector.broadcast %c0_i32_19 : i32 to vector<128x1xi32>
    %43 = arith.cmpi ne, %41, %42 : vector<128x1xi32>
    %44 = arith.extui %43 : vector<128x1xi1> to vector<128x1xi32>
    %45 = arith.sitofp %44 : vector<128x1xi32> to vector<128x1xf32>
    %46 = arith.truncf %45 : vector<128x1xf32> to vector<128x1xbf16>
    %c15_i32 = arith.constant 15 : i32
    %47 = vector.broadcast %c15_i32 : i32 to vector<128x1xi32>
    %48 = arith.cmpi ne, %41, %47 : vector<128x1xi32>
    %49 = arith.extui %48 : vector<128x1xi1> to vector<128x1xi32>
    %50 = arith.sitofp %49 : vector<128x1xi32> to vector<128x1xf32>
    %51 = arith.truncf %50 : vector<128x1xf32> to vector<128x1xbf16>
    %c0_20 = arith.constant 0 : index
    %c0_21 = arith.constant 0 : index
    %52 = vector.load %arg5[%c0_20, %c0_21] : memref<1x128xf32, #tpu.memory_space<vmem>>, vector<1x128xf32>
    %cst_22 = arith.constant 0.000000e+00 : f32
    %53 = vector.broadcast %cst_22 : f32 to vector<128x128xf32>
    %c0_23 = arith.constant 0 : index
    %c0_24 = arith.constant 0 : index
    %54 = vector.load %arg7[%c0_23, %c0_24] : memref<162x128xbf16, #tpu.memory_space<vmem>>, vector<128x128xbf16>
    %55 = vector.broadcast %46 : vector<128x1xbf16> to vector<128x128xbf16>
    %56 = arith.mulf %54, %55 : vector<128x128xbf16>
    %c0_25 = arith.constant 0 : index
    %c0_26 = arith.constant 0 : index
    %c0_27 = arith.constant 0 : index
    %57 = vector.load %arg4[%c0_25, %c0_26, %c0_27] : memref<9x128x128xbf16, #tpu.memory_space<vmem>>, vector<1x128x128xbf16>
    %58 = vector.shape_cast %57 : vector<1x128x128xbf16> to vector<128x128xbf16>
    %cst_28 = arith.constant dense<0.000000e+00> : vector<128x128xf32>
    %59 = tpu.matmul %56, %58, %cst_28 {dimension_numbers = #tpu.dot_dimension_numbers<[1], [0], [0], [1], [0, 0, 1, 1], [], []>} : vector<128x128xbf16>, vector<128x128xbf16>, vector<128x128xf32> -> vector<128x128xf32>
    %60 = arith.addf %53, %59 : vector<128x128xf32>
    %c1 = arith.constant 1 : index
    %c0_29 = arith.constant 0 : index
    %61 = vector.load %arg7[%c1, %c0_29] : memref<162x128xbf16, #tpu.memory_space<vmem>>, vector<128x128xbf16>
    %c1_30 = arith.constant 1 : index
    %c0_31 = arith.constant 0 : index
    %c0_32 = arith.constant 0 : index
    %62 = vector.load %arg4[%c1_30, %c0_31, %c0_32] : memref<9x128x128xbf16, #tpu.memory_space<vmem>>, vector<1x128x128xbf16>
    %63 = vector.shape_cast %62 : vector<1x128x128xbf16> to vector<128x128xbf16>
    %cst_33 = arith.constant dense<0.000000e+00> : vector<128x128xf32>
    %64 = tpu.matmul %61, %63, %cst_33 {dimension_numbers = #tpu.dot_dimension_numbers<[1], [0], [0], [1], [0, 0, 1, 1], [], []>} : vector<128x128xbf16>, vector<128x128xbf16>, vector<128x128xf32> -> vector<128x128xf32>
    %65 = arith.addf %60, %64 : vector<128x128xf32>
    %c2 = arith.constant 2 : index
    %c0_34 = arith.constant 0 : index
    %66 = vector.load %arg7[%c2, %c0_34] : memref<162x128xbf16, #tpu.memory_space<vmem>>, vector<128x128xbf16>
    %67 = vector.broadcast %51 : vector<128x1xbf16> to vector<128x128xbf16>
    %68 = arith.mulf %66, %67 : vector<128x128xbf16>
    %c2_35 = arith.constant 2 : index
    %c0_36 = arith.constant 0 : index
    %c0_37 = arith.constant 0 : index
    %69 = vector.load %arg4[%c2_35, %c0_36, %c0_37] : memref<9x128x128xbf16, #tpu.memory_space<vmem>>, vector<1x128x128xbf16>
    %70 = vector.shape_cast %69 : vector<1x128x128xbf16> to vector<128x128xbf16>
    %cst_38 = arith.constant dense<0.000000e+00> : vector<128x128xf32>
    %71 = tpu.matmul %68, %70, %cst_38 {dimension_numbers = #tpu.dot_dimension_numbers<[1], [0], [0], [1], [0, 0, 1, 1], [], []>} : vector<128x128xbf16>, vector<128x128xbf16>, vector<128x128xf32> -> vector<128x128xf32>
    %72 = arith.addf %65, %71 : vector<128x128xf32>
    %c16 = arith.constant 16 : index
    %c0_39 = arith.constant 0 : index
    %73 = vector.load %arg7[%c16, %c0_39] : memref<162x128xbf16, #tpu.memory_space<vmem>>, vector<128x128xbf16>
    %74 = vector.broadcast %46 : vector<128x1xbf16> to vector<128x128xbf16>
    %75 = arith.mulf %73, %74 : vector<128x128xbf16>
    %c3 = arith.constant 3 : index
    %c0_40 = arith.constant 0 : index
    %c0_41 = arith.constant 0 : index
    %76 = vector.load %arg4[%c3, %c0_40, %c0_41] : memref<9x128x128xbf16, #tpu.memory_space<vmem>>, vector<1x128x128xbf16>
    %77 = vector.shape_cast %76 : vector<1x128x128xbf16> to vector<128x128xbf16>
    %cst_42 = arith.constant dense<0.000000e+00> : vector<128x128xf32>
    %78 = tpu.matmul %75, %77, %cst_42 {dimension_numbers = #tpu.dot_dimension_numbers<[1], [0], [0], [1], [0, 0, 1, 1], [], []>} : vector<128x128xbf16>, vector<128x128xbf16>, vector<128x128xf32> -> vector<128x128xf32>
    %79 = arith.addf %72, %78 : vector<128x128xf32>
    %c17_43 = arith.constant 17 : index
    %c0_44 = arith.constant 0 : index
    %80 = vector.load %arg7[%c17_43, %c0_44] : memref<162x128xbf16, #tpu.memory_space<vmem>>, vector<128x128xbf16>
    %c4 = arith.constant 4 : index
    %c0_45 = arith.constant 0 : index
    %c0_46 = arith.constant 0 : index
    %81 = vector.load %arg4[%c4, %c0_45, %c0_46] : memref<9x128x128xbf16, #tpu.memory_space<vmem>>, vector<1x128x128xbf16>
    %82 = vector.shape_cast %81 : vector<1x128x128xbf16> to vector<128x128xbf16>
    %cst_47 = arith.constant dense<0.000000e+00> : vector<128x128xf32>
    %83 = tpu.matmul %80, %82, %cst_47 {dimension_numbers = #tpu.dot_dimension_numbers<[1], [0], [0], [1], [0, 0, 1, 1], [], []>} : vector<128x128xbf16>, vector<128x128xbf16>, vector<128x128xf32> -> vector<128x128xf32>
    %84 = arith.addf %79, %83 : vector<128x128xf32>
    %c18 = arith.constant 18 : index
    %c0_48 = arith.constant 0 : index
    %85 = vector.load %arg7[%c18, %c0_48] : memref<162x128xbf16, #tpu.memory_space<vmem>>, vector<128x128xbf16>
    %86 = vector.broadcast %51 : vector<128x1xbf16> to vector<128x128xbf16>
    %87 = arith.mulf %85, %86 : vector<128x128xbf16>
    %c5 = arith.constant 5 : index
    %c0_49 = arith.constant 0 : index
    %c0_50 = arith.constant 0 : index
    %88 = vector.load %arg4[%c5, %c0_49, %c0_50] : memref<9x128x128xbf16, #tpu.memory_space<vmem>>, vector<1x128x128xbf16>
    %89 = vector.shape_cast %88 : vector<1x128x128xbf16> to vector<128x128xbf16>
    %cst_51 = arith.constant dense<0.000000e+00> : vector<128x128xf32>
    %90 = tpu.matmul %87, %89, %cst_51 {dimension_numbers = #tpu.dot_dimension_numbers<[1], [0], [0], [1], [0, 0, 1, 1], [], []>} : vector<128x128xbf16>, vector<128x128xbf16>, vector<128x128xf32> -> vector<128x128xf32>
    %91 = arith.addf %84, %90 : vector<128x128xf32>
    %c32 = arith.constant 32 : index
    %c0_52 = arith.constant 0 : index
    %92 = vector.load %arg7[%c32, %c0_52] : memref<162x128xbf16, #tpu.memory_space<vmem>>, vector<128x128xbf16>
    %93 = vector.broadcast %46 : vector<128x1xbf16> to vector<128x128xbf16>
    %94 = arith.mulf %92, %93 : vector<128x128xbf16>
    %c6 = arith.constant 6 : index
    %c0_53 = arith.constant 0 : index
    %c0_54 = arith.constant 0 : index
    %95 = vector.load %arg4[%c6, %c0_53, %c0_54] : memref<9x128x128xbf16, #tpu.memory_space<vmem>>, vector<1x128x128xbf16>
    %96 = vector.shape_cast %95 : vector<1x128x128xbf16> to vector<128x128xbf16>
    %cst_55 = arith.constant dense<0.000000e+00> : vector<128x128xf32>
    %97 = tpu.matmul %94, %96, %cst_55 {dimension_numbers = #tpu.dot_dimension_numbers<[1], [0], [0], [1], [0, 0, 1, 1], [], []>} : vector<128x128xbf16>, vector<128x128xbf16>, vector<128x128xf32> -> vector<128x128xf32>
    %98 = arith.addf %91, %97 : vector<128x128xf32>
    %c33 = arith.constant 33 : index
    %c0_56 = arith.constant 0 : index
    %99 = vector.load %arg7[%c33, %c0_56] : memref<162x128xbf16, #tpu.memory_space<vmem>>, vector<128x128xbf16>
    %c7 = arith.constant 7 : index
    %c0_57 = arith.constant 0 : index
    %c0_58 = arith.constant 0 : index
    %100 = vector.load %arg4[%c7, %c0_57, %c0_58] : memref<9x128x128xbf16, #tpu.memory_space<vmem>>, vector<1x128x128xbf16>
    %101 = vector.shape_cast %100 : vector<1x128x128xbf16> to vector<128x128xbf16>
    %cst_59 = arith.constant dense<0.000000e+00> : vector<128x128xf32>
    %102 = tpu.matmul %99, %101, %cst_59 {dimension_numbers = #tpu.dot_dimension_numbers<[1], [0], [0], [1], [0, 0, 1, 1], [], []>} : vector<128x128xbf16>, vector<128x128xbf16>, vector<128x128xf32> -> vector<128x128xf32>
    %103 = arith.addf %98, %102 : vector<128x128xf32>
    %c34 = arith.constant 34 : index
    %c0_60 = arith.constant 0 : index
    %104 = vector.load %arg7[%c34, %c0_60] : memref<162x128xbf16, #tpu.memory_space<vmem>>, vector<128x128xbf16>
    %105 = vector.broadcast %51 : vector<128x1xbf16> to vector<128x128xbf16>
    %106 = arith.mulf %104, %105 : vector<128x128xbf16>
    %c8 = arith.constant 8 : index
    %c0_61 = arith.constant 0 : index
    %c0_62 = arith.constant 0 : index
    %107 = vector.load %arg4[%c8, %c0_61, %c0_62] : memref<9x128x128xbf16, #tpu.memory_space<vmem>>, vector<1x128x128xbf16>
    %108 = vector.shape_cast %107 : vector<1x128x128xbf16> to vector<128x128xbf16>
    %cst_63 = arith.constant dense<0.000000e+00> : vector<128x128xf32>
    %109 = tpu.matmul %106, %108, %cst_63 {dimension_numbers = #tpu.dot_dimension_numbers<[1], [0], [0], [1], [0, 0, 1, 1], [], []>} : vector<128x128xbf16>, vector<128x128xbf16>, vector<128x128xf32> -> vector<128x128xf32>
    %110 = arith.addf %103, %109 : vector<128x128xf32>
    %111 = vector.broadcast %52 : vector<1x128xf32> to vector<128x128xf32>
    %112 = arith.addf %110, %111 : vector<128x128xf32>
    %cst_64 = arith.constant 0.000000e+00 : f32
    %113 = vector.broadcast %cst_64 : f32 to vector<128x128xf32>
    %114 = arith.maximumf %112, %113 : vector<128x128xf32>
    %115 = arith.truncf %114 : vector<128x128xf32> to vector<128x128xbf16>
    %c0_65 = arith.constant 0 : index
    %c0_66 = arith.constant 0 : index
    %c0_67 = arith.constant 0 : index
    %116 = vector.load %arg6[%c0_65, %c0_66, %c0_67] : memref<1x128x128xbf16, #tpu.memory_space<vmem>>, vector<1x128x128xbf16>
    %117 = vector.shape_cast %116 : vector<1x128x128xbf16> to vector<128x128xbf16>
    %118 = vector.shape_cast %115 : vector<128x128xbf16> to vector<1x128x128xbf16>
    tpu.vector_store %arg6[%c0_65, %c0_66, %c0_67], %118 {strides = array<i32>} : memref<1x128x128xbf16, #tpu.memory_space<vmem>>, vector<1x128x128xbf16>,
    return
  }
  func.func @transform_0(%arg0: i32, %arg1: i32) -> (i32, i32, i32) {
    %c0_i32 = arith.constant 0 : i32
    %c0_i32_0 = arith.constant 0 : i32
    %c0_i32_1 = arith.constant 0 : i32
    return %arg0, %c0_i32, %c0_i32_0 : i32, i32, i32
  }
  func.func @transform_1(%arg0: i32, %arg1: i32) -> (i32, i32, i32) {
    %c0_i32 = arith.constant 0 : i32
    %c0_i32_0 = arith.constant 0 : i32
    %c0_i32_1 = arith.constant 0 : i32
    return %arg0, %c0_i32, %c0_i32_0 : i32, i32, i32
  }
  func.func @transform_2(%arg0: i32, %arg1: i32) -> (i32, i32, i32) {
    %c0_i32 = arith.constant 0 : i32
    %c0_i32_0 = arith.constant 0 : i32
    %c0_i32_1 = arith.constant 0 : i32
    %c0_i32_2 = arith.constant 0 : i32
    return %c0_i32, %c0_i32_0, %c0_i32_1 : i32, i32, i32
  }
  func.func @transform_3(%arg0: i32, %arg1: i32) -> (i32, i32) {
    %c0_i32 = arith.constant 0 : i32
    %c0_i32_0 = arith.constant 0 : i32
    %c0_i32_1 = arith.constant 0 : i32
    return %c0_i32, %c0_i32_0 : i32, i32
  }
  func.func @transform_4(%arg0: i32, %arg1: i32) -> (i32, i32, i32) {
    %c0_i32 = arith.constant 0 : i32
    %c0_i32_0 = arith.constant 0 : i32
    return %arg0, %arg1, %c0_i32 : i32, i32, i32
  }
}

</mosaic_0001>

<llo_original>
// kernel: tpu_custom_call.1
$region0: #{tpu_custom_call.1}
  #allocation0 [shape = 'u32[]', space=smem, size = 0x4, offset = 0x4, fixed_abs, tag = 'smem constant byte address 0x4 - core index']
  #allocation1 [shape = 'u32[144,128]{1,0:T(1,128)}', space=vmem, size = 0x12000, scoped, tag = 'internal scratch']
  #allocation2 [shape = 'bf16[162,128]{1,0:T(8,128)(2,1)}', space=vmem, size = 0xa800, scoped, tag = 'scratch operand']
  %s0 = inlined_call_operand.hbm [shape: bf16[2,128,128], index: 0, kind: input, shape index: {}]
  %s1 = inlined_call_operand.hbm [shape: bf16[2,128,128], index: 1, kind: input, shape index: {}]
  %s2 = inlined_call_operand.hbm [shape: bf16[9,128,128], index: 2, kind: input, shape index: {}]
  %s3 = inlined_call_operand.vmem [shape: f32[1,128], index: 3, kind: input, shape index: {}]
  %s4 = inlined_call_operand.hbm [shape: bf16[2,128,128], index: 4, kind: output, shape index: {}]
  %s5 = sld [smem:[#allocation0]]
  $region77: #{tpu_custom_call.1} parent=0
    _
  %s7 = ssub.s32 1, %s5
  %s8 = scalar_select 0, %s7, %s5
  $region1: #{tpu_custom_call.1} parent=0
    #allocation3 [shape = 'u8[65536]{0}', space=vmem, size = 0x10000, scoped, tag = 'input window, operand 0']
    #allocation4 [shape = 's32[2]{0}', space=sflag, size = 0x8, scoped, tag = 'scoped memory for tpu_custom_call.1']
    #allocation5 [shape = 's32[2]{0}', space=sflag, size = 0x8, scoped, tag = 'scoped memory for tpu_custom_call.1']
    #allocation6 [shape = 'u8[65536]{0}', space=vmem, size = 0x10000, scoped, tag = 'input window, operand 1']
    #allocation7 [shape = 's32[2]{0}', space=sflag, size = 0x8, scoped, tag = 'scoped memory for tpu_custom_call.1']
    #allocation8 [shape = 'u8[294912]{0}', space=vmem, size = 0x48000, scoped, tag = 'input window, operand 2, single buffered']
    #allocation9 [shape = 'u8[65536]{0}', space=vmem, size = 0x10000, scoped, tag = 'output window, operand 0']
    %9 = vsyncpa [#allocation4], 0
    %s10 = scalar_lea.sflag [#allocation4], 1
    %11 = vsyncpa %s10, 0
    %12 = vsyncpa [#allocation7], 0
    %s13 = scalar_lea.sflag [#allocation7], 1
    %14 = vsyncpa %s13, 0
    %15 = vsyncpa [#allocation5], 0
    %s16 = scalar_lea.sflag [#allocation5], 1
    %17 = vsyncpa %s16, 0
    loop: start=0, step=1, limit=4
    $region2: #{tpu_custom_call.1} parent=1 // loop_pre_header
      _
    $region3: #{tpu_custom_call.1} parent=1 // loop_header
      %s19 = sphi 0, %s23
      %p20 = scmp.ge.s32.totalorder %s19, 4
      %s26 = sphi 0, %s38
      %s27 = sphi 0, %s34
      %s28 = sphi 0, %s26
      %s29 = sphi 0, %s27
      %s30 = sphi 0, %s28
      %s31 = sphi 0, %s29
      %s41 = sphi 0, %s43
      %s44 = sphi 0, %s41
      %s45 = sphi 0, %s44
      %s61 = sphi 0, %s45
      %s67 = sphi 0, %s69
      %s70 = sphi 0, %s67
      %s71 = sphi 0, %s70
      %s87 = sphi 0, %s71
      %s91 = sphi 0, %s91
      %s93 = sphi 0, %s91
      %s94 = sphi 0, %s93
      %s108 = sphi 0, %s94
      %s112 = sphi 0, %s112
      %s114 = sphi 0, %s112
      %s115 = sphi 0, %s114
      %s129 = sphi 0, %s115
      %s137 = sphi 0, %s139
      %s140 = sphi 0, %s137
      %s141 = sphi 0, %s140
      %s157 = sphi 0, %s141
    $region4: #{tpu_custom_call.1} parent=1 // loop_header_branch
      %22 = sbr.rel (%p20) target = $region8
    $region5: #{tpu_custom_call.1} parent=1 // loop_body
      %s24 = ssub.s32 %s19, 1
      %s25 = ssub.s32 %s19, 2
      %s32 = sadd.s32 1, %s27
      %p33 = scmp.ge.s32.totalorder %s32, 1
      %s34 = scalar_select %p33, 0, %s32
      %s35 = sadd.s32 1, %s26
      %s36 = scalar_select %p33, %s35, %s26
      %p37 = scmp.ge.s32.totalorder %s36, 2
      %s38 = scalar_select %p37, 0, %s36
      %s39 = ssub.s32 %s26, %s38
      %p40 = scmp.eq.s32.totalorder %s39, 0
      %s42 = sadd.s32 %s41, 1
      %s43 = scalar_select %p40, %s41, %s42
      %p46 = pneg %p40
      %p47 = scmp.eq.s32.totalorder %s19, 1
      %p48 = por %p46, %p47
      %p49 = scmp.ne.s32.totalorder %s41, %s44
      %p50 = scmp.eq.s32.totalorder %s19, 0
      %p51 = por %p49, %p50
      %p52 = scmp.ne.s32.totalorder %s41, %s44
      %p53 = scmp.eq.s32.totalorder %s24, 1
      %p54 = por %p52, %p53
      %p55 = scmp.ne.s32.totalorder %s44, %s45
      %p56 = scmp.eq.s32.totalorder %s24, 0
      %p57 = por %p55, %p56
      %p58 = scmp.ne.s32.totalorder %s44, %s45
      %p59 = scmp.eq.s32.totalorder %s25, 1
      %p60 = por %p58, %p59
      %p62 = scmp.ne.s32.totalorder %s45, %s61
      %p63 = scmp.eq.s32.totalorder %s25, 0
      %p64 = por %p62, %p63
      %s65 = ssub.s32 %s26, %s38
      %p66 = scmp.eq.s32.totalorder %s65, 0
      %s68 = sadd.s32 %s67, 1
      %s69 = scalar_select %p66, %s67, %s68
      %p72 = pneg %p66
      %p73 = scmp.eq.s32.totalorder %s19, 1
      %p74 = por %p72, %p73
      %p75 = scmp.ne.s32.totalorder %s67, %s70
      %p76 = scmp.eq.s32.totalorder %s19, 0
      %p77 = por %p75, %p76
      %p78 = scmp.ne.s32.totalorder %s67, %s70
      %p79 = scmp.eq.s32.totalorder %s24, 1
      %p80 = por %p78, %p79
      %p81 = scmp.ne.s32.totalorder %s70, %s71
      %p82 = scmp.eq.s32.totalorder %s24, 0
      %p83 = por %p81, %p82
      %p84 = scmp.ne.s32.totalorder %s70, %s71
      %p85 = scmp.eq.s32.totalorder %s25, 1
      %p86 = por %p84, %p85
      %p88 = scmp.ne.s32.totalorder %s71, %s87
      %p89 = scmp.eq.s32.totalorder %s25, 0
      %p90 = por %p88, %p89
      %s92 = sadd.s32 %s91, 1
      %p95 = scmp.eq.s32.totalorder %s19, 1
      %p96 = scmp.ne.s32.totalorder %s91, %s93
      %p97 = scmp.eq.s32.totalorder %s19, 0
      %p98 = por %p96, %p97
      %p99 = scmp.ne.s32.totalorder %s91, %s93
      %p100 = scmp.eq.s32.totalorder %s24, 1
      %p101 = por %p99, %p100
      %p102 = scmp.ne.s32.totalorder %s93, %s94
      %p103 = scmp.eq.s32.totalorder %s24, 0
      %p104 = por %p102, %p103
      %p105 = scmp.ne.s32.totalorder %s93, %s94
      %p106 = scmp.eq.s32.totalorder %s25, 1
      %p107 = por %p105, %p106
      %p109 = scmp.ne.s32.totalorder %s94, %s108
      %p110 = scmp.eq.s32.totalorder %s25, 0
      %p111 = por %p109, %p110
      %s113 = sadd.s32 %s112, 1
      %p116 = scmp.eq.s32.totalorder %s19, 1
      %p117 = scmp.ne.s32.totalorder %s112, %s114
      %p118 = scmp.eq.s32.totalorder %s19, 0
      %p119 = por %p117, %p118
      %p120 = scmp.ne.s32.totalorder %s112, %s114
      %p121 = scmp.eq.s32.totalorder %s24, 1
      %p122 = por %p120, %p121
      %p123 = scmp.ne.s32.totalorder %s114, %s115
      %p124 = scmp.eq.s32.totalorder %s24, 0
      %p125 = por %p123, %p124
      %p126 = scmp.ne.s32.totalorder %s114, %s115
      %p127 = scmp.eq.s32.totalorder %s25, 1
      %p128 = por %p126, %p127
      %p130 = scmp.ne.s32.totalorder %s115, %s129
      %p131 = scmp.eq.s32.totalorder %s25, 0
      %p132 = por %p130, %p131
      %s133 = ssub.s32 %s26, %s38
      %s134 = ssub.s32 %s27, %s34
      %s135 = sor.u32 %s133, %s134
      %p136 = scmp.eq.s32.totalorder %s135, 0
      %s138 = sadd.s32 %s137, 1
      %s139 = scalar_select %p136, %s137, %s138
      %p142 = pneg %p136
      %p143 = scmp.eq.s32.totalorder %s19, 1
      %p144 = por %p142, %p143
      %p145 = scmp.ne.s32.totalorder %s137, %s140
      %p146 = scmp.eq.s32.totalorder %s19, 0
      %p147 = por %p145, %p146
      %p148 = scmp.ne.s32.totalorder %s137, %s140
      %p149 = scmp.eq.s32.totalorder %s24, 1
      %p150 = por %p148, %p149
      %p151 = scmp.ne.s32.totalorder %s140, %s141
      %p152 = scmp.eq.s32.totalorder %s24, 0
      %p153 = por %p151, %p152
      %p154 = scmp.ne.s32.totalorder %s140, %s141
      %p155 = scmp.eq.s32.totalorder %s25, 1
      %p156 = por %p154, %p155
      %p158 = scmp.ne.s32.totalorder %s141, %s157
      %p159 = scmp.eq.s32.totalorder %s25, 0
      %p160 = por %p158, %p159
      %p161 = scmp.le.s32.totalorder 1, %s19
      %p162 = scmp.lt.s32.totalorder %s19, 3
      %p163 = pnand %p161, %p162
      %p164 = pneg %p163
      // Predicated region
      $region9: #{tpu_custom_call.1} parent=5 // pred_check
        _
      $region10: #{tpu_custom_call.1} parent=5 // pred_check_branch
        %166 = sbr.rel (%p163) target = $region12
      $region11: #{tpu_custom_call.1} parent=5 // pred_region
        %s167 = ssub.s32 %s19, 1
        // Predicated region
        $region13: #{tpu_custom_call.1} parent=11 // pred_check
          %p168 = pneg %p104
        $region14: #{tpu_custom_call.1} parent=11 // pred_check_branch
          %170 = sbr.rel (%p168) target = $region16
        $region15: #{tpu_custom_call.1} parent=11 // pred_region
          %s172 = ssub.s32 9216, 9216
          %173 = vsyncadd [#allocation7], %s172
          %s174 = sshll.u32 [#allocation8], 4
          %s175 = int_to_ptr.vmem [resolvable:$true] %s174
          %180 = dma.hbm_to_vmem [thread:$0]  %s2, 9216, %s175, [#allocation7], 64, 64, 4
        $region16: #{tpu_custom_call.1} parent=11 // pred_fallthru
          _
        // Predicated region
        $region17: #{tpu_custom_call.1} parent=11 // pred_check
          %p181 = pneg %p125
        $region18: #{tpu_custom_call.1} parent=11 // pred_check_branch
          %183 = sbr.rel (%p181) target = $region20
        $region19: #{tpu_custom_call.1} parent=11 // pred_region
          _
        $region20: #{tpu_custom_call.1} parent=11 // pred_fallthru
          _
      $region12: #{tpu_custom_call.1} parent=5 // pred_fallthru
        _
      %p184 = scmp.lt.s32.totalorder %s19, 2
      // Predicated region
      $region21: #{tpu_custom_call.1} parent=5 // pred_check
        %p185 = pneg %p184
      $region22: #{tpu_custom_call.1} parent=5 // pred_check_branch
        %187 = sbr.rel (%p185) target = $region24
      $region23: #{tpu_custom_call.1} parent=5 // pred_region
        // Predicated region
        $region25: #{tpu_custom_call.1} parent=23 // pred_check
          %p188 = pneg %p51
        $region26: #{tpu_custom_call.1} parent=23 // pred_check_branch
          %190 = sbr.rel (%p188) target = $region28
        $region27: #{tpu_custom_call.1} parent=23 // pred_region
          %s191 = sand.u32 %s41, 1
          %s192 = scalar_lea.sflag [#allocation4], %s191
          %s193 = sand.u32 %s41, 1
          %s194 = smul.addr %s193, 64
          %s195 = scalar_lea.vmem [#allocation3], %s194
          %s197 = ssub.s32 1024, 1024
          %198 = vsyncadd %s192, %s197
          %s199 = smul.addr %s26, 16
          %s200 = smul.addr %s199, 64
          %s201 = scalar_lea.hbm %s0, %s200
          %s202 = sshll.u32 %s195, 4
          %s203 = int_to_ptr.vmem [resolvable:$true] %s202
          %208 = dma.hbm_to_vmem [thread:$0]  %s201, 1024, %s203, %s192, 64, 64, 4
        $region28: #{tpu_custom_call.1} parent=23 // pred_fallthru
          _
        // Predicated region
        $region29: #{tpu_custom_call.1} parent=23 // pred_check
          %p209 = pneg %p77
        $region30: #{tpu_custom_call.1} parent=23 // pred_check_branch
          %211 = sbr.rel (%p209) target = $region32
        $region31: #{tpu_custom_call.1} parent=23 // pred_region
          %s212 = sand.u32 %s19, 1
          %s213 = scalar_lea.sflag [#allocation7], %s212
          %s214 = sand.u32 %s67, 1
          %s215 = smul.addr %s214, 64
          %s216 = scalar_lea.vmem [#allocation6], %s215
          %s218 = ssub.s32 1024, 1024
          %219 = vsyncadd %s213, %s218
          %s220 = smul.addr %s26, 16
          %s221 = smul.addr %s220, 64
          %s222 = scalar_lea.hbm %s1, %s221
          %s223 = sshll.u32 %s216, 4
          %s224 = int_to_ptr.vmem [resolvable:$true] %s223
          %229 = dma.hbm_to_vmem [thread:$0]  %s222, 1024, %s224, %s213, 64, 64, 4
        $region32: #{tpu_custom_call.1} parent=23 // pred_fallthru
          _
      $region24: #{tpu_custom_call.1} parent=5 // pred_fallthru
        _
      %p230 = scmp.le.s32.totalorder 1, %s19
      %p231 = scmp.lt.s32.totalorder %s19, 3
      %p232 = pnand %p230, %p231
      %p233 = pneg %p232
      // Predicated region
      $region33: #{tpu_custom_call.1} parent=5 // pred_check
        _
      $region34: #{tpu_custom_call.1} parent=5 // pred_check_branch
        %235 = sbr.rel (%p232) target = $region36
      $region35: #{tpu_custom_call.1} parent=5 // pred_region
        %s236 = ssub.s32 %s19, 1
        %s237 = sand.u32 %s44, 1
        %s238 = scalar_lea.sflag [#allocation4], %s237
        %s239 = sand.u32 %s44, 1
        %s240 = smul.addr %s239, 64
        %s241 = scalar_lea.vmem [#allocation3], %s240
        // Predicated region
        $region37: #{tpu_custom_call.1} parent=35 // pred_check
          %p242 = pneg %p57
        $region38: #{tpu_custom_call.1} parent=35 // pred_check_branch
          %244 = sbr.rel (%p242) target = $region40
        $region39: #{tpu_custom_call.1} parent=35 // pred_region
          %245 = dma.done %s238, 1024
        $region40: #{tpu_custom_call.1} parent=35 // pred_fallthru
          _
        %s246 = sand.u32 %s24, 1
        %s247 = scalar_lea.sflag [#allocation7], %s246
        %s248 = sand.u32 %s70, 1
        %s249 = smul.addr %s248, 64
        %s250 = scalar_lea.vmem [#allocation6], %s249
        // Predicated region
        $region41: #{tpu_custom_call.1} parent=35 // pred_check
          %p251 = pneg %p83
        $region42: #{tpu_custom_call.1} parent=35 // pred_check_branch
          %253 = sbr.rel (%p251) target = $region44
        $region43: #{tpu_custom_call.1} parent=35 // pred_region
          %254 = dma.done %s247, 1024
        $region44: #{tpu_custom_call.1} parent=35 // pred_fallthru
          _
        // Predicated region
        $region45: #{tpu_custom_call.1} parent=35 // pred_check
          %p255 = pneg %p104
        $region46: #{tpu_custom_call.1} parent=35 // pred_check_branch
          %257 = sbr.rel (%p255) target = $region48
        $region47: #{tpu_custom_call.1} parent=35 // pred_region
          %258 = dma.done [#allocation7], 9216
        $region48: #{tpu_custom_call.1} parent=35 // pred_fallthru
          _
        %s259 = sand.u32 %s44, 1
        %s260 = scalar_lea.sflag [#allocation4], %s259
        %s261 = sand.u32 %s44, 1
        %s262 = smul.addr %s261, 64
        %s263 = scalar_lea.vmem [#allocation3], %s262
        %p264 = pneg %p57
        %p265 = pneg %p54
        %s266 = sand.u32 %s24, 1
        %s267 = scalar_lea.sflag [#allocation7], %s266
        %s268 = sand.u32 %s70, 1
        %s269 = smul.addr %s268, 64
        %s270 = scalar_lea.vmem [#allocation6], %s269
        %p271 = pneg %p83
        %p272 = pneg %p80
        %p273 = pneg %p104
        %p274 = pneg %p101
        %p275 = pneg %p125
        %p276 = pneg %p122
        %p277 = pneg %p153
        %p278 = pneg %p150
        %s279 = sand.u32 %s140, 1
        %s280 = scalar_lea.sflag [#allocation5], %s279
        %s281 = sand.u32 %s140, 1
        %s282 = smul.addr %s281, 64
        %s283 = scalar_lea.vmem [#allocation9], %s282
        %s284 = smul.u32 16, %s29
        %s286 = smul.u32 %s29, 8
        %vm287 = vcmask 1040384
        %vm288 = vsmask.f32 256
        %vm289 = vmand %vm287, %vm288
        %v290 = vld [vmem:[#allocation2] sm:$0x1]
        %v291 = vsel %vm289, 0, %v290
        %292 = vst [vmem:[#allocation2] sm:$0x1] %v291
        %vm293 = vsmask.f32 7938
        %vm294 = vmand %vm287, %vm293
        %v295 = vld [vmem:[#allocation2 + $0x50] sm:$0x1]
        %v296 = vsel %vm294, 0, %v295
        %297 = vst [vmem:[#allocation2 + $0x50] sm:$0x1] %v296
        %s298 = smul.u32 %s29, 128
        %s299 = sshra.s32 %s298, 3
        %s300 = sand.u32 %s298, 7
        %s301 = smul.addr %s299, 4
        %s302 = scalar_lea.vmem %s241, %s301 [#allocation3]
        %v303 = vld [vmem:[%s302] sm:$0xf]
        %v304 = vld [vmem:[%s302 + $0x4] sm:$0xf]
        %v305 = vld [vmem:[%s302 + $0x8] sm:$0xf]
        %v306 = vld [vmem:[%s302 + $0xc] sm:$0xf]
        %v307 = vld [vmem:[%s302 + $0x10] sm:$0xf]
        %v308 = vld [vmem:[%s302 + $0x14] sm:$0xf]
        %v309 = vld [vmem:[%s302 + $0x18] sm:$0xf]
        %v310 = vld [vmem:[%s302 + $0x1c] sm:$0xf]
        %v311 = vld [vmem:[%s302 + $0x20] sm:$0xf]
        %v312 = vld [vmem:[%s302 + $0x24] sm:$0xf]
        %v313 = vld [vmem:[%s302 + $0x28] sm:$0xf]
        %v314 = vld [vmem:[%s302 + $0x2c] sm:$0xf]
        %v315 = vld [vmem:[%s302 + $0x30] sm:$0xf]
        %v316 = vld [vmem:[%s302 + $0x34] sm:$0xf]
        %v317 = vld [vmem:[%s302 + $0x38] sm:$0xf]
        %v318 = vld [vmem:[%s302 + $0x3c] sm:$0xf]
        %s319 = smul.addr %s299, 4
        %s320 = scalar_lea.vmem %s250, %s319 [#allocation6]
        %v321 = vld [vmem:[%s320] sm:$0xf]
        %v322 = vld [vmem:[%s320 + $0x4] sm:$0xf]
        %v323 = vld [vmem:[%s320 + $0x8] sm:$0xf]
        %v324 = vld [vmem:[%s320 + $0xc] sm:$0xf]
        %v325 = vld [vmem:[%s320 + $0x10] sm:$0xf]
        %v326 = vld [vmem:[%s320 + $0x14] sm:$0xf]
        %v327 = vld [vmem:[%s320 + $0x18] sm:$0xf]
        %v328 = vld [vmem:[%s320 + $0x1c] sm:$0xf]
        %v329 = vld [vmem:[%s320 + $0x20] sm:$0xf]
        %v330 = vld [vmem:[%s320 + $0x24] sm:$0xf]
        %v331 = vld [vmem:[%s320 + $0x28] sm:$0xf]
        %v332 = vld [vmem:[%s320 + $0x2c] sm:$0xf]
        %v333 = vld [vmem:[%s320 + $0x30] sm:$0xf]
        %v334 = vld [vmem:[%s320 + $0x34] sm:$0xf]
        %v335 = vld [vmem:[%s320 + $0x38] sm:$0xf]
        %v336 = vld [vmem:[%s320 + $0x3c] sm:$0xf]
        %v337 = vadd.bf16 %v303, %v321
        %v338 = vadd.bf16 %v304, %v322
        %v339 = vadd.bf16 %v305, %v323
        %v340 = vadd.bf16 %v306, %v324
        %v341 = vadd.bf16 %v307, %v325
        %v342 = vadd.bf16 %v308, %v326
        %v343 = vadd.bf16 %v309, %v327
        %v344 = vadd.bf16 %v310, %v328
        %v345 = vadd.bf16 %v311, %v329
        %v346 = vadd.bf16 %v312, %v330
        %v347 = vadd.bf16 %v313, %v331
        %v348 = vadd.bf16 %v314, %v332
        %v349 = vadd.bf16 %v315, %v333
        %v350 = vadd.bf16 %v316, %v334
        %v351 = vadd.bf16 %v317, %v335
        %v352 = vadd.bf16 %v318, %v336
        %vm353 = vsmask.f32 4368
        %vm354 = vmor %vm288, %vm353
        %v356 = vshrl.u32 %v337, 16
        %v358 = vrot.slane %v356, 7
        %v359 = vshll.u32 %v337, 16
        %v361 = vor.u32 %v358, %v359
        %v362 = vrot.slane %v358, 4
        %v364 = vshrl.u32 %v338, 16
        %v366 = vrot.slane %v364, 7
        %v367 = vshll.u32 %v338, 16
        %v369 = vor.u32 %v366, %v367
        %v370 = vsel %vm354, %v362, %v369
        %v371 = vrot.slane %v366, 4
        %v373 = vshrl.u32 %v339, 16
        %v375 = vrot.slane %v373, 7
        %v376 = vshll.u32 %v339, 16
        %v378 = vor.u32 %v375, %v376
        %v379 = vsel %vm354, %v371, %v378
        %v380 = vrot.slane %v375, 4
        %v382 = vshrl.u32 %v340, 16
        %v384 = vrot.slane %v382, 7
        %v385 = vshll.u32 %v340, 16
        %v387 = vor.u32 %v384, %v385
        %v388 = vsel %vm354, %v380, %v387
        %v389 = vrot.slane %v384, 4
        %v391 = vshrl.u32 %v341, 16
        %v393 = vrot.slane %v391, 7
        %v394 = vshll.u32 %v341, 16
        %v396 = vor.u32 %v393, %v394
        %v397 = vsel %vm354, %v389, %v396
        %v398 = vrot.slane %v393, 4
        %v400 = vshrl.u32 %v342, 16
        %v402 = vrot.slane %v400, 7
        %v403 = vshll.u32 %v342, 16
        %v405 = vor.u32 %v402, %v403
        %v406 = vsel %vm354, %v398, %v405
        %v407 = vrot.slane %v402, 4
        %v409 = vshrl.u32 %v343, 16
        %v411 = vrot.slane %v409, 7
        %v412 = vshll.u32 %v343, 16
        %v414 = vor.u32 %v411, %v412
        %v415 = vsel %vm354, %v407, %v414
        %v416 = vrot.slane %v411, 4
        %v418 = vshrl.u32 %v344, 16
        %v420 = vrot.slane %v418, 7
        %v421 = vshll.u32 %v344, 16
        %v423 = vor.u32 %v420, %v421
        %v424 = vsel %vm354, %v416, %v423
        %v425 = vrot.slane %v420, 4
        %v427 = vshrl.u32 %v345, 16
        %v429 = vrot.slane %v427, 7
        %v430 = vshll.u32 %v345, 16
        %v432 = vor.u32 %v429, %v430
        %v433 = vsel %vm354, %v425, %v432
        %v434 = vrot.slane %v429, 4
        %v436 = vshrl.u32 %v346, 16
        %v438 = vrot.slane %v436, 7
        %v439 = vshll.u32 %v346, 16
        %v441 = vor.u32 %v438, %v439
        %v442 = vsel %vm354, %v434, %v441
        %v443 = vrot.slane %v438, 4
        %v445 = vshrl.u32 %v347, 16
        %v447 = vrot.slane %v445, 7
        %v448 = vshll.u32 %v347, 16
        %v450 = vor.u32 %v447, %v448
        %v451 = vsel %vm354, %v443, %v450
        %v452 = vrot.slane %v447, 4
        %v454 = vshrl.u32 %v348, 16
        %v456 = vrot.slane %v454, 7
        %v457 = vshll.u32 %v348, 16
        %v459 = vor.u32 %v456, %v457
        %v460 = vsel %vm354, %v452, %v459
        %v461 = vrot.slane %v456, 4
        %v463 = vshrl.u32 %v349, 16
        %v465 = vrot.slane %v463, 7
        %v466 = vshll.u32 %v349, 16
        %v468 = vor.u32 %v465, %v466
        %v469 = vsel %vm354, %v461, %v468
        %v470 = vrot.slane %v465, 4
        %v472 = vshrl.u32 %v350, 16
        %v474 = vrot.slane %v472, 7
        %v475 = vshll.u32 %v350, 16
        %v477 = vor.u32 %v474, %v475
        %v478 = vsel %vm354, %v470, %v477
        %v479 = vrot.slane %v474, 4
        %v481 = vshrl.u32 %v351, 16
        %v483 = vrot.slane %v481, 7
        %v484 = vshll.u32 %v351, 16
        %v486 = vor.u32 %v483, %v484
        %v487 = vsel %vm354, %v479, %v486
        %v488 = vrot.slane %v483, 4
        %v490 = vshrl.u32 %v352, 16
        %v492 = vrot.slane %v490, 7
        %v493 = vshll.u32 %v352, 16
        %v495 = vor.u32 %v492, %v493
        %v496 = vsel %vm354, %v488, %v495
        %v497 = vrot.slane %v492, 4
        %vm515 = vcmask 1043456
        %vm516 = vmand %vm515, %vm293
        %v517 = vld [vmem:[#allocation2 + $0x8] sm:$0xf]
        %v518 = vsel %vm516, %v361, %v517
        %519 = vst [vmem:[#allocation2 + $0x8] sm:$0xf] %v518
        %520 = vst [vmem:[#allocation2 + $0xc] sm:$0xf] %v370
        %521 = vst [vmem:[#allocation2 + $0x10] sm:$0xf] %v379
        %522 = vst [vmem:[#allocation2 + $0x14] sm:$0xf] %v388
        %523 = vst [vmem:[#allocation2 + $0x18] sm:$0xf] %v397
        %524 = vst [vmem:[#allocation2 + $0x1c] sm:$0xf] %v406
        %525 = vst [vmem:[#allocation2 + $0x20] sm:$0xf] %v415
        %526 = vst [vmem:[#allocation2 + $0x24] sm:$0xf] %v424
        %527 = vst [vmem:[#allocation2 + $0x28] sm:$0xf] %v433
        %528 = vst [vmem:[#allocation2 + $0x2c] sm:$0xf] %v442
        %529 = vst [vmem:[#allocation2 + $0x30] sm:$0xf] %v451
        %530 = vst [vmem:[#allocation2 + $0x34] sm:$0xf] %v460
        %531 = vst [vmem:[#allocation2 + $0x38] sm:$0xf] %v469
        %532 = vst [vmem:[#allocation2 + $0x3c] sm:$0xf] %v478
        %533 = vst [vmem:[#allocation2 + $0x40] sm:$0xf] %v487
        %534 = vst [vmem:[#allocation2 + $0x44] sm:$0xf] %v496
        %v535 = vld [vmem:[#allocation2 + $0x48] sm:$0x1]
        %v536 = vsel %vm289, %v497, %v535
        %537 = vst [vmem:[#allocation2 + $0x48] sm:$0x1] %v536
        %p538 = scmp.gt.s32.totalorder %s29, 0
        // Predicated region
        $region49: #{tpu_custom_call.1} parent=35 // pred_check
          %p539 = pneg %p538
        $region50: #{tpu_custom_call.1} parent=35 // pred_check_branch
          %541 = sbr.rel (%p539) target = $region52
        $region51: #{tpu_custom_call.1} parent=35 // pred_region
          %s542 = ssub.s32 %s286, 1
          %s543 = smul.u32 %s542, 16
          %s544 = sshra.s32 %s543, 3
          %s545 = sand.u32 %s543, 7
          %s546 = smul.addr %s544, 4
          %s547 = scalar_lea.vmem %s241, %s546 [#allocation3]
          %v548 = vld [vmem:[%s547] sm:$0xf]
          %v549 = vld [vmem:[%s547 + $0x4] sm:$0xf]
          %s550 = smul.addr %s544, 4
          %s551 = scalar_lea.vmem %s250, %s550 [#allocation6]
          %v552 = vld [vmem:[%s551] sm:$0xf]
          %v553 = vld [vmem:[%s551 + $0x4] sm:$0xf]
          %v554 = vadd.bf16 %v548, %v552
          %v555 = vadd.bf16 %v549, %v553
          %v557 = vshrl.u32 %v554, 16
          %v559 = vrot.slane %v557, 7
          %v560 = vshll.u32 %v554, 16
          %v562 = vor.u32 %v559, %v560
          %v563 = vrot.slane %v559, 4
          %v565 = vshrl.u32 %v555, 16
          %v567 = vrot.slane %v565, 7
          %v568 = vshll.u32 %v555, 16
          %v570 = vor.u32 %v567, %v568
          %v571 = vsel %vm354, %v563, %v570
          %v572 = vrot.slane %v567, 4
          %v576 = vld [vmem:[#allocation2] sm:$0xf]
          %v577 = vsel %vm516, %v562, %v576
          %578 = vst [vmem:[#allocation2] sm:$0xf] %v577
          %579 = vst [vmem:[#allocation2 + $0x4] sm:$0xf] %v571
          %v580 = vld [vmem:[#allocation2 + $0x8] sm:$0x1]
          %v581 = vsel %vm289, %v572, %v580
          %582 = vst [vmem:[#allocation2 + $0x8] sm:$0x1] %v581
        $region52: #{tpu_custom_call.1} parent=35 // pred_fallthru
          _
        %p583 = scmp.eq.s32.totalorder %s29, 0
        // Predicated region
        $region53: #{tpu_custom_call.1} parent=35 // pred_check
          %p584 = pneg %p583
        $region54: #{tpu_custom_call.1} parent=35 // pred_check_branch
          %586 = sbr.rel (%p584) target = $region56
        $region55: #{tpu_custom_call.1} parent=35 // pred_region
          %v587 = vld [vmem:[#allocation2] sm:$0xf]
          %v588 = vsel %vm516, 0, %v587
          %589 = vst [vmem:[#allocation2] sm:$0xf] %v588
          %590 = vst [vmem:[#allocation2 + $0x4] sm:$0xf] 0
          %v591 = vld [vmem:[#allocation2 + $0x8] sm:$0x1]
          %v592 = vsel %vm289, 0, %v591
          %593 = vst [vmem:[#allocation2 + $0x8] sm:$0x1] %v592
        $region56: #{tpu_custom_call.1} parent=35 // pred_fallthru
          _
        %p594 = scmp.lt.s32.totalorder %s29, 0
        // Predicated region
        $region57: #{tpu_custom_call.1} parent=35 // pred_check
          %p595 = pneg %p594
        $region58: #{tpu_custom_call.1} parent=35 // pred_check_branch
          %597 = sbr.rel (%p595) target = $region60
        $region59: #{tpu_custom_call.1} parent=35 // pred_region
          %s598 = sadd.s32 %s286, 8
          %s599 = smul.u32 %s598, 16
          %s600 = sshra.s32 %s599, 3
          %s601 = sand.u32 %s599, 7
          %s602 = smul.addr %s600, 4
          %s603 = scalar_lea.vmem %s241, %s602 [#allocation3]
          %v604 = vld [vmem:[%s603] sm:$0xf]
          %v605 = vld [vmem:[%s603 + $0x4] sm:$0xf]
          %s606 = smul.addr %s600, 4
          %s607 = scalar_lea.vmem %s250, %s606 [#allocation6]
          %v608 = vld [vmem:[%s607] sm:$0xf]
          %v609 = vld [vmem:[%s607 + $0x4] sm:$0xf]
          %v610 = vadd.bf16 %v604, %v608
          %v611 = vadd.bf16 %v605, %v609
          %v613 = vshrl.u32 %v610, 16
          %v615 = vrot.slane %v613, 7
          %v616 = vshll.u32 %v610, 16
          %v618 = vor.u32 %v615, %v616
          %v619 = vrot.slane %v615, 4
          %v621 = vshrl.u32 %v611, 16
          %v623 = vrot.slane %v621, 7
          %v624 = vshll.u32 %v611, 16
          %v626 = vor.u32 %v623, %v624
          %v627 = vsel %vm354, %v619, %v626
          %v628 = vrot.slane %v623, 4
          %v632 = vld [vmem:[#allocation2 + $0x48] sm:$0xf]
          %v633 = vsel %vm516, %v618, %v632
          %634 = vst [vmem:[#allocation2 + $0x48] sm:$0xf] %v633
          %635 = vst [vmem:[#allocation2 + $0x4c] sm:$0xf] %v627
          %v636 = vld [vmem:[#allocation2 + $0x50] sm:$0x1]
          %v637 = vsel %vm289, %v628, %v636
          %638 = vst [vmem:[#allocation2 + $0x50] sm:$0x1] %v637
        $region60: #{tpu_custom_call.1} parent=35 // pred_fallthru
          _
        // Predicated region
        $region61: #{tpu_custom_call.1} parent=35 // pred_check
          %p639 = pneg %p583
        $region62: #{tpu_custom_call.1} parent=35 // pred_check_branch
          %641 = sbr.rel (%p639) target = $region64
        $region63: #{tpu_custom_call.1} parent=35 // pred_region
          %v642 = vld [vmem:[#allocation2 + $0x48] sm:$0xf]
          %v643 = vsel %vm516, 0, %v642
          %644 = vst [vmem:[#allocation2 + $0x48] sm:$0xf] %v643
          %645 = vst [vmem:[#allocation2 + $0x4c] sm:$0xf] 0
          %v646 = vld [vmem:[#allocation2 + $0x50] sm:$0x1]
          %v647 = vsel %vm289, 0, %v646
          %648 = vst [vmem:[#allocation2 + $0x50] sm:$0x1] %v647
        $region64: #{tpu_custom_call.1} parent=35 // pred_fallthru
          _
        %v649 = vlaneseq
        %v650 = vshrl.u32 %v649, 7
        %v651 = vadd.s32 %v650, 8
        %v652 = vadd.s32 %v650, 16
        %v653 = vadd.s32 %v650, 24
        %v654 = vadd.s32 %v650, 32
        %v655 = vadd.s32 %v650, 40
        %v656 = vadd.s32 %v650, 48
        %v657 = vadd.s32 %v650, 56
        %v658 = vadd.s32 %v650, 64
        %v659 = vadd.s32 %v650, 72
        %v660 = vadd.s32 %v650, 80
        %v661 = vadd.s32 %v650, 88
        %v662 = vadd.s32 %v650, 96
        %v663 = vadd.s32 %v650, 104
        %v664 = vadd.s32 %v650, 112
        %v665 = vadd.s32 %v650, 120
        %vm666 = vcmp.lt.s32.totalorder %v650, 0
        %v667 = vsub.s32 0, %v650
        %v668 = vsel %vm666, %v667, %v650
        %v669 = vshrl.u32 %v668, 4
        %v670 = vand.u32 %v668, 15
        %v671 = vsub.s32 0, %v670
        %v672 = vsel %vm666, %v671, %v670
        %vm673 = vcmp.lt.s32.totalorder %v651, 0
        %v674 = vsub.s32 0, %v651
        %v675 = vsel %vm673, %v674, %v651
        %v676 = vshrl.u32 %v675, 4
        %v677 = vand.u32 %v675, 15
        %v678 = vsub.s32 0, %v677
        %v679 = vsel %vm673, %v678, %v677
        %vm680 = vcmp.lt.s32.totalorder %v652, 0
        %v681 = vsub.s32 0, %v652
        %v682 = vsel %vm680, %v681, %v652
        %v683 = vshrl.u32 %v682, 4
        %v684 = vand.u32 %v682, 15
        %v685 = vsub.s32 0, %v684
        %v686 = vsel %vm680, %v685, %v684
        %vm687 = vcmp.lt.s32.totalorder %v653, 0
        %v688 = vsub.s32 0, %v653
        %v689 = vsel %vm687, %v688, %v653
        %v690 = vshrl.u32 %v689, 4
        %v691 = vand.u32 %v689, 15
        %v692 = vsub.s32 0, %v691
        %v693 = vsel %vm687, %v692, %v691
        %vm694 = vcmp.lt.s32.totalorder %v654, 0
        %v695 = vsub.s32 0, %v654
        %v696 = vsel %vm694, %v695, %v654
        %v697 = vshrl.u32 %v696, 4
        %v698 = vand.u32 %v696, 15
        %v699 = vsub.s32 0, %v698
        %v700 = vsel %vm694, %v699, %v698
        %vm701 = vcmp.lt.s32.totalorder %v655, 0
        %v702 = vsub.s32 0, %v655
        %v703 = vsel %vm701, %v702, %v655
        %v704 = vshrl.u32 %v703, 4
        %v705 = vand.u32 %v703, 15
        %v706 = vsub.s32 0, %v705
        %v707 = vsel %vm701, %v706, %v705
        %vm708 = vcmp.lt.s32.totalorder %v656, 0
        %v709 = vsub.s32 0, %v656
        %v710 = vsel %vm708, %v709, %v656
        %v711 = vshrl.u32 %v710, 4
        %v712 = vand.u32 %v710, 15
        %v713 = vsub.s32 0, %v712
        %v714 = vsel %vm708, %v713, %v712
        %vm715 = vcmp.lt.s32.totalorder %v657, 0
        %v716 = vsub.s32 0, %v657
        %v717 = vsel %vm715, %v716, %v657
        %v718 = vshrl.u32 %v717, 4
        %v719 = vand.u32 %v717, 15
        %v720 = vsub.s32 0, %v719
        %v721 = vsel %vm715, %v720, %v719
        %vm722 = vcmp.lt.s32.totalorder %v658, 0
        %v723 = vsub.s32 0, %v658
        %v724 = vsel %vm722, %v723, %v658
        %v725 = vshrl.u32 %v724, 4
        %v726 = vand.u32 %v724, 15
        %v727 = vsub.s32 0, %v726
        %v728 = vsel %vm722, %v727, %v726
        %vm729 = vcmp.lt.s32.totalorder %v659, 0
        %v730 = vsub.s32 0, %v659
        %v731 = vsel %vm729, %v730, %v659
        %v732 = vshrl.u32 %v731, 4
        %v733 = vand.u32 %v731, 15
        %v734 = vsub.s32 0, %v733
        %v735 = vsel %vm729, %v734, %v733
        %vm736 = vcmp.lt.s32.totalorder %v660, 0
        %v737 = vsub.s32 0, %v660
        %v738 = vsel %vm736, %v737, %v660
        %v739 = vshrl.u32 %v738, 4
        %v740 = vand.u32 %v738, 15
        %v741 = vsub.s32 0, %v740
        %v742 = vsel %vm736, %v741, %v740
        %vm743 = vcmp.lt.s32.totalorder %v661, 0
        %v744 = vsub.s32 0, %v661
        %v745 = vsel %vm743, %v744, %v661
        %v746 = vshrl.u32 %v745, 4
        %v747 = vand.u32 %v745, 15
        %v748 = vsub.s32 0, %v747
        %v749 = vsel %vm743, %v748, %v747
        %vm750 = vcmp.lt.s32.totalorder %v662, 0
        %v751 = vsub.s32 0, %v662
        %v752 = vsel %vm750, %v751, %v662
        %v753 = vshrl.u32 %v752, 4
        %v754 = vand.u32 %v752, 15
        %v755 = vsub.s32 0, %v754
        %v756 = vsel %vm750, %v755, %v754
        %vm757 = vcmp.lt.s32.totalorder %v663, 0
        %v758 = vsub.s32 0, %v663
        %v759 = vsel %vm757, %v758, %v663
        %v760 = vshrl.u32 %v759, 4
        %v761 = vand.u32 %v759, 15
        %v762 = vsub.s32 0, %v761
        %v763 = vsel %vm757, %v762, %v761
        %vm764 = vcmp.lt.s32.totalorder %v664, 0
        %v765 = vsub.s32 0, %v664
        %v766 = vsel %vm764, %v765, %v664
        %v767 = vshrl.u32 %v766, 4
        %v768 = vand.u32 %v766, 15
        %v769 = vsub.s32 0, %v768
        %v770 = vsel %vm764, %v769, %v768
        %vm771 = vcmp.lt.s32.totalorder %v665, 0
        %v772 = vsub.s32 0, %v665
        %v773 = vsel %vm771, %v772, %v665
        %v774 = vshrl.u32 %v773, 4
        %v775 = vand.u32 %v773, 15
        %v776 = vsub.s32 0, %v775
        %v777 = vsel %vm771, %v776, %v775
        %vm778 = vcmp.ne.s32.totalorder %v672, 0
        %vm779 = vcmp.ne.s32.totalorder %v679, 0
        %vm780 = vcmp.ne.s32.totalorder %v686, 0
        %vm781 = vcmp.ne.s32.totalorder %v693, 0
        %vm782 = vcmp.ne.s32.totalorder %v700, 0
        %vm783 = vcmp.ne.s32.totalorder %v707, 0
        %vm784 = vcmp.ne.s32.totalorder %v714, 0
        %vm785 = vcmp.ne.s32.totalorder %v721, 0
        %vm786 = vcmp.ne.s32.totalorder %v728, 0
        %vm787 = vcmp.ne.s32.totalorder %v735, 0
        %vm788 = vcmp.ne.s32.totalorder %v742, 0
        %vm789 = vcmp.ne.s32.totalorder %v749, 0
        %vm790 = vcmp.ne.s32.totalorder %v756, 0
        %vm791 = vcmp.ne.s32.totalorder %v763, 0
        %vm792 = vcmp.ne.s32.totalorder %v770, 0
        %vm793 = vcmp.ne.s32.totalorder %v777, 0
        %vm794 = vcmp.lt.s32.totalorder %v672, 0
        %vm795 = vcmp.lt.s32.totalorder %v679, 0
        %vm796 = vcmp.lt.s32.totalorder %v686, 0
        %vm797 = vcmp.lt.s32.totalorder %v693, 0
        %vm798 = vcmp.lt.s32.totalorder %v700, 0
        %vm799 = vcmp.lt.s32.totalorder %v707, 0
        %vm800 = vcmp.lt.s32.totalorder %v714, 0
        %vm801 = vcmp.lt.s32.totalorder %v721, 0
        %vm802 = vcmp.lt.s32.totalorder %v728, 0
        %vm803 = vcmp.lt.s32.totalorder %v735, 0
        %vm804 = vcmp.lt.s32.totalorder %v742, 0
        %vm805 = vcmp.lt.s32.totalorder %v749, 0
        %vm806 = vcmp.lt.s32.totalorder %v756, 0
        %vm807 = vcmp.lt.s32.totalorder %v763, 0
        %vm808 = vcmp.lt.s32.totalorder %v770, 0
        %vm809 = vcmp.lt.s32.totalorder %v777, 0
        %vm810 = vmand %vm794, %vm778
        %vm811 = vmand %vm795, %vm779
        %vm812 = vmand %vm796, %vm780
        %vm813 = vmand %vm797, %vm781
        %vm814 = vmand %vm798, %vm782
        %vm815 = vmand %vm799, %vm783
        %vm816 = vmand %vm800, %vm784
        %vm817 = vmand %vm801, %vm785
        %vm818 = vmand %vm802, %vm786
        %vm819 = vmand %vm803, %vm787
        %vm820 = vmand %vm804, %vm788
        %vm821 = vmand %vm805, %vm789
        %vm822 = vmand %vm806, %vm790
        %vm823 = vmand %vm807, %vm791
        %vm824 = vmand %vm808, %vm792
        %vm825 = vmand %vm809, %vm793
        %v826 = vadd.s32 %v672, 16
        %v827 = vadd.s32 %v679, 16
        %v828 = vadd.s32 %v686, 16
        %v829 = vadd.s32 %v693, 16
        %v830 = vadd.s32 %v700, 16
        %v831 = vadd.s32 %v707, 16
        %v832 = vadd.s32 %v714, 16
        %v833 = vadd.s32 %v721, 16
        %v834 = vadd.s32 %v728, 16
        %v835 = vadd.s32 %v735, 16
        %v836 = vadd.s32 %v742, 16
        %v837 = vadd.s32 %v749, 16
        %v838 = vadd.s32 %v756, 16
        %v839 = vadd.s32 %v763, 16
        %v840 = vadd.s32 %v770, 16
        %v841 = vadd.s32 %v777, 16
        %v842 = vsel %vm810, %v826, %v672
        %v843 = vsel %vm811, %v827, %v679
        %v844 = vsel %vm812, %v828, %v686
        %v845 = vsel %vm813, %v829, %v693
        %v846 = vsel %vm814, %v830, %v700
        %v847 = vsel %vm815, %v831, %v707
        %v848 = vsel %vm816, %v832, %v714
        %v849 = vsel %vm817, %v833, %v721
        %v850 = vsel %vm818, %v834, %v728
        %v851 = vsel %vm819, %v835, %v735
        %v852 = vsel %vm820, %v836, %v742
        %v853 = vsel %vm821, %v837, %v749
        %v854 = vsel %vm822, %v838, %v756
        %v855 = vsel %vm823, %v839, %v763
        %v856 = vsel %vm824, %v840, %v770
        %v857 = vsel %vm825, %v841, %v777
        %vm858 = vcmp.ne.s32.totalorder %v842, 0
        %vm859 = vcmp.ne.s32.totalorder %v843, 0
        %vm860 = vcmp.ne.s32.totalorder %v844, 0
        %vm861 = vcmp.ne.s32.totalorder %v845, 0
        %vm862 = vcmp.ne.s32.totalorder %v846, 0
        %vm863 = vcmp.ne.s32.totalorder %v847, 0
        %vm864 = vcmp.ne.s32.totalorder %v848, 0
        %vm865 = vcmp.ne.s32.totalorder %v849, 0
        %vm866 = vcmp.ne.s32.totalorder %v850, 0
        %vm867 = vcmp.ne.s32.totalorder %v851, 0
        %vm868 = vcmp.ne.s32.totalorder %v852, 0
        %vm869 = vcmp.ne.s32.totalorder %v853, 0
        %vm870 = vcmp.ne.s32.totalorder %v854, 0
        %vm871 = vcmp.ne.s32.totalorder %v855, 0
        %vm872 = vcmp.ne.s32.totalorder %v856, 0
        %vm873 = vcmp.ne.s32.totalorder %v857, 0
        %v874 = vsel %vm858, 1, 0
        %v875 = vsel %vm859, 1, 0
        %v876 = vsel %vm860, 1, 0
        %v877 = vsel %vm861, 1, 0
        %v878 = vsel %vm862, 1, 0
        %v879 = vsel %vm863, 1, 0
        %v880 = vsel %vm864, 1, 0
        %v881 = vsel %vm865, 1, 0
        %v882 = vsel %vm866, 1, 0
        %v883 = vsel %vm867, 1, 0
        %v884 = vsel %vm868, 1, 0
        %v885 = vsel %vm869, 1, 0
        %v886 = vsel %vm870, 1, 0
        %v887 = vsel %vm871, 1, 0
        %v888 = vsel %vm872, 1, 0
        %v889 = vsel %vm873, 1, 0
        %v890 = vcvt.s32.f32 %v874
        %v891 = vcvt.s32.f32 %v875
        %v892 = vcvt.s32.f32 %v876
        %v893 = vcvt.s32.f32 %v877
        %v894 = vcvt.s32.f32 %v878
        %v895 = vcvt.s32.f32 %v879
        %v896 = vcvt.s32.f32 %v880
        %v897 = vcvt.s32.f32 %v881
        %v898 = vcvt.s32.f32 %v882
        %v899 = vcvt.s32.f32 %v883
        %v900 = vcvt.s32.f32 %v884
        %v901 = vcvt.s32.f32 %v885
        %v902 = vcvt.s32.f32 %v886
        %v903 = vcvt.s32.f32 %v887
        %v904 = vcvt.s32.f32 %v888
        %v905 = vcvt.s32.f32 %v889
        %v906 = vpack.c.bf16 %v891, %v890
        %v907 = vpack.c.bf16 %v893, %v892
        %v908 = vpack.c.bf16 %v895, %v894
        %v909 = vpack.c.bf16 %v897, %v896
        %v910 = vpack.c.bf16 %v899, %v898
        %v911 = vpack.c.bf16 %v901, %v900
        %v912 = vpack.c.bf16 %v903, %v902
        %v913 = vpack.c.bf16 %v905, %v904
        %vm914 = vcmp.ne.s32.totalorder %v842, 15
        %vm915 = vcmp.ne.s32.totalorder %v843, 15
        %vm916 = vcmp.ne.s32.totalorder %v844, 15
        %vm917 = vcmp.ne.s32.totalorder %v845, 15
        %vm918 = vcmp.ne.s32.totalorder %v846, 15
        %vm919 = vcmp.ne.s32.totalorder %v847, 15
        %vm920 = vcmp.ne.s32.totalorder %v848, 15
        %vm921 = vcmp.ne.s32.totalorder %v849, 15
        %vm922 = vcmp.ne.s32.totalorder %v850, 15
        %vm923 = vcmp.ne.s32.totalorder %v851, 15
        %vm924 = vcmp.ne.s32.totalorder %v852, 15
        %vm925 = vcmp.ne.s32.totalorder %v853, 15
        %vm926 = vcmp.ne.s32.totalorder %v854, 15
        %vm927 = vcmp.ne.s32.totalorder %v855, 15
        %vm928 = vcmp.ne.s32.totalorder %v856, 15
        %vm929 = vcmp.ne.s32.totalorder %v857, 15
        %v930 = vsel %vm914, 1, 0
        %v931 = vsel %vm915, 1, 0
        %v932 = vsel %vm916, 1, 0
        %v933 = vsel %vm917, 1, 0
        %v934 = vsel %vm918, 1, 0
        %v935 = vsel %vm919, 1, 0
        %v936 = vsel %vm920, 1, 0
        %v937 = vsel %vm921, 1, 0
        %v938 = vsel %vm922, 1, 0
        %v939 = vsel %vm923, 1, 0
        %v940 = vsel %vm924, 1, 0
        %v941 = vsel %vm925, 1, 0
        %v942 = vsel %vm926, 1, 0
        %v943 = vsel %vm927, 1, 0
        %v944 = vsel %vm928, 1, 0
        %v945 = vsel %vm929, 1, 0
        %v946 = vcvt.s32.f32 %v930
        %v947 = vcvt.s32.f32 %v931
        %v948 = vcvt.s32.f32 %v932
        %v949 = vcvt.s32.f32 %v933
        %v950 = vcvt.s32.f32 %v934
        %v951 = vcvt.s32.f32 %v935
        %v952 = vcvt.s32.f32 %v936
        %v953 = vcvt.s32.f32 %v937
        %v954 = vcvt.s32.f32 %v938
        %v955 = vcvt.s32.f32 %v939
        %v956 = vcvt.s32.f32 %v940
        %v957 = vcvt.s32.f32 %v941
        %v958 = vcvt.s32.f32 %v942
        %v959 = vcvt.s32.f32 %v943
        %v960 = vcvt.s32.f32 %v944
        %v961 = vcvt.s32.f32 %v945
        %v962 = vpack.c.bf16 %v947, %v946
        %v963 = vpack.c.bf16 %v949, %v948
        %v964 = vpack.c.bf16 %v951, %v950
        %v965 = vpack.c.bf16 %v953, %v952
        %v966 = vpack.c.bf16 %v955, %v954
        %v967 = vpack.c.bf16 %v957, %v956
        %v968 = vpack.c.bf16 %v959, %v958
        %v969 = vpack.c.bf16 %v961, %v960
        %v970 = vld [vmem:[%s3] sm:$0x1]
        %v971 = vld [vmem:[#allocation2] sm:$0xf]
        %v972 = vld [vmem:[#allocation2 + $0x4] sm:$0xf]
        %v973 = vld [vmem:[#allocation2 + $0x8] sm:$0xf]
        %v974 = vld [vmem:[#allocation2 + $0xc] sm:$0xf]
        %v975 = vld [vmem:[#allocation2 + $0x10] sm:$0xf]
        %v976 = vld [vmem:[#allocation2 + $0x14] sm:$0xf]
        %v977 = vld [vmem:[#allocation2 + $0x18] sm:$0xf]
        %v978 = vld [vmem:[#allocation2 + $0x1c] sm:$0xf]
        %v979 = vld [vmem:[#allocation2 + $0x20] sm:$0xf]
        %v980 = vld [vmem:[#allocation2 + $0x24] sm:$0xf]
        %v981 = vld [vmem:[#allocation2 + $0x28] sm:$0xf]
        %v982 = vld [vmem:[#allocation2 + $0x2c] sm:$0xf]
        %v983 = vld [vmem:[#allocation2 + $0x30] sm:$0xf]
        %v984 = vld [vmem:[#allocation2 + $0x34] sm:$0xf]
        %v985 = vld [vmem:[#allocation2 + $0x38] sm:$0xf]
        %v986 = vld [vmem:[#allocation2 + $0x3c] sm:$0xf]
        %v996 = vunpack.c.l.s4 839922192
        %v997 = vunpack.c.0.s8 %v996
        %v998 = vlaneseq
        %v999 = vshrl.u32 %v998, 7
        %v1000 = vsub.s32 %v997, %v999
        %v1001 = vrot.slane %v906, %v1000
        %v1003 = vunpack.c.l.s4 1985246804
        %v1004 = vunpack.c.0.s8 %v1003
        %v1005 = vlaneseq
        %v1006 = vshrl.u32 %v1005, 7
        %v1007 = vsub.s32 %v1004, %v1006
        %v1008 = vrot.slane %v906, %v1007
        %v1010 = vunpack.c.l.s4 839922192
        %v1011 = vunpack.c.0.s8 %v1010
        %v1012 = vlaneseq
        %v1013 = vshrl.u32 %v1012, 7
        %v1014 = vsub.s32 %v1011, %v1013
        %v1015 = vrot.slane %v907, %v1014
        %v1017 = vunpack.c.l.s4 1985246804
        %v1018 = vunpack.c.0.s8 %v1017
        %v1019 = vlaneseq
        %v1020 = vshrl.u32 %v1019, 7
        %v1021 = vsub.s32 %v1018, %v1020
        %v1022 = vrot.slane %v907, %v1021
        %v1024 = vunpack.c.l.s4 839922192
        %v1025 = vunpack.c.0.s8 %v1024
        %v1026 = vlaneseq
        %v1027 = vshrl.u32 %v1026, 7
        %v1028 = vsub.s32 %v1025, %v1027
        %v1029 = vrot.slane %v908, %v1028
        %v1031 = vunpack.c.l.s4 1985246804
        %v1032 = vunpack.c.0.s8 %v1031
        %v1033 = vlaneseq
        %v1034 = vshrl.u32 %v1033, 7
        %v1035 = vsub.s32 %v1032, %v1034
        %v1036 = vrot.slane %v908, %v1035
        %v1038 = vunpack.c.l.s4 839922192
        %v1039 = vunpack.c.0.s8 %v1038
        %v1040 = vlaneseq
        %v1041 = vshrl.u32 %v1040, 7
        %v1042 = vsub.s32 %v1039, %v1041
        %v1043 = vrot.slane %v909, %v1042
        %v1045 = vunpack.c.l.s4 1985246804
        %v1046 = vunpack.c.0.s8 %v1045
        %v1047 = vlaneseq
        %v1048 = vshrl.u32 %v1047, 7
        %v1049 = vsub.s32 %v1046, %v1048
        %v1050 = vrot.slane %v909, %v1049
        %v1052 = vunpack.c.l.s4 839922192
        %v1053 = vunpack.c.0.s8 %v1052
        %v1054 = vlaneseq
        %v1055 = vshrl.u32 %v1054, 7
        %v1056 = vsub.s32 %v1053, %v1055
        %v1057 = vrot.slane %v910, %v1056
        %v1059 = vunpack.c.l.s4 1985246804
        %v1060 = vunpack.c.0.s8 %v1059
        %v1061 = vlaneseq
        %v1062 = vshrl.u32 %v1061, 7
        %v1063 = vsub.s32 %v1060, %v1062
        %v1064 = vrot.slane %v910, %v1063
        %v1066 = vunpack.c.l.s4 839922192
        %v1067 = vunpack.c.0.s8 %v1066
        %v1068 = vlaneseq
        %v1069 = vshrl.u32 %v1068, 7
        %v1070 = vsub.s32 %v1067, %v1069
        %v1071 = vrot.slane %v911, %v1070
        %v1073 = vunpack.c.l.s4 1985246804
        %v1074 = vunpack.c.0.s8 %v1073
        %v1075 = vlaneseq
        %v1076 = vshrl.u32 %v1075, 7
        %v1077 = vsub.s32 %v1074, %v1076
        %v1078 = vrot.slane %v911, %v1077
        %v1080 = vunpack.c.l.s4 839922192
        %v1081 = vunpack.c.0.s8 %v1080
        %v1082 = vlaneseq
        %v1083 = vshrl.u32 %v1082, 7
        %v1084 = vsub.s32 %v1081, %v1083
        %v1085 = vrot.slane %v912, %v1084
        %v1087 = vunpack.c.l.s4 1985246804
        %v1088 = vunpack.c.0.s8 %v1087
        %v1089 = vlaneseq
        %v1090 = vshrl.u32 %v1089, 7
        %v1091 = vsub.s32 %v1088, %v1090
        %v1092 = vrot.slane %v912, %v1091
        %v1094 = vunpack.c.l.s4 839922192
        %v1095 = vunpack.c.0.s8 %v1094
        %v1096 = vlaneseq
        %v1097 = vshrl.u32 %v1096, 7
        %v1098 = vsub.s32 %v1095, %v1097
        %v1099 = vrot.slane %v913, %v1098
        %v1101 = vunpack.c.l.s4 1985246804
        %v1102 = vunpack.c.0.s8 %v1101
        %v1103 = vlaneseq
        %v1104 = vshrl.u32 %v1103, 7
        %v1105 = vsub.s32 %v1102, %v1104
        %v1106 = vrot.slane %v913, %v1105
        %v1123 = vmul.bf16 %v971, %v1001
        %v1124 = vmul.bf16 %v972, %v1008
        %v1125 = vmul.bf16 %v973, %v1015
        %v1126 = vmul.bf16 %v974, %v1022
        %v1127 = vmul.bf16 %v975, %v1029
        %v1128 = vmul.bf16 %v976, %v1036
        %v1129 = vmul.bf16 %v977, %v1043
        %v1130 = vmul.bf16 %v978, %v1050
        %v1131 = vmul.bf16 %v979, %v1057
        %v1132 = vmul.bf16 %v980, %v1064
        %v1133 = vmul.bf16 %v981, %v1071
        %v1134 = vmul.bf16 %v982, %v1078
        %v1135 = vmul.bf16 %v983, %v1085
        %v1136 = vmul.bf16 %v984, %v1092
        %v1137 = vmul.bf16 %v985, %v1099
        %v1138 = vmul.bf16 %v986, %v1106
        %v1139 = vld [vmem:[#allocation8] sm:$0xf]
        %v1140 = vld [vmem:[#allocation8 + $0x4] sm:$0xf]
        %v1141 = vld [vmem:[#allocation8 + $0x8] sm:$0xf]
        %v1142 = vld [vmem:[#allocation8 + $0xc] sm:$0xf]
        %v1143 = vld [vmem:[#allocation8 + $0x10] sm:$0xf]
        %v1144 = vld [vmem:[#allocation8 + $0x14] sm:$0xf]
        %v1145 = vld [vmem:[#allocation8 + $0x18] sm:$0xf]
        %v1146 = vld [vmem:[#allocation8 + $0x1c] sm:$0xf]
        %v1147 = vld [vmem:[#allocation8 + $0x20] sm:$0xf]
        %v1148 = vld [vmem:[#allocation8 + $0x24] sm:$0xf]
        %v1149 = vld [vmem:[#allocation8 + $0x28] sm:$0xf]
        %v1150 = vld [vmem:[#allocation8 + $0x2c] sm:$0xf]
        %v1151 = vld [vmem:[#allocation8 + $0x30] sm:$0xf]
        %v1152 = vld [vmem:[#allocation8 + $0x34] sm:$0xf]
        %v1153 = vld [vmem:[#allocation8 + $0x38] sm:$0xf]
        %v1154 = vld [vmem:[#allocation8 + $0x3c] sm:$0xf]
        %v1155 = vld [vmem:[#allocation2 + $0x40] sm:$0x1]
        %s1156 = scalar_lea.vmem [#allocation8], 64
        %v1157 = vld [vmem:[%s1156] sm:$0xf]
        %v1158 = vld [vmem:[%s1156 + $0x4] sm:$0xf]
        %v1159 = vld [vmem:[%s1156 + $0x8] sm:$0xf]
        %v1160 = vld [vmem:[%s1156 + $0xc] sm:$0xf]
        %v1161 = vld [vmem:[%s1156 + $0x10] sm:$0xf]
        %v1162 = vld [vmem:[%s1156 + $0x14] sm:$0xf]
        %v1163 = vld [vmem:[%s1156 + $0x18] sm:$0xf]
        %v1164 = vld [vmem:[%s1156 + $0x1c] sm:$0xf]
        %v1165 = vld [vmem:[%s1156 + $0x20] sm:$0xf]
        %v1166 = vld [vmem:[%s1156 + $0x24] sm:$0xf]
        %v1167 = vld [vmem:[%s1156 + $0x28] sm:$0xf]
        %v1168 = vld [vmem:[%s1156 + $0x2c] sm:$0xf]
        %v1169 = vld [vmem:[%s1156 + $0x30] sm:$0xf]
        %v1170 = vld [vmem:[%s1156 + $0x34] sm:$0xf]
        %v1171 = vld [vmem:[%s1156 + $0x38] sm:$0xf]
        %v1172 = vld [vmem:[%s1156 + $0x3c] sm:$0xf]
        %v1190 = vunpack.c.l.b16 %v971
        %v1191 = vunpack.c.l.b16 %v972
        %v1192 = vunpack.c.l.b16 %v973
        %v1193 = vunpack.c.l.b16 %v974
        %v1194 = vunpack.c.l.b16 %v975
        %v1195 = vunpack.c.l.b16 %v976
        %v1196 = vunpack.c.l.b16 %v977
        %v1197 = vunpack.c.l.b16 %v978
        %v1198 = vunpack.c.l.b16 %v979
        %v1199 = vunpack.c.l.b16 %v980
        %v1200 = vunpack.c.l.b16 %v981
        %v1201 = vunpack.c.l.b16 %v982
        %v1202 = vunpack.c.l.b16 %v983
        %v1203 = vunpack.c.l.b16 %v984
        %v1204 = vunpack.c.l.b16 %v985
        %v1205 = vunpack.c.l.b16 %v986
        %v1206 = vunpack.c.l.b16 %v1155
        %v1207 = vpack.c.b16 %v1191, %v1190
        %v1208 = vpack.c.b16 %v1193, %v1192
        %v1209 = vpack.c.b16 %v1195, %v1194
        %v1210 = vpack.c.b16 %v1197, %v1196
        %v1211 = vpack.c.b16 %v1199, %v1198
        %v1212 = vpack.c.b16 %v1201, %v1200
        %v1213 = vpack.c.b16 %v1203, %v1202
        %v1214 = vpack.c.b16 %v1205, %v1204
        %v1215 = vpack.c.b16 %v1206, %v1206
        %vm1216 = vsmask.f32 7424
        %v1218 = vshrl.u32 %v1207, 16
        %v1220 = vshll.u32 %v1207, 16
        %v1222 = vrot.slane %v1220, 1
        %v1223 = vor.u32 %v1218, %v1222
        %v1225 = vshll.u32 %v1208, 16
        %v1227 = vrot.slane %v1225, 1
        %v1228 = vsel %vm1216, %v1223, %v1227
        %v1229 = vshrl.u32 %v1208, 16
        %v1231 = vor.u32 %v1229, %v1227
        %v1233 = vshll.u32 %v1209, 16
        %v1235 = vrot.slane %v1233, 1
        %v1236 = vsel %vm1216, %v1231, %v1235
        %v1237 = vshrl.u32 %v1209, 16
        %v1239 = vor.u32 %v1237, %v1235
        %v1241 = vshll.u32 %v1210, 16
        %v1243 = vrot.slane %v1241, 1
        %v1244 = vsel %vm1216, %v1239, %v1243
        %v1245 = vshrl.u32 %v1210, 16
        %v1247 = vor.u32 %v1245, %v1243
        %v1249 = vshll.u32 %v1211, 16
        %v1251 = vrot.slane %v1249, 1
        %v1252 = vsel %vm1216, %v1247, %v1251
        %v1253 = vshrl.u32 %v1211, 16
        %v1255 = vor.u32 %v1253, %v1251
        %v1257 = vshll.u32 %v1212, 16
        %v1259 = vrot.slane %v1257, 1
        %v1260 = vsel %vm1216, %v1255, %v1259
        %v1261 = vshrl.u32 %v1212, 16
        %v1263 = vor.u32 %v1261, %v1259
        %v1265 = vshll.u32 %v1213, 16
        %v1267 = vrot.slane %v1265, 1
        %v1268 = vsel %vm1216, %v1263, %v1267
        %v1269 = vshrl.u32 %v1213, 16
        %v1271 = vor.u32 %v1269, %v1267
        %v1273 = vshll.u32 %v1214, 16
        %v1275 = vrot.slane %v1273, 1
        %v1276 = vsel %vm1216, %v1271, %v1275
        %v1277 = vshrl.u32 %v1214, 16
        %v1279 = vor.u32 %v1277, %v1275
        %v1281 = vshll.u32 %v1215, 16
        %v1283 = vrot.slane %v1281, 1
        %v1284 = vsel %vm1216, %v1279, %v1283
        %v1309 = vunpack.c.l.b16 %v1157
        %v1310 = vunpack.c.l.b16 %v1158
        %v1311 = vunpack.c.l.b16 %v1159
        %v1312 = vunpack.c.l.b16 %v1160
        %v1313 = vunpack.c.l.b16 %v1161
        %v1314 = vunpack.c.l.b16 %v1162
        %v1315 = vunpack.c.l.b16 %v1163
        %v1316 = vunpack.c.l.b16 %v1164
        %v1317 = vunpack.c.l.b16 %v1165
        %v1318 = vunpack.c.l.b16 %v1166
        %v1319 = vunpack.c.l.b16 %v1167
        %v1320 = vunpack.c.l.b16 %v1168
        %v1321 = vunpack.c.l.b16 %v1169
        %v1322 = vunpack.c.l.b16 %v1170
        %v1323 = vunpack.c.l.b16 %v1171
        %v1324 = vunpack.c.l.b16 %v1172
        %v1325 = vpack.c.b16 %v1310, %v1309
        %v1326 = vpack.c.b16 %v1312, %v1311
        %v1327 = vpack.c.b16 %v1314, %v1313
        %v1328 = vpack.c.b16 %v1316, %v1315
        %v1329 = vpack.c.b16 %v1318, %v1317
        %v1330 = vpack.c.b16 %v1320, %v1319
        %v1331 = vpack.c.b16 %v1322, %v1321
        %v1332 = vpack.c.b16 %v1324, %v1323
        %1341 = vmatprep.subr.bf16.mxu0 0
        %1342 = vmatpush1.bf16.msra.mxu0 %v1332
        %1343 = vmatprep.subr.bf16.mxu0 0
        %1344 = vmatpush1.bf16.msra.mxu0 %v1331
        %1345 = vmatprep.subr.bf16.mxu0 0
        %1346 = vmatpush1.bf16.msra.mxu0 %v1330
        %1347 = vmatprep.subr.bf16.mxu0 0
        %1348 = vmatpush1.bf16.msra.mxu0 %v1329
        %1349 = vmatprep.subr.bf16.mxu0 0
        %1350 = vmatpush1.bf16.msra.mxu0 %v1328
        %1351 = vmatprep.subr.bf16.mxu0 0
        %1352 = vmatpush1.bf16.msra.mxu0 %v1327
        %1353 = vmatprep.subr.bf16.mxu0 0
        %1354 = vmatpush1.bf16.msra.mxu0 %v1326
        %1355 = vmatprep.subr.bf16.mxu0 0
        %1356 = vmatpush1.bf16.msra.mxu0 %v1325
        %1357 = vmatprep.subr.bf16.mxu0 0
        %1358 = vmatpush2.bf16.msra.mxu0 0
        %1359 = vmatprep.subr.bf16.mxu0 0
        %1360 = vmatpush2.bf16.msra.mxu0 0
        %1361 = vmatprep.subr.bf16.mxu0 0
        %1362 = vmatpush2.bf16.msra.mxu0 0
        %1363 = vmatprep.subr.bf16.mxu0 0
        %1364 = vmatpush2.bf16.msra.mxu0 0
        %1365 = vmatprep.subr.bf16.mxu0 0
        %1366 = vmatpush2.bf16.msra.mxu0 0
        %1367 = vmatprep.subr.bf16.mxu0 0
        %1368 = vmatpush2.bf16.msra.mxu0 0
        %1369 = vmatprep.subr.bf16.mxu0 0
        %1370 = vmatpush2.bf16.msra.mxu0 0
        %1371 = vmatprep.subr.bf16.mxu0 0
        %1372 = vmatpush2.bf16.msra.mxu0 0
        %1373 = vmatprep.mubr.bf16.mxu0 0
        %1374 = vmatmul.mubr.bf16.gmra.mxu0 %v1228
        %v1375 = vpop.f32.mrf.mxu0
        %v1376 = vadd.f32 0.0, %v1375
        %v1377 = vpop.f32.mrf.mxu0
        %v1378 = vpop.f32.mrf.mxu0
        %v1379 = vadd.f32 0.0, %v1378
        %v1380 = vpop.f32.mrf.mxu0
        %1381 = vmatprep.mubr.bf16.mxu0 0
        %1382 = vmatmul.mubr.bf16.gmra.mxu0 %v1236
        %v1383 = vpop.f32.mrf.mxu0
        %v1384 = vadd.f32 0.0, %v1383
        %v1385 = vpop.f32.mrf.mxu0
        %v1386 = vpop.f32.mrf.mxu0
        %v1387 = vadd.f32 0.0, %v1386
        %v1388 = vpop.f32.mrf.mxu0
        %1389 = vmatprep.mubr.bf16.mxu0 0
        %1390 = vmatmul.mubr.bf16.gmra.mxu0 %v1244
        %v1391 = vpop.f32.mrf.mxu0
        %v1392 = vadd.f32 0.0, %v1391
        %v1393 = vpop.f32.mrf.mxu0
        %v1394 = vpop.f32.mrf.mxu0
        %v1395 = vadd.f32 0.0, %v1394
        %v1396 = vpop.f32.mrf.mxu0
        %1397 = vmatprep.mubr.bf16.mxu0 0
        %1398 = vmatmul.mubr.bf16.gmra.mxu0 %v1252
        %v1399 = vpop.f32.mrf.mxu0
        %v1400 = vadd.f32 0.0, %v1399
        %v1401 = vpop.f32.mrf.mxu0
        %v1402 = vpop.f32.mrf.mxu0
        %v1403 = vadd.f32 0.0, %v1402
        %v1404 = vpop.f32.mrf.mxu0
        %1405 = vmatprep.mubr.bf16.mxu0 0
        %1406 = vmatmul.mubr.bf16.gmra.mxu0 %v1260
        %v1407 = vpop.f32.mrf.mxu0
        %v1408 = vadd.f32 0.0, %v1407
        %v1409 = vpop.f32.mrf.mxu0
        %v1410 = vpop.f32.mrf.mxu0
        %v1411 = vadd.f32 0.0, %v1410
        %v1412 = vpop.f32.mrf.mxu0
        %1413 = vmatprep.mubr.bf16.mxu0 0
        %1414 = vmatmul.mubr.bf16.gmra.mxu0 %v1268
        %v1415 = vpop.f32.mrf.mxu0
        %v1416 = vadd.f32 0.0, %v1415
        %v1417 = vpop.f32.mrf.mxu0
        %v1418 = vpop.f32.mrf.mxu0
        %v1419 = vadd.f32 0.0, %v1418
        %v1420 = vpop.f32.mrf.mxu0
        %1421 = vmatprep.mubr.bf16.mxu0 0
        %1422 = vmatmul.mubr.bf16.gmra.mxu0 %v1276
        %v1423 = vpop.f32.mrf.mxu0
        %v1424 = vadd.f32 0.0, %v1423
        %v1425 = vpop.f32.mrf.mxu0
        %v1426 = vpop.f32.mrf.mxu0
        %v1427 = vadd.f32 0.0, %v1426
        %v1428 = vpop.f32.mrf.mxu0
        %1429 = vmatprep.mubr.bf16.mxu0 0
        %1430 = vmatmul.mubr.bf16.gmra.mxu0 %v1284
        %v1431 = vpop.f32.mrf.mxu0
        %v1432 = vadd.f32 0.0, %v1431
        %v1433 = vpop.f32.mrf.mxu0
        %v1434 = vpop.f32.mrf.mxu0
        %v1435 = vadd.f32 0.0, %v1434
        %v1436 = vpop.f32.mrf.mxu0
        %1437 = vdwg.mxu0
        %v1454 = vunpack.c.l.b16 %v1123
        %v1455 = vunpack.c.l.b16 %v1124
        %v1456 = vunpack.c.l.b16 %v1125
        %v1457 = vunpack.c.l.b16 %v1126
        %v1458 = vunpack.c.l.b16 %v1127
        %v1459 = vunpack.c.l.b16 %v1128
        %v1460 = vunpack.c.l.b16 %v1129
        %v1461 = vunpack.c.l.b16 %v1130
        %v1462 = vunpack.c.l.b16 %v1131
        %v1463 = vunpack.c.l.b16 %v1132
        %v1464 = vunpack.c.l.b16 %v1133
        %v1465 = vunpack.c.l.b16 %v1134
        %v1466 = vunpack.c.l.b16 %v1135
        %v1467 = vunpack.c.l.b16 %v1136
        %v1468 = vunpack.c.l.b16 %v1137
        %v1469 = vunpack.c.l.b16 %v1138
        %v1470 = vpack.c.b16 %v1455, %v1454
        %v1471 = vpack.c.b16 %v1457, %v1456
        %v1472 = vpack.c.b16 %v1459, %v1458
        %v1473 = vpack.c.b16 %v1461, %v1460
        %v1474 = vpack.c.b16 %v1463, %v1462
        %v1475 = vpack.c.b16 %v1465, %v1464
        %v1476 = vpack.c.b16 %v1467, %v1466
        %v1477 = vpack.c.b16 %v1469, %v1468
        %v1502 = vunpack.c.l.b16 %v1139
        %v1503 = vunpack.c.l.b16 %v1140
        %v1504 = vunpack.c.l.b16 %v1141
        %v1505 = vunpack.c.l.b16 %v1142
        %v1506 = vunpack.c.l.b16 %v1143
        %v1507 = vunpack.c.l.b16 %v1144
        %v1508 = vunpack.c.l.b16 %v1145
        %v1509 = vunpack.c.l.b16 %v1146
        %v1510 = vunpack.c.l.b16 %v1147
        %v1511 = vunpack.c.l.b16 %v1148
        %v1512 = vunpack.c.l.b16 %v1149
        %v1513 = vunpack.c.l.b16 %v1150
        %v1514 = vunpack.c.l.b16 %v1151
        %v1515 = vunpack.c.l.b16 %v1152
        %v1516 = vunpack.c.l.b16 %v1153
        %v1517 = vunpack.c.l.b16 %v1154
        %v1518 = vpack.c.b16 %v1503, %v1502
        %v1519 = vpack.c.b16 %v1505, %v1504
        %v1520 = vpack.c.b16 %v1507, %v1506
        %v1521 = vpack.c.b16 %v1509, %v1508
        %v1522 = vpack.c.b16 %v1511, %v1510
        %v1523 = vpack.c.b16 %v1513, %v1512
        %v1524 = vpack.c.b16 %v1515, %v1514
        %v1525 = vpack.c.b16 %v1517, %v1516
        %1534 = vmatprep.subr.bf16.mxu0 0
        %1535 = vmatpush1.bf16.msra.mxu0 %v1525
        %1536 = vmatprep.subr.bf16.mxu0 0
        %1537 = vmatpush1.bf16.msra.mxu0 %v1524
        %1538 = vmatprep.subr.bf16.mxu0 0
        %1539 = vmatpush1.bf16.msra.mxu0 %v1523
        %1540 = vmatprep.subr.bf16.mxu0 0
        %1541 = vmatpush1.bf16.msra.mxu0 %v1522
        %1542 = vmatprep.subr.bf16.mxu0 0
        %1543 = vmatpush1.bf16.msra.mxu0 %v1521
        %1544 = vmatprep.subr.bf16.mxu0 0
        %1545 = vmatpush1.bf16.msra.mxu0 %v1520
        %1546 = vmatprep.subr.bf16.mxu0 0
        %1547 = vmatpush1.bf16.msra.mxu0 %v1519
        %1548 = vmatprep.subr.bf16.mxu0 0
        %1549 = vmatpush1.bf16.msra.mxu0 %v1518
        %1550 = vmatprep.subr.bf16.mxu0 0
        %1551 = vmatpush2.bf16.msra.mxu0 0
        %1552 = vmatprep.subr.bf16.mxu0 0
        %1553 = vmatpush2.bf16.msra.mxu0 0
        %1554 = vmatprep.subr.bf16.mxu0 0
        %1555 = vmatpush2.bf16.msra.mxu0 0
        %1556 = vmatprep.subr.bf16.mxu0 0
        %1557 = vmatpush2.bf16.msra.mxu0 0
        %1558 = vmatprep.subr.bf16.mxu0 0
        %1559 = vmatpush2.bf16.msra.mxu0 0
        %1560 = vmatprep.subr.bf16.mxu0 0
        %1561 = vmatpush2.bf16.msra.mxu0 0
        %1562 = vmatprep.subr.bf16.mxu0 0
        %1563 = vmatpush2.bf16.msra.mxu0 0
        %1564 = vmatprep.subr.bf16.mxu0 0
        %1565 = vmatpush2.bf16.msra.mxu0 0
        %1566 = vmatprep.mubr.bf16.mxu0 0
        %1567 = vmatmul.mubr.bf16.gmra.mxu0 %v1470
        %v1568 = vpop.f32.mrf.mxu0
        %v1569 = vadd.f32 %v1376, %v1568
        %v1570 = vpop.f32.mrf.mxu0
        %v1571 = vpop.f32.mrf.mxu0
        %v1572 = vadd.f32 %v1379, %v1571
        %v1573 = vpop.f32.mrf.mxu0
        %1574 = vmatprep.mubr.bf16.mxu0 0
        %1575 = vmatmul.mubr.bf16.gmra.mxu0 %v1471
        %v1576 = vpop.f32.mrf.mxu0
        %v1577 = vadd.f32 %v1384, %v1576
        %v1578 = vpop.f32.mrf.mxu0
        %v1579 = vpop.f32.mrf.mxu0
        %v1580 = vadd.f32 %v1387, %v1579
        %v1581 = vpop.f32.mrf.mxu0
        %1582 = vmatprep.mubr.bf16.mxu0 0
        %1583 = vmatmul.mubr.bf16.gmra.mxu0 %v1472
        %v1584 = vpop.f32.mrf.mxu0
        %v1585 = vadd.f32 %v1392, %v1584
        %v1586 = vpop.f32.mrf.mxu0
        %v1587 = vpop.f32.mrf.mxu0
        %v1588 = vadd.f32 %v1395, %v1587
        %v1589 = vpop.f32.mrf.mxu0
        %1590 = vmatprep.mubr.bf16.mxu0 0
        %1591 = vmatmul.mubr.bf16.gmra.mxu0 %v1473
        %v1592 = vpop.f32.mrf.mxu0
        %v1593 = vadd.f32 %v1400, %v1592
        %v1594 = vpop.f32.mrf.mxu0
        %v1595 = vpop.f32.mrf.mxu0
        %v1596 = vadd.f32 %v1403, %v1595
        %v1597 = vpop.f32.mrf.mxu0
        %1598 = vmatprep.mubr.bf16.mxu0 0
        %1599 = vmatmul.mubr.bf16.gmra.mxu0 %v1474
        %v1600 = vpop.f32.mrf.mxu0
        %v1601 = vadd.f32 %v1408, %v1600
        %v1602 = vpop.f32.mrf.mxu0
        %v1603 = vpop.f32.mrf.mxu0
        %v1604 = vadd.f32 %v1411, %v1603
        %v1605 = vpop.f32.mrf.mxu0
        %1606 = vmatprep.mubr.bf16.mxu0 0
        %1607 = vmatmul.mubr.bf16.gmra.mxu0 %v1475
        %v1608 = vpop.f32.mrf.mxu0
        %v1609 = vadd.f32 %v1416, %v1608
        %v1610 = vpop.f32.mrf.mxu0
        %v1611 = vpop.f32.mrf.mxu0
        %v1612 = vadd.f32 %v1419, %v1611
        %v1613 = vpop.f32.mrf.mxu0
        %1614 = vmatprep.mubr.bf16.mxu0 0
        %1615 = vmatmul.mubr.bf16.gmra.mxu0 %v1476
        %v1616 = vpop.f32.mrf.mxu0
        %v1617 = vadd.f32 %v1424, %v1616
        %v1618 = vpop.f32.mrf.mxu0
        %v1619 = vpop.f32.mrf.mxu0
        %v1620 = vadd.f32 %v1427, %v1619
        %v1621 = vpop.f32.mrf.mxu0
        %1622 = vmatprep.mubr.bf16.mxu0 0
        %1623 = vmatmul.mubr.bf16.gmra.mxu0 %v1477
        %v1624 = vpop.f32.mrf.mxu0
        %v1625 = vadd.f32 %v1432, %v1624
        %v1626 = vpop.f32.mrf.mxu0
        %v1627 = vpop.f32.mrf.mxu0
        %v1628 = vadd.f32 %v1435, %v1627
        %v1629 = vpop.f32.mrf.mxu0
        %1630 = vdwg.mxu0
        %v1631 = vld [vmem:[#allocation2] sm:$0xe]
        %v1641 = vunpack.c.l.s4 839922192
        %v1642 = vunpack.c.0.s8 %v1641
        %v1643 = vlaneseq
        %v1644 = vshrl.u32 %v1643, 7
        %v1645 = vsub.s32 %v1642, %v1644
        %v1646 = vrot.slane %v962, %v1645
        %v1648 = vunpack.c.l.s4 1985246804
        %v1649 = vunpack.c.0.s8 %v1648
        %v1650 = vlaneseq
        %v1651 = vshrl.u32 %v1650, 7
        %v1652 = vsub.s32 %v1649, %v1651
        %v1653 = vrot.slane %v962, %v1652
        %v1655 = vunpack.c.l.s4 839922192
        %v1656 = vunpack.c.0.s8 %v1655
        %v1657 = vlaneseq
        %v1658 = vshrl.u32 %v1657, 7
        %v1659 = vsub.s32 %v1656, %v1658
        %v1660 = vrot.slane %v963, %v1659
        %v1662 = vunpack.c.l.s4 1985246804
        %v1663 = vunpack.c.0.s8 %v1662
        %v1664 = vlaneseq
        %v1665 = vshrl.u32 %v1664, 7
        %v1666 = vsub.s32 %v1663, %v1665
        %v1667 = vrot.slane %v963, %v1666
        %v1669 = vunpack.c.l.s4 839922192
        %v1670 = vunpack.c.0.s8 %v1669
        %v1671 = vlaneseq
        %v1672 = vshrl.u32 %v1671, 7
        %v1673 = vsub.s32 %v1670, %v1672
        %v1674 = vrot.slane %v964, %v1673
        %v1676 = vunpack.c.l.s4 1985246804
        %v1677 = vunpack.c.0.s8 %v1676
        %v1678 = vlaneseq
        %v1679 = vshrl.u32 %v1678, 7
        %v1680 = vsub.s32 %v1677, %v1679
        %v1681 = vrot.slane %v964, %v1680
        %v1683 = vunpack.c.l.s4 839922192
        %v1684 = vunpack.c.0.s8 %v1683
        %v1685 = vlaneseq
        %v1686 = vshrl.u32 %v1685, 7
        %v1687 = vsub.s32 %v1684, %v1686
        %v1688 = vrot.slane %v965, %v1687
        %v1690 = vunpack.c.l.s4 1985246804
        %v1691 = vunpack.c.0.s8 %v1690
        %v1692 = vlaneseq
        %v1693 = vshrl.u32 %v1692, 7
        %v1694 = vsub.s32 %v1691, %v1693
        %v1695 = vrot.slane %v965, %v1694
        %v1697 = vunpack.c.l.s4 839922192
        %v1698 = vunpack.c.0.s8 %v1697
        %v1699 = vlaneseq
        %v1700 = vshrl.u32 %v1699, 7
        %v1701 = vsub.s32 %v1698, %v1700
        %v1702 = vrot.slane %v966, %v1701
        %v1704 = vunpack.c.l.s4 1985246804
        %v1705 = vunpack.c.0.s8 %v1704
        %v1706 = vlaneseq
        %v1707 = vshrl.u32 %v1706, 7
        %v1708 = vsub.s32 %v1705, %v1707
        %v1709 = vrot.slane %v966, %v1708
        %v1711 = vunpack.c.l.s4 839922192
        %v1712 = vunpack.c.0.s8 %v1711
        %v1713 = vlaneseq
        %v1714 = vshrl.u32 %v1713, 7
        %v1715 = vsub.s32 %v1712, %v1714
        %v1716 = vrot.slane %v967, %v1715
        %v1718 = vunpack.c.l.s4 1985246804
        %v1719 = vunpack.c.0.s8 %v1718
        %v1720 = vlaneseq
        %v1721 = vshrl.u32 %v1720, 7
        %v1722 = vsub.s32 %v1719, %v1721
        %v1723 = vrot.slane %v967, %v1722
        %v1725 = vunpack.c.l.s4 839922192
        %v1726 = vunpack.c.0.s8 %v1725
        %v1727 = vlaneseq
        %v1728 = vshrl.u32 %v1727, 7
        %v1729 = vsub.s32 %v1726, %v1728
        %v1730 = vrot.slane %v968, %v1729
        %v1732 = vunpack.c.l.s4 1985246804
        %v1733 = vunpack.c.0.s8 %v1732
        %v1734 = vlaneseq
        %v1735 = vshrl.u32 %v1734, 7
        %v1736 = vsub.s32 %v1733, %v1735
        %v1737 = vrot.slane %v968, %v1736
        %v1739 = vunpack.c.l.s4 839922192
        %v1740 = vunpack.c.0.s8 %v1739
        %v1741 = vlaneseq
        %v1742 = vshrl.u32 %v1741, 7
        %v1743 = vsub.s32 %v1740, %v1742
        %v1744 = vrot.slane %v969, %v1743
        %v1746 = vunpack.c.l.s4 1985246804
        %v1747 = vunpack.c.0.s8 %v1746
        %v1748 = vlaneseq
        %v1749 = vshrl.u32 %v1748, 7
        %v1750 = vsub.s32 %v1747, %v1749
        %v1751 = vrot.slane %v969, %v1750
        %vm1752 = vcmask 1044484
        %vm1753 = vmor %vm287, %vm1752
        %v1754 = vrot.slane %v1646, 7
        %v1755 = vrot.slane %v1754, 4
        %v1756 = vrot.slane %v1653, 7
        %v1757 = vsel %vm1753, %v1755, %v1756
        %v1758 = vrot.slane %v1756, 4
        %v1759 = vrot.slane %v1660, 7
        %v1760 = vsel %vm1753, %v1758, %v1759
        %v1761 = vrot.slane %v1759, 4
        %v1762 = vrot.slane %v1667, 7
        %v1763 = vsel %vm1753, %v1761, %v1762
        %v1764 = vrot.slane %v1762, 4
        %v1765 = vrot.slane %v1674, 7
        %v1766 = vsel %vm1753, %v1764, %v1765
        %v1767 = vrot.slane %v1765, 4
        %v1768 = vrot.slane %v1681, 7
        %v1769 = vsel %vm1753, %v1767, %v1768
        %v1770 = vrot.slane %v1768, 4
        %v1771 = vrot.slane %v1688, 7
        %v1772 = vsel %vm1753, %v1770, %v1771
        %v1773 = vrot.slane %v1771, 4
        %v1774 = vrot.slane %v1695, 7
        %v1775 = vsel %vm1753, %v1773, %v1774
        %v1776 = vrot.slane %v1774, 4
        %v1777 = vrot.slane %v1702, 7
        %v1778 = vsel %vm1753, %v1776, %v1777
        %v1779 = vrot.slane %v1777, 4
        %v1780 = vrot.slane %v1709, 7
        %v1781 = vsel %vm1753, %v1779, %v1780
        %v1782 = vrot.slane %v1780, 4
        %v1783 = vrot.slane %v1716, 7
        %v1784 = vsel %vm1753, %v1782, %v1783
        %v1785 = vrot.slane %v1783, 4
        %v1786 = vrot.slane %v1723, 7
        %v1787 = vsel %vm1753, %v1785, %v1786
        %v1788 = vrot.slane %v1786, 4
        %v1789 = vrot.slane %v1730, 7
        %v1790 = vsel %vm1753, %v1788, %v1789
        %v1791 = vrot.slane %v1789, 4
        %v1792 = vrot.slane %v1737, 7
        %v1793 = vsel %vm1753, %v1791, %v1792
        %v1794 = vrot.slane %v1792, 4
        %v1795 = vrot.slane %v1744, 7
        %v1796 = vsel %vm1753, %v1794, %v1795
        %v1797 = vrot.slane %v1795, 4
        %v1798 = vrot.slane %v1751, 7
        %v1799 = vsel %vm1753, %v1797, %v1798
        %v1800 = vrot.slane %v1798, 4
        %v1818 = vmul.bf16 %v1631, %v1754
        %v1819 = vmul.bf16 %v972, %v1757
        %v1820 = vmul.bf16 %v973, %v1760
        %v1821 = vmul.bf16 %v974, %v1763
        %v1822 = vmul.bf16 %v975, %v1766
        %v1823 = vmul.bf16 %v976, %v1769
        %v1824 = vmul.bf16 %v977, %v1772
        %v1825 = vmul.bf16 %v978, %v1775
        %v1826 = vmul.bf16 %v979, %v1778
        %v1827 = vmul.bf16 %v980, %v1781
        %v1828 = vmul.bf16 %v981, %v1784
        %v1829 = vmul.bf16 %v982, %v1787
        %v1830 = vmul.bf16 %v983, %v1790
        %v1831 = vmul.bf16 %v984, %v1793
        %v1832 = vmul.bf16 %v985, %v1796
        %v1833 = vmul.bf16 %v986, %v1799
        %v1834 = vmul.bf16 %v1155, %v1800
        %s1835 = scalar_lea.vmem [#allocation8], 128
        %v1836 = vld [vmem:[%s1835] sm:$0xf]
        %v1837 = vld [vmem:[%s1835 + $0x4] sm:$0xf]
        %v1838 = vld [vmem:[%s1835 + $0x8] sm:$0xf]
        %v1839 = vld [vmem:[%s1835 + $0xc] sm:$0xf]
        %v1840 = vld [vmem:[%s1835 + $0x10] sm:$0xf]
        %v1841 = vld [vmem:[%s1835 + $0x14] sm:$0xf]
        %v1842 = vld [vmem:[%s1835 + $0x18] sm:$0xf]
        %v1843 = vld [vmem:[%s1835 + $0x1c] sm:$0xf]
        %v1844 = vld [vmem:[%s1835 + $0x20] sm:$0xf]
        %v1845 = vld [vmem:[%s1835 + $0x24] sm:$0xf]
        %v1846 = vld [vmem:[%s1835 + $0x28] sm:$0xf]
        %v1847 = vld [vmem:[%s1835 + $0x2c] sm:$0xf]
        %v1848 = vld [vmem:[%s1835 + $0x30] sm:$0xf]
        %v1849 = vld [vmem:[%s1835 + $0x34] sm:$0xf]
        %v1850 = vld [vmem:[%s1835 + $0x38] sm:$0xf]
        %v1851 = vld [vmem:[%s1835 + $0x3c] sm:$0xf]
        %v1869 = vunpack.c.l.b16 %v1818
        %v1870 = vunpack.c.l.b16 %v1819
        %v1871 = vunpack.c.l.b16 %v1820
        %v1872 = vunpack.c.l.b16 %v1821
        %v1873 = vunpack.c.l.b16 %v1822
        %v1874 = vunpack.c.l.b16 %v1823
        %v1875 = vunpack.c.l.b16 %v1824
        %v1876 = vunpack.c.l.b16 %v1825
        %v1877 = vunpack.c.l.b16 %v1826
        %v1878 = vunpack.c.l.b16 %v1827
        %v1879 = vunpack.c.l.b16 %v1828
        %v1880 = vunpack.c.l.b16 %v1829
        %v1881 = vunpack.c.l.b16 %v1830
        %v1882 = vunpack.c.l.b16 %v1831
        %v1883 = vunpack.c.l.b16 %v1832
        %v1884 = vunpack.c.l.b16 %v1833
        %v1885 = vunpack.c.l.b16 %v1834
        %v1886 = vpack.c.b16 %v1870, %v1869
        %v1887 = vpack.c.b16 %v1872, %v1871
        %v1888 = vpack.c.b16 %v1874, %v1873
        %v1889 = vpack.c.b16 %v1876, %v1875
        %v1890 = vpack.c.b16 %v1878, %v1877
        %v1891 = vpack.c.b16 %v1880, %v1879
        %v1892 = vpack.c.b16 %v1882, %v1881
        %v1893 = vpack.c.b16 %v1884, %v1883
        %v1894 = vpack.c.b16 %v1885, %v1885
        %vm1895 = vcmask 1046528
        %v1896 = vrot.slane %v1886, 1
        %v1897 = vrot.slane %v1887, 1
        %v1898 = vsel %vm1895, %v1896, %v1897
        %v1899 = vrot.slane %v1888, 1
        %v1900 = vsel %vm1895, %v1897, %v1899
        %v1901 = vrot.slane %v1889, 1
        %v1902 = vsel %vm1895, %v1899, %v1901
        %v1903 = vrot.slane %v1890, 1
        %v1904 = vsel %vm1895, %v1901, %v1903
        %v1905 = vrot.slane %v1891, 1
        %v1906 = vsel %vm1895, %v1903, %v1905
        %v1907 = vrot.slane %v1892, 1
        %v1908 = vsel %vm1895, %v1905, %v1907
        %v1909 = vrot.slane %v1893, 1
        %v1910 = vsel %vm1895, %v1907, %v1909
        %v1911 = vrot.slane %v1894, 1
        %v1912 = vsel %vm1895, %v1909, %v1911
        %v1937 = vunpack.c.l.b16 %v1836
        %v1938 = vunpack.c.l.b16 %v1837
        %v1939 = vunpack.c.l.b16 %v1838
        %v1940 = vunpack.c.l.b16 %v1839
        %v1941 = vunpack.c.l.b16 %v1840
        %v1942 = vunpack.c.l.b16 %v1841
        %v1943 = vunpack.c.l.b16 %v1842
        %v1944 = vunpack.c.l.b16 %v1843
        %v1945 = vunpack.c.l.b16 %v1844
        %v1946 = vunpack.c.l.b16 %v1845
        %v1947 = vunpack.c.l.b16 %v1846
        %v1948 = vunpack.c.l.b16 %v1847
        %v1949 = vunpack.c.l.b16 %v1848
        %v1950 = vunpack.c.l.b16 %v1849
        %v1951 = vunpack.c.l.b16 %v1850
        %v1952 = vunpack.c.l.b16 %v1851
        %v1953 = vpack.c.b16 %v1938, %v1937
        %v1954 = vpack.c.b16 %v1940, %v1939
        %v1955 = vpack.c.b16 %v1942, %v1941
        %v1956 = vpack.c.b16 %v1944, %v1943
        %v1957 = vpack.c.b16 %v1946, %v1945
        %v1958 = vpack.c.b16 %v1948, %v1947
        %v1959 = vpack.c.b16 %v1950, %v1949
        %v1960 = vpack.c.b16 %v1952, %v1951
        %1969 = vmatprep.subr.bf16.mxu0 0
        %1970 = vmatpush1.bf16.msra.mxu0 %v1960
        %1971 = vmatprep.subr.bf16.mxu0 0
        %1972 = vmatpush1.bf16.msra.mxu0 %v1959
        %1973 = vmatprep.subr.bf16.mxu0 0
        %1974 = vmatpush1.bf16.msra.mxu0 %v1958
        %1975 = vmatprep.subr.bf16.mxu0 0
        %1976 = vmatpush1.bf16.msra.mxu0 %v1957
        %1977 = vmatprep.subr.bf16.mxu0 0
        %1978 = vmatpush1.bf16.msra.mxu0 %v1956
        %1979 = vmatprep.subr.bf16.mxu0 0
        %1980 = vmatpush1.bf16.msra.mxu0 %v1955
        %1981 = vmatprep.subr.bf16.mxu0 0
        %1982 = vmatpush1.bf16.msra.mxu0 %v1954
        %1983 = vmatprep.subr.bf16.mxu0 0
        %1984 = vmatpush1.bf16.msra.mxu0 %v1953
        %1985 = vmatprep.subr.bf16.mxu0 0
        %1986 = vmatpush2.bf16.msra.mxu0 0
        %1987 = vmatprep.subr.bf16.mxu0 0
        %1988 = vmatpush2.bf16.msra.mxu0 0
        %1989 = vmatprep.subr.bf16.mxu0 0
        %1990 = vmatpush2.bf16.msra.mxu0 0
        %1991 = vmatprep.subr.bf16.mxu0 0
        %1992 = vmatpush2.bf16.msra.mxu0 0
        %1993 = vmatprep.subr.bf16.mxu0 0
        %1994 = vmatpush2.bf16.msra.mxu0 0
        %1995 = vmatprep.subr.bf16.mxu0 0
        %1996 = vmatpush2.bf16.msra.mxu0 0
        %1997 = vmatprep.subr.bf16.mxu0 0
        %1998 = vmatpush2.bf16.msra.mxu0 0
        %1999 = vmatprep.subr.bf16.mxu0 0
        %2000 = vmatpush2.bf16.msra.mxu0 0
        %2001 = vmatprep.mubr.bf16.mxu0 0
        %2002 = vmatmul.mubr.bf16.gmra.mxu0 %v1898
        %v2003 = vpop.f32.mrf.mxu0
        %v2004 = vadd.f32 0.0, %v2003
        %v2005 = vpop.f32.mrf.mxu0
        %v2006 = vpop.f32.mrf.mxu0
        %v2007 = vadd.f32 0.0, %v2006
        %v2008 = vpop.f32.mrf.mxu0
        %2009 = vmatprep.mubr.bf16.mxu0 0
        %2010 = vmatmul.mubr.bf16.gmra.mxu0 %v1900
        %v2011 = vpop.f32.mrf.mxu0
        %v2012 = vadd.f32 0.0, %v2011
        %v2013 = vpop.f32.mrf.mxu0
        %v2014 = vpop.f32.mrf.mxu0
        %v2015 = vadd.f32 0.0, %v2014
        %v2016 = vpop.f32.mrf.mxu0
        %2017 = vmatprep.mubr.bf16.mxu0 0
        %2018 = vmatmul.mubr.bf16.gmra.mxu0 %v1902
        %v2019 = vpop.f32.mrf.mxu0
        %v2020 = vadd.f32 0.0, %v2019
        %v2021 = vpop.f32.mrf.mxu0
        %v2022 = vpop.f32.mrf.mxu0
        %v2023 = vadd.f32 0.0, %v2022
        %v2024 = vpop.f32.mrf.mxu0
        %2025 = vmatprep.mubr.bf16.mxu0 0
        %2026 = vmatmul.mubr.bf16.gmra.mxu0 %v1904
        %v2027 = vpop.f32.mrf.mxu0
        %v2028 = vadd.f32 0.0, %v2027
        %v2029 = vpop.f32.mrf.mxu0
        %v2030 = vpop.f32.mrf.mxu0
        %v2031 = vadd.f32 0.0, %v2030
        %v2032 = vpop.f32.mrf.mxu0
        %2033 = vmatprep.mubr.bf16.mxu0 0
        %2034 = vmatmul.mubr.bf16.gmra.mxu0 %v1906
        %v2035 = vpop.f32.mrf.mxu0
        %v2036 = vadd.f32 0.0, %v2035
        %v2037 = vpop.f32.mrf.mxu0
        %v2038 = vpop.f32.mrf.mxu0
        %v2039 = vadd.f32 0.0, %v2038
        %v2040 = vpop.f32.mrf.mxu0
        %2041 = vmatprep.mubr.bf16.mxu0 0
        %2042 = vmatmul.mubr.bf16.gmra.mxu0 %v1908
        %v2043 = vpop.f32.mrf.mxu0
        %v2044 = vadd.f32 0.0, %v2043
        %v2045 = vpop.f32.mrf.mxu0
        %v2046 = vpop.f32.mrf.mxu0
        %v2047 = vadd.f32 0.0, %v2046
        %v2048 = vpop.f32.mrf.mxu0
        %2049 = vmatprep.mubr.bf16.mxu0 0
        %2050 = vmatmul.mubr.bf16.gmra.mxu0 %v1910
        %v2051 = vpop.f32.mrf.mxu0
        %v2052 = vadd.f32 0.0, %v2051
        %v2053 = vpop.f32.mrf.mxu0
        %v2054 = vpop.f32.mrf.mxu0
        %v2055 = vadd.f32 0.0, %v2054
        %v2056 = vpop.f32.mrf.mxu0
        %2057 = vmatprep.mubr.bf16.mxu0 0
        %2058 = vmatmul.mubr.bf16.gmra.mxu0 %v1912
        %v2059 = vpop.f32.mrf.mxu0
        %v2060 = vadd.f32 0.0, %v2059
        %v2061 = vpop.f32.mrf.mxu0
        %v2062 = vpop.f32.mrf.mxu0
        %v2063 = vadd.f32 0.0, %v2062
        %v2064 = vpop.f32.mrf.mxu0
        %2065 = vdwg.mxu0
        %v2066 = vadd.f32 %v1569, %v2004
        %v2067 = vadd.f32 %v1572, %v2007
        %v2068 = vadd.f32 %v1577, %v2012
        %v2069 = vadd.f32 %v1580, %v2015
        %v2070 = vadd.f32 %v1585, %v2020
        %v2071 = vadd.f32 %v1588, %v2023
        %v2072 = vadd.f32 %v1593, %v2028
        %v2073 = vadd.f32 %v1596, %v2031
        %v2074 = vadd.f32 %v1601, %v2036
        %v2075 = vadd.f32 %v1604, %v2039
        %v2076 = vadd.f32 %v1609, %v2044
        %v2077 = vadd.f32 %v1612, %v2047
        %v2078 = vadd.f32 %v1617, %v2052
        %v2079 = vadd.f32 %v1620, %v2055
        %v2080 = vadd.f32 %v1625, %v2060
        %v2081 = vadd.f32 %v1628, %v2063
        %v2082 = vld [vmem:[#allocation2 + $0x8] sm:$0xf]
        %v2083 = vld [vmem:[#allocation2 + $0xc] sm:$0xf]
        %v2084 = vld [vmem:[#allocation2 + $0x10] sm:$0xf]
        %v2085 = vld [vmem:[#allocation2 + $0x14] sm:$0xf]
        %v2086 = vld [vmem:[#allocation2 + $0x18] sm:$0xf]
        %v2087 = vld [vmem:[#allocation2 + $0x1c] sm:$0xf]
        %v2088 = vld [vmem:[#allocation2 + $0x20] sm:$0xf]
        %v2089 = vld [vmem:[#allocation2 + $0x24] sm:$0xf]
        %v2090 = vld [vmem:[#allocation2 + $0x28] sm:$0xf]
        %v2091 = vld [vmem:[#allocation2 + $0x2c] sm:$0xf]
        %v2092 = vld [vmem:[#allocation2 + $0x30] sm:$0xf]
        %v2093 = vld [vmem:[#allocation2 + $0x34] sm:$0xf]
        %v2094 = vld [vmem:[#allocation2 + $0x38] sm:$0xf]
        %v2095 = vld [vmem:[#allocation2 + $0x3c] sm:$0xf]
        %v2096 = vld [vmem:[#allocation2 + $0x40] sm:$0xf]
        %v2097 = vld [vmem:[#allocation2 + $0x44] sm:$0xf]
        %v2098 = vmul.bf16 %v2082, %v1001
        %v2099 = vmul.bf16 %v2083, %v1008
        %v2100 = vmul.bf16 %v2084, %v1015
        %v2101 = vmul.bf16 %v2085, %v1022
        %v2102 = vmul.bf16 %v2086, %v1029
        %v2103 = vmul.bf16 %v2087, %v1036
        %v2104 = vmul.bf16 %v2088, %v1043
        %v2105 = vmul.bf16 %v2089, %v1050
        %v2106 = vmul.bf16 %v2090, %v1057
        %v2107 = vmul.bf16 %v2091, %v1064
        %v2108 = vmul.bf16 %v2092, %v1071
        %v2109 = vmul.bf16 %v2093, %v1078
        %v2110 = vmul.bf16 %v2094, %v1085
        %v2111 = vmul.bf16 %v2095, %v1092
        %v2112 = vmul.bf16 %v2096, %v1099
        %v2113 = vmul.bf16 %v2097, %v1106
        %s2114 = scalar_lea.vmem [#allocation8], 192
        %v2115 = vld [vmem:[%s2114] sm:$0xf]
        %v2116 = vld [vmem:[%s2114 + $0x4] sm:$0xf]
        %v2117 = vld [vmem:[%s2114 + $0x8] sm:$0xf]
        %v2118 = vld [vmem:[%s2114 + $0xc] sm:$0xf]
        %v2119 = vld [vmem:[%s2114 + $0x10] sm:$0xf]
        %v2120 = vld [vmem:[%s2114 + $0x14] sm:$0xf]
        %v2121 = vld [vmem:[%s2114 + $0x18] sm:$0xf]
        %v2122 = vld [vmem:[%s2114 + $0x1c] sm:$0xf]
        %v2123 = vld [vmem:[%s2114 + $0x20] sm:$0xf]
        %v2124 = vld [vmem:[%s2114 + $0x24] sm:$0xf]
        %v2125 = vld [vmem:[%s2114 + $0x28] sm:$0xf]
        %v2126 = vld [vmem:[%s2114 + $0x2c] sm:$0xf]
        %v2127 = vld [vmem:[%s2114 + $0x30] sm:$0xf]
        %v2128 = vld [vmem:[%s2114 + $0x34] sm:$0xf]
        %v2129 = vld [vmem:[%s2114 + $0x38] sm:$0xf]
        %v2130 = vld [vmem:[%s2114 + $0x3c] sm:$0xf]
        %v2147 = vunpack.c.l.b16 %v2098
        %v2148 = vunpack.c.l.b16 %v2099
        %v2149 = vunpack.c.l.b16 %v2100
        %v2150 = vunpack.c.l.b16 %v2101
        %v2151 = vunpack.c.l.b16 %v2102
        %v2152 = vunpack.c.l.b16 %v2103
        %v2153 = vunpack.c.l.b16 %v2104
        %v2154 = vunpack.c.l.b16 %v2105
        %v2155 = vunpack.c.l.b16 %v2106
        %v2156 = vunpack.c.l.b16 %v2107
        %v2157 = vunpack.c.l.b16 %v2108
        %v2158 = vunpack.c.l.b16 %v2109
        %v2159 = vunpack.c.l.b16 %v2110
        %v2160 = vunpack.c.l.b16 %v2111
        %v2161 = vunpack.c.l.b16 %v2112
        %v2162 = vunpack.c.l.b16 %v2113
        %v2163 = vpack.c.b16 %v2148, %v2147
        %v2164 = vpack.c.b16 %v2150, %v2149
        %v2165 = vpack.c.b16 %v2152, %v2151
        %v2166 = vpack.c.b16 %v2154, %v2153
        %v2167 = vpack.c.b16 %v2156, %v2155
        %v2168 = vpack.c.b16 %v2158, %v2157
        %v2169 = vpack.c.b16 %v2160, %v2159
        %v2170 = vpack.c.b16 %v2162, %v2161
        %v2195 = vunpack.c.l.b16 %v2115
        %v2196 = vunpack.c.l.b16 %v2116
        %v2197 = vunpack.c.l.b16 %v2117
        %v2198 = vunpack.c.l.b16 %v2118
        %v2199 = vunpack.c.l.b16 %v2119
        %v2200 = vunpack.c.l.b16 %v2120
        %v2201 = vunpack.c.l.b16 %v2121
        %v2202 = vunpack.c.l.b16 %v2122
        %v2203 = vunpack.c.l.b16 %v2123
        %v2204 = vunpack.c.l.b16 %v2124
        %v2205 = vunpack.c.l.b16 %v2125
        %v2206 = vunpack.c.l.b16 %v2126
        %v2207 = vunpack.c.l.b16 %v2127
        %v2208 = vunpack.c.l.b16 %v2128
        %v2209 = vunpack.c.l.b16 %v2129
        %v2210 = vunpack.c.l.b16 %v2130
        %v2211 = vpack.c.b16 %v2196, %v2195
        %v2212 = vpack.c.b16 %v2198, %v2197
        %v2213 = vpack.c.b16 %v2200, %v2199
        %v2214 = vpack.c.b16 %v2202, %v2201
        %v2215 = vpack.c.b16 %v2204, %v2203
        %v2216 = vpack.c.b16 %v2206, %v2205
        %v2217 = vpack.c.b16 %v2208, %v2207
        %v2218 = vpack.c.b16 %v2210, %v2209
        %2227 = vmatprep.subr.bf16.mxu0 0
        %2228 = vmatpush1.bf16.msra.mxu0 %v2218
        %2229 = vmatprep.subr.bf16.mxu0 0
        %2230 = vmatpush1.bf16.msra.mxu0 %v2217
        %2231 = vmatprep.subr.bf16.mxu0 0
        %2232 = vmatpush1.bf16.msra.mxu0 %v2216
        %2233 = vmatprep.subr.bf16.mxu0 0
        %2234 = vmatpush1.bf16.msra.mxu0 %v2215
        %2235 = vmatprep.subr.bf16.mxu0 0
        %2236 = vmatpush1.bf16.msra.mxu0 %v2214
        %2237 = vmatprep.subr.bf16.mxu0 0
        %2238 = vmatpush1.bf16.msra.mxu0 %v2213
        %2239 = vmatprep.subr.bf16.mxu0 0
        %2240 = vmatpush1.bf16.msra.mxu0 %v2212
        %2241 = vmatprep.subr.bf16.mxu0 0
        %2242 = vmatpush1.bf16.msra.mxu0 %v2211
        %2243 = vmatprep.subr.bf16.mxu0 0
        %2244 = vmatpush2.bf16.msra.mxu0 0
        %2245 = vmatprep.subr.bf16.mxu0 0
        %2246 = vmatpush2.bf16.msra.mxu0 0
        %2247 = vmatprep.subr.bf16.mxu0 0
        %2248 = vmatpush2.bf16.msra.mxu0 0
        %2249 = vmatprep.subr.bf16.mxu0 0
        %2250 = vmatpush2.bf16.msra.mxu0 0
        %2251 = vmatprep.subr.bf16.mxu0 0
        %2252 = vmatpush2.bf16.msra.mxu0 0
        %2253 = vmatprep.subr.bf16.mxu0 0
        %2254 = vmatpush2.bf16.msra.mxu0 0
        %2255 = vmatprep.subr.bf16.mxu0 0
        %2256 = vmatpush2.bf16.msra.mxu0 0
        %2257 = vmatprep.subr.bf16.mxu0 0
        %2258 = vmatpush2.bf16.msra.mxu0 0
        %2259 = vmatprep.mubr.bf16.mxu0 0
        %2260 = vmatmul.mubr.bf16.gmra.mxu0 %v2163
        %v2261 = vpop.f32.mrf.mxu0
        %v2262 = vadd.f32 0.0, %v2261
        %v2263 = vpop.f32.mrf.mxu0
        %v2264 = vpop.f32.mrf.mxu0
        %v2265 = vadd.f32 0.0, %v2264
        %v2266 = vpop.f32.mrf.mxu0
        %2267 = vmatprep.mubr.bf16.mxu0 0
        %2268 = vmatmul.mubr.bf16.gmra.mxu0 %v2164
        %v2269 = vpop.f32.mrf.mxu0
        %v2270 = vadd.f32 0.0, %v2269
        %v2271 = vpop.f32.mrf.mxu0
        %v2272 = vpop.f32.mrf.mxu0
        %v2273 = vadd.f32 0.0, %v2272
        %v2274 = vpop.f32.mrf.mxu0
        %2275 = vmatprep.mubr.bf16.mxu0 0
        %2276 = vmatmul.mubr.bf16.gmra.mxu0 %v2165
        %v2277 = vpop.f32.mrf.mxu0
        %v2278 = vadd.f32 0.0, %v2277
        %v2279 = vpop.f32.mrf.mxu0
        %v2280 = vpop.f32.mrf.mxu0
        %v2281 = vadd.f32 0.0, %v2280
        %v2282 = vpop.f32.mrf.mxu0
        %2283 = vmatprep.mubr.bf16.mxu0 0
        %2284 = vmatmul.mubr.bf16.gmra.mxu0 %v2166
        %v2285 = vpop.f32.mrf.mxu0
        %v2286 = vadd.f32 0.0, %v2285
        %v2287 = vpop.f32.mrf.mxu0
        %v2288 = vpop.f32.mrf.mxu0
        %v2289 = vadd.f32 0.0, %v2288
        %v2290 = vpop.f32.mrf.mxu0
        %2291 = vmatprep.mubr.bf16.mxu0 0
        %2292 = vmatmul.mubr.bf16.gmra.mxu0 %v2167
        %v2293 = vpop.f32.mrf.mxu0
        %v2294 = vadd.f32 0.0, %v2293
        %v2295 = vpop.f32.mrf.mxu0
        %v2296 = vpop.f32.mrf.mxu0
        %v2297 = vadd.f32 0.0, %v2296
        %v2298 = vpop.f32.mrf.mxu0
        %2299 = vmatprep.mubr.bf16.mxu0 0
        %2300 = vmatmul.mubr.bf16.gmra.mxu0 %v2168
        %v2301 = vpop.f32.mrf.mxu0
        %v2302 = vadd.f32 0.0, %v2301
        %v2303 = vpop.f32.mrf.mxu0
        %v2304 = vpop.f32.mrf.mxu0
        %v2305 = vadd.f32 0.0, %v2304
        %v2306 = vpop.f32.mrf.mxu0
        %2307 = vmatprep.mubr.bf16.mxu0 0
        %2308 = vmatmul.mubr.bf16.gmra.mxu0 %v2169
        %v2309 = vpop.f32.mrf.mxu0
        %v2310 = vadd.f32 0.0, %v2309
        %v2311 = vpop.f32.mrf.mxu0
        %v2312 = vpop.f32.mrf.mxu0
        %v2313 = vadd.f32 0.0, %v2312
        %v2314 = vpop.f32.mrf.mxu0
        %2315 = vmatprep.mubr.bf16.mxu0 0
        %2316 = vmatmul.mubr.bf16.gmra.mxu0 %v2170
        %v2317 = vpop.f32.mrf.mxu0
        %v2318 = vadd.f32 0.0, %v2317
        %v2319 = vpop.f32.mrf.mxu0
        %v2320 = vpop.f32.mrf.mxu0
        %v2321 = vadd.f32 0.0, %v2320
        %v2322 = vpop.f32.mrf.mxu0
        %2323 = vdwg.mxu0
        %v2324 = vadd.f32 %v2066, %v2262
        %v2325 = vadd.f32 %v2067, %v2265
        %v2326 = vadd.f32 %v2068, %v2270
        %v2327 = vadd.f32 %v2069, %v2273
        %v2328 = vadd.f32 %v2070, %v2278
        %v2329 = vadd.f32 %v2071, %v2281
        %v2330 = vadd.f32 %v2072, %v2286
        %v2331 = vadd.f32 %v2073, %v2289
        %v2332 = vadd.f32 %v2074, %v2294
        %v2333 = vadd.f32 %v2075, %v2297
        %v2334 = vadd.f32 %v2076, %v2302
        %v2335 = vadd.f32 %v2077, %v2305
        %v2336 = vadd.f32 %v2078, %v2310
        %v2337 = vadd.f32 %v2079, %v2313
        %v2338 = vadd.f32 %v2080, %v2318
        %v2339 = vadd.f32 %v2081, %v2321
        %v2340 = vld [vmem:[#allocation2 + $0x8] sm:$0xf]
        %v2341 = vld [vmem:[#allocation2 + $0xc] sm:$0xf]
        %v2342 = vld [vmem:[#allocation2 + $0x10] sm:$0xf]
        %v2343 = vld [vmem:[#allocation2 + $0x14] sm:$0xf]
        %v2344 = vld [vmem:[#allocation2 + $0x18] sm:$0xf]
        %v2345 = vld [vmem:[#allocation2 + $0x1c] sm:$0xf]
        %v2346 = vld [vmem:[#allocation2 + $0x20] sm:$0xf]
        %v2347 = vld [vmem:[#allocation2 + $0x24] sm:$0xf]
        %v2348 = vld [vmem:[#allocation2 + $0x28] sm:$0xf]
        %v2349 = vld [vmem:[#allocation2 + $0x2c] sm:$0xf]
        %v2350 = vld [vmem:[#allocation2 + $0x30] sm:$0xf]
        %v2351 = vld [vmem:[#allocation2 + $0x34] sm:$0xf]
        %v2352 = vld [vmem:[#allocation2 + $0x38] sm:$0xf]
        %v2353 = vld [vmem:[#allocation2 + $0x3c] sm:$0xf]
        %v2354 = vld [vmem:[#allocation2 + $0x40] sm:$0xf]
        %v2355 = vld [vmem:[#allocation2 + $0x44] sm:$0xf]
        %v2356 = vld [vmem:[#allocation2 + $0x48] sm:$0x1]
        %s2357 = scalar_lea.vmem [#allocation8], 256
        %v2358 = vld [vmem:[%s2357] sm:$0xf]
        %v2359 = vld [vmem:[%s2357 + $0x4] sm:$0xf]
        %v2360 = vld [vmem:[%s2357 + $0x8] sm:$0xf]
        %v2361 = vld [vmem:[%s2357 + $0xc] sm:$0xf]
        %v2362 = vld [vmem:[%s2357 + $0x10] sm:$0xf]
        %v2363 = vld [vmem:[%s2357 + $0x14] sm:$0xf]
        %v2364 = vld [vmem:[%s2357 + $0x18] sm:$0xf]
        %v2365 = vld [vmem:[%s2357 + $0x1c] sm:$0xf]
        %v2366 = vld [vmem:[%s2357 + $0x20] sm:$0xf]
        %v2367 = vld [vmem:[%s2357 + $0x24] sm:$0xf]
        %v2368 = vld [vmem:[%s2357 + $0x28] sm:$0xf]
        %v2369 = vld [vmem:[%s2357 + $0x2c] sm:$0xf]
        %v2370 = vld [vmem:[%s2357 + $0x30] sm:$0xf]
        %v2371 = vld [vmem:[%s2357 + $0x34] sm:$0xf]
        %v2372 = vld [vmem:[%s2357 + $0x38] sm:$0xf]
        %v2373 = vld [vmem:[%s2357 + $0x3c] sm:$0xf]
        %v2391 = vunpack.c.l.b16 %v2340
        %v2392 = vunpack.c.l.b16 %v2341
        %v2393 = vunpack.c.l.b16 %v2342
        %v2394 = vunpack.c.l.b16 %v2343
        %v2395 = vunpack.c.l.b16 %v2344
        %v2396 = vunpack.c.l.b16 %v2345
        %v2397 = vunpack.c.l.b16 %v2346
        %v2398 = vunpack.c.l.b16 %v2347
        %v2399 = vunpack.c.l.b16 %v2348
        %v2400 = vunpack.c.l.b16 %v2349
        %v2401 = vunpack.c.l.b16 %v2350
        %v2402 = vunpack.c.l.b16 %v2351
        %v2403 = vunpack.c.l.b16 %v2352
        %v2404 = vunpack.c.l.b16 %v2353
        %v2405 = vunpack.c.l.b16 %v2354
        %v2406 = vunpack.c.l.b16 %v2355
        %v2407 = vunpack.c.l.b16 %v2356
        %v2408 = vpack.c.b16 %v2392, %v2391
        %v2409 = vpack.c.b16 %v2394, %v2393
        %v2410 = vpack.c.b16 %v2396, %v2395
        %v2411 = vpack.c.b16 %v2398, %v2397
        %v2412 = vpack.c.b16 %v2400, %v2399
        %v2413 = vpack.c.b16 %v2402, %v2401
        %v2414 = vpack.c.b16 %v2404, %v2403
        %v2415 = vpack.c.b16 %v2406, %v2405
        %v2416 = vpack.c.b16 %v2407, %v2407
        %v2418 = vshrl.u32 %v2408, 16
        %v2420 = vshll.u32 %v2408, 16
        %v2422 = vrot.slane %v2420, 1
        %v2423 = vor.u32 %v2418, %v2422
        %v2425 = vshll.u32 %v2409, 16
        %v2427 = vrot.slane %v2425, 1
        %v2428 = vsel %vm1216, %v2423, %v2427
        %v2429 = vshrl.u32 %v2409, 16
        %v2431 = vor.u32 %v2429, %v2427
        %v2433 = vshll.u32 %v2410, 16
        %v2435 = vrot.slane %v2433, 1
        %v2436 = vsel %vm1216, %v2431, %v2435
        %v2437 = vshrl.u32 %v2410, 16
        %v2439 = vor.u32 %v2437, %v2435
        %v2441 = vshll.u32 %v2411, 16
        %v2443 = vrot.slane %v2441, 1
        %v2444 = vsel %vm1216, %v2439, %v2443
        %v2445 = vshrl.u32 %v2411, 16
        %v2447 = vor.u32 %v2445, %v2443
        %v2449 = vshll.u32 %v2412, 16
        %v2451 = vrot.slane %v2449, 1
        %v2452 = vsel %vm1216, %v2447, %v2451
        %v2453 = vshrl.u32 %v2412, 16
        %v2455 = vor.u32 %v2453, %v2451
        %v2457 = vshll.u32 %v2413, 16
        %v2459 = vrot.slane %v2457, 1
        %v2460 = vsel %vm1216, %v2455, %v2459
        %v2461 = vshrl.u32 %v2413, 16
        %v2463 = vor.u32 %v2461, %v2459
        %v2465 = vshll.u32 %v2414, 16
        %v2467 = vrot.slane %v2465, 1
        %v2468 = vsel %vm1216, %v2463, %v2467
        %v2469 = vshrl.u32 %v2414, 16
        %v2471 = vor.u32 %v2469, %v2467
        %v2473 = vshll.u32 %v2415, 16
        %v2475 = vrot.slane %v2473, 1
        %v2476 = vsel %vm1216, %v2471, %v2475
        %v2477 = vshrl.u32 %v2415, 16
        %v2479 = vor.u32 %v2477, %v2475
        %v2481 = vshll.u32 %v2416, 16
        %v2483 = vrot.slane %v2481, 1
        %v2484 = vsel %vm1216, %v2479, %v2483
        %v2509 = vunpack.c.l.b16 %v2358
        %v2510 = vunpack.c.l.b16 %v2359
        %v2511 = vunpack.c.l.b16 %v2360
        %v2512 = vunpack.c.l.b16 %v2361
        %v2513 = vunpack.c.l.b16 %v2362
        %v2514 = vunpack.c.l.b16 %v2363
        %v2515 = vunpack.c.l.b16 %v2364
        %v2516 = vunpack.c.l.b16 %v2365
        %v2517 = vunpack.c.l.b16 %v2366
        %v2518 = vunpack.c.l.b16 %v2367
        %v2519 = vunpack.c.l.b16 %v2368
        %v2520 = vunpack.c.l.b16 %v2369
        %v2521 = vunpack.c.l.b16 %v2370
        %v2522 = vunpack.c.l.b16 %v2371
        %v2523 = vunpack.c.l.b16 %v2372
        %v2524 = vunpack.c.l.b16 %v2373
        %v2525 = vpack.c.b16 %v2510, %v2509
        %v2526 = vpack.c.b16 %v2512, %v2511
        %v2527 = vpack.c.b16 %v2514, %v2513
        %v2528 = vpack.c.b16 %v2516, %v2515
        %v2529 = vpack.c.b16 %v2518, %v2517
        %v2530 = vpack.c.b16 %v2520, %v2519
        %v2531 = vpack.c.b16 %v2522, %v2521
        %v2532 = vpack.c.b16 %v2524, %v2523
        %2541 = vmatprep.subr.bf16.mxu0 0
        %2542 = vmatpush1.bf16.msra.mxu0 %v2532
        %2543 = vmatprep.subr.bf16.mxu0 0
        %2544 = vmatpush1.bf16.msra.mxu0 %v2531
        %2545 = vmatprep.subr.bf16.mxu0 0
        %2546 = vmatpush1.bf16.msra.mxu0 %v2530
        %2547 = vmatprep.subr.bf16.mxu0 0
        %2548 = vmatpush1.bf16.msra.mxu0 %v2529
        %2549 = vmatprep.subr.bf16.mxu0 0
        %2550 = vmatpush1.bf16.msra.mxu0 %v2528
        %2551 = vmatprep.subr.bf16.mxu0 0
        %2552 = vmatpush1.bf16.msra.mxu0 %v2527
        %2553 = vmatprep.subr.bf16.mxu0 0
        %2554 = vmatpush1.bf16.msra.mxu0 %v2526
        %2555 = vmatprep.subr.bf16.mxu0 0
        %2556 = vmatpush1.bf16.msra.mxu0 %v2525
        %2557 = vmatprep.subr.bf16.mxu0 0
        %2558 = vmatpush2.bf16.msra.mxu0 0
        %2559 = vmatprep.subr.bf16.mxu0 0
        %2560 = vmatpush2.bf16.msra.mxu0 0
        %2561 = vmatprep.subr.bf16.mxu0 0
        %2562 = vmatpush2.bf16.msra.mxu0 0
        %2563 = vmatprep.subr.bf16.mxu0 0
        %2564 = vmatpush2.bf16.msra.mxu0 0
        %2565 = vmatprep.subr.bf16.mxu0 0
        %2566 = vmatpush2.bf16.msra.mxu0 0
        %2567 = vmatprep.subr.bf16.mxu0 0
        %2568 = vmatpush2.bf16.msra.mxu0 0
        %2569 = vmatprep.subr.bf16.mxu0 0
        %2570 = vmatpush2.bf16.msra.mxu0 0
        %2571 = vmatprep.subr.bf16.mxu0 0
        %2572 = vmatpush2.bf16.msra.mxu0 0
        %2573 = vmatprep.mubr.bf16.mxu0 0
        %2574 = vmatmul.mubr.bf16.gmra.mxu0 %v2428
        %v2575 = vpop.f32.mrf.mxu0
        %v2576 = vadd.f32 0.0, %v2575
        %v2577 = vpop.f32.mrf.mxu0
        %v2578 = vpop.f32.mrf.mxu0
        %v2579 = vadd.f32 0.0, %v2578
        %v2580 = vpop.f32.mrf.mxu0
        %2581 = vmatprep.mubr.bf16.mxu0 0
        %2582 = vmatmul.mubr.bf16.gmra.mxu0 %v2436
        %v2583 = vpop.f32.mrf.mxu0
        %v2584 = vadd.f32 0.0, %v2583
        %v2585 = vpop.f32.mrf.mxu0
        %v2586 = vpop.f32.mrf.mxu0
        %v2587 = vadd.f32 0.0, %v2586
        %v2588 = vpop.f32.mrf.mxu0
        %2589 = vmatprep.mubr.bf16.mxu0 0
        %2590 = vmatmul.mubr.bf16.gmra.mxu0 %v2444
        %v2591 = vpop.f32.mrf.mxu0
        %v2592 = vadd.f32 0.0, %v2591
        %v2593 = vpop.f32.mrf.mxu0
        %v2594 = vpop.f32.mrf.mxu0
        %v2595 = vadd.f32 0.0, %v2594
        %v2596 = vpop.f32.mrf.mxu0
        %2597 = vmatprep.mubr.bf16.mxu0 0
        %2598 = vmatmul.mubr.bf16.gmra.mxu0 %v2452
        %v2599 = vpop.f32.mrf.mxu0
        %v2600 = vadd.f32 0.0, %v2599
        %v2601 = vpop.f32.mrf.mxu0
        %v2602 = vpop.f32.mrf.mxu0
        %v2603 = vadd.f32 0.0, %v2602
        %v2604 = vpop.f32.mrf.mxu0
        %2605 = vmatprep.mubr.bf16.mxu0 0
        %2606 = vmatmul.mubr.bf16.gmra.mxu0 %v2460
        %v2607 = vpop.f32.mrf.mxu0
        %v2608 = vadd.f32 0.0, %v2607
        %v2609 = vpop.f32.mrf.mxu0
        %v2610 = vpop.f32.mrf.mxu0
        %v2611 = vadd.f32 0.0, %v2610
        %v2612 = vpop.f32.mrf.mxu0
        %2613 = vmatprep.mubr.bf16.mxu0 0
        %2614 = vmatmul.mubr.bf16.gmra.mxu0 %v2468
        %v2615 = vpop.f32.mrf.mxu0
        %v2616 = vadd.f32 0.0, %v2615
        %v2617 = vpop.f32.mrf.mxu0
        %v2618 = vpop.f32.mrf.mxu0
        %v2619 = vadd.f32 0.0, %v2618
        %v2620 = vpop.f32.mrf.mxu0
        %2621 = vmatprep.mubr.bf16.mxu0 0
        %2622 = vmatmul.mubr.bf16.gmra.mxu0 %v2476
        %v2623 = vpop.f32.mrf.mxu0
        %v2624 = vadd.f32 0.0, %v2623
        %v2625 = vpop.f32.mrf.mxu0
        %v2626 = vpop.f32.mrf.mxu0
        %v2627 = vadd.f32 0.0, %v2626
        %v2628 = vpop.f32.mrf.mxu0
        %2629 = vmatprep.mubr.bf16.mxu0 0
        %2630 = vmatmul.mubr.bf16.gmra.mxu0 %v2484
        %v2631 = vpop.f32.mrf.mxu0
        %v2632 = vadd.f32 0.0, %v2631
        %v2633 = vpop.f32.mrf.mxu0
        %v2634 = vpop.f32.mrf.mxu0
        %v2635 = vadd.f32 0.0, %v2634
        %v2636 = vpop.f32.mrf.mxu0
        %2637 = vdwg.mxu0
        %v2638 = vadd.f32 %v2324, %v2576
        %v2639 = vadd.f32 %v2325, %v2579
        %v2640 = vadd.f32 %v2326, %v2584
        %v2641 = vadd.f32 %v2327, %v2587
        %v2642 = vadd.f32 %v2328, %v2592
        %v2643 = vadd.f32 %v2329, %v2595
        %v2644 = vadd.f32 %v2330, %v2600
        %v2645 = vadd.f32 %v2331, %v2603
        %v2646 = vadd.f32 %v2332, %v2608
        %v2647 = vadd.f32 %v2333, %v2611
        %v2648 = vadd.f32 %v2334, %v2616
        %v2649 = vadd.f32 %v2335, %v2619
        %v2650 = vadd.f32 %v2336, %v2624
        %v2651 = vadd.f32 %v2337, %v2627
        %v2652 = vadd.f32 %v2338, %v2632
        %v2653 = vadd.f32 %v2339, %v2635
        %v2654 = vld [vmem:[#allocation2 + $0x8] sm:$0xe]
        %v2655 = vmul.bf16 %v2654, %v1754
        %v2656 = vmul.bf16 %v2341, %v1757
        %v2657 = vmul.bf16 %v2342, %v1760
        %v2658 = vmul.bf16 %v2343, %v1763
        %v2659 = vmul.bf16 %v2344, %v1766
        %v2660 = vmul.bf16 %v2345, %v1769
        %v2661 = vmul.bf16 %v2346, %v1772
        %v2662 = vmul.bf16 %v2347, %v1775
        %v2663 = vmul.bf16 %v2348, %v1778
        %v2664 = vmul.bf16 %v2349, %v1781
        %v2665 = vmul.bf16 %v2350, %v1784
        %v2666 = vmul.bf16 %v2351, %v1787
        %v2667 = vmul.bf16 %v2352, %v1790
        %v2668 = vmul.bf16 %v2353, %v1793
        %v2669 = vmul.bf16 %v2354, %v1796
        %v2670 = vmul.bf16 %v2355, %v1799
        %v2671 = vmul.bf16 %v2356, %v1800
        %s2672 = scalar_lea.vmem [#allocation8], 320
        %v2673 = vld [vmem:[%s2672] sm:$0xf]
        %v2674 = vld [vmem:[%s2672 + $0x4] sm:$0xf]
        %v2675 = vld [vmem:[%s2672 + $0x8] sm:$0xf]
        %v2676 = vld [vmem:[%s2672 + $0xc] sm:$0xf]
        %v2677 = vld [vmem:[%s2672 + $0x10] sm:$0xf]
        %v2678 = vld [vmem:[%s2672 + $0x14] sm:$0xf]
        %v2679 = vld [vmem:[%s2672 + $0x18] sm:$0xf]
        %v2680 = vld [vmem:[%s2672 + $0x1c] sm:$0xf]
        %v2681 = vld [vmem:[%s2672 + $0x20] sm:$0xf]
        %v2682 = vld [vmem:[%s2672 + $0x24] sm:$0xf]
        %v2683 = vld [vmem:[%s2672 + $0x28] sm:$0xf]
        %v2684 = vld [vmem:[%s2672 + $0x2c] sm:$0xf]
        %v2685 = vld [vmem:[%s2672 + $0x30] sm:$0xf]
        %v2686 = vld [vmem:[%s2672 + $0x34] sm:$0xf]
        %v2687 = vld [vmem:[%s2672 + $0x38] sm:$0xf]
        %v2688 = vld [vmem:[%s2672 + $0x3c] sm:$0xf]
        %v2706 = vunpack.c.l.b16 %v2655
        %v2707 = vunpack.c.l.b16 %v2656
        %v2708 = vunpack.c.l.b16 %v2657
        %v2709 = vunpack.c.l.b16 %v2658
        %v2710 = vunpack.c.l.b16 %v2659
        %v2711 = vunpack.c.l.b16 %v2660
        %v2712 = vunpack.c.l.b16 %v2661
        %v2713 = vunpack.c.l.b16 %v2662
        %v2714 = vunpack.c.l.b16 %v2663
        %v2715 = vunpack.c.l.b16 %v2664
        %v2716 = vunpack.c.l.b16 %v2665
        %v2717 = vunpack.c.l.b16 %v2666
        %v2718 = vunpack.c.l.b16 %v2667
        %v2719 = vunpack.c.l.b16 %v2668
        %v2720 = vunpack.c.l.b16 %v2669
        %v2721 = vunpack.c.l.b16 %v2670
        %v2722 = vunpack.c.l.b16 %v2671
        %v2723 = vpack.c.b16 %v2707, %v2706
        %v2724 = vpack.c.b16 %v2709, %v2708
        %v2725 = vpack.c.b16 %v2711, %v2710
        %v2726 = vpack.c.b16 %v2713, %v2712
        %v2727 = vpack.c.b16 %v2715, %v2714
        %v2728 = vpack.c.b16 %v2717, %v2716
        %v2729 = vpack.c.b16 %v2719, %v2718
        %v2730 = vpack.c.b16 %v2721, %v2720
        %v2731 = vpack.c.b16 %v2722, %v2722
        %v2732 = vrot.slane %v2723, 1
        %v2733 = vrot.slane %v2724, 1
        %v2734 = vsel %vm1895, %v2732, %v2733
        %v2735 = vrot.slane %v2725, 1
        %v2736 = vsel %vm1895, %v2733, %v2735
        %v2737 = vrot.slane %v2726, 1
        %v2738 = vsel %vm1895, %v2735, %v2737
        %v2739 = vrot.slane %v2727, 1
        %v2740 = vsel %vm1895, %v2737, %v2739
        %v2741 = vrot.slane %v2728, 1
        %v2742 = vsel %vm1895, %v2739, %v2741
        %v2743 = vrot.slane %v2729, 1
        %v2744 = vsel %vm1895, %v2741, %v2743
        %v2745 = vrot.slane %v2730, 1
        %v2746 = vsel %vm1895, %v2743, %v2745
        %v2747 = vrot.slane %v2731, 1
        %v2748 = vsel %vm1895, %v2745, %v2747
        %v2773 = vunpack.c.l.b16 %v2673
        %v2774 = vunpack.c.l.b16 %v2674
        %v2775 = vunpack.c.l.b16 %v2675
        %v2776 = vunpack.c.l.b16 %v2676
        %v2777 = vunpack.c.l.b16 %v2677
        %v2778 = vunpack.c.l.b16 %v2678
        %v2779 = vunpack.c.l.b16 %v2679
        %v2780 = vunpack.c.l.b16 %v2680
        %v2781 = vunpack.c.l.b16 %v2681
        %v2782 = vunpack.c.l.b16 %v2682
        %v2783 = vunpack.c.l.b16 %v2683
        %v2784 = vunpack.c.l.b16 %v2684
        %v2785 = vunpack.c.l.b16 %v2685
        %v2786 = vunpack.c.l.b16 %v2686
        %v2787 = vunpack.c.l.b16 %v2687
        %v2788 = vunpack.c.l.b16 %v2688
        %v2789 = vpack.c.b16 %v2774, %v2773
        %v2790 = vpack.c.b16 %v2776, %v2775
        %v2791 = vpack.c.b16 %v2778, %v2777
        %v2792 = vpack.c.b16 %v2780, %v2779
        %v2793 = vpack.c.b16 %v2782, %v2781
        %v2794 = vpack.c.b16 %v2784, %v2783
        %v2795 = vpack.c.b16 %v2786, %v2785
        %v2796 = vpack.c.b16 %v2788, %v2787
        %2805 = vmatprep.subr.bf16.mxu0 0
        %2806 = vmatpush1.bf16.msra.mxu0 %v2796
        %2807 = vmatprep.subr.bf16.mxu0 0
        %2808 = vmatpush1.bf16.msra.mxu0 %v2795
        %2809 = vmatprep.subr.bf16.mxu0 0
        %2810 = vmatpush1.bf16.msra.mxu0 %v2794
        %2811 = vmatprep.subr.bf16.mxu0 0
        %2812 = vmatpush1.bf16.msra.mxu0 %v2793
        %2813 = vmatprep.subr.bf16.mxu0 0
        %2814 = vmatpush1.bf16.msra.mxu0 %v2792
        %2815 = vmatprep.subr.bf16.mxu0 0
        %2816 = vmatpush1.bf16.msra.mxu0 %v2791
        %2817 = vmatprep.subr.bf16.mxu0 0
        %2818 = vmatpush1.bf16.msra.mxu0 %v2790
        %2819 = vmatprep.subr.bf16.mxu0 0
        %2820 = vmatpush1.bf16.msra.mxu0 %v2789
        %2821 = vmatprep.subr.bf16.mxu0 0
        %2822 = vmatpush2.bf16.msra.mxu0 0
        %2823 = vmatprep.subr.bf16.mxu0 0
        %2824 = vmatpush2.bf16.msra.mxu0 0
        %2825 = vmatprep.subr.bf16.mxu0 0
        %2826 = vmatpush2.bf16.msra.mxu0 0
        %2827 = vmatprep.subr.bf16.mxu0 0
        %2828 = vmatpush2.bf16.msra.mxu0 0
        %2829 = vmatprep.subr.bf16.mxu0 0
        %2830 = vmatpush2.bf16.msra.mxu0 0
        %2831 = vmatprep.subr.bf16.mxu0 0
        %2832 = vmatpush2.bf16.msra.mxu0 0
        %2833 = vmatprep.subr.bf16.mxu0 0
        %2834 = vmatpush2.bf16.msra.mxu0 0
        %2835 = vmatprep.subr.bf16.mxu0 0
        %2836 = vmatpush2.bf16.msra.mxu0 0
        %2837 = vmatprep.mubr.bf16.mxu0 0
        %2838 = vmatmul.mubr.bf16.gmra.mxu0 %v2734
        %v2839 = vpop.f32.mrf.mxu0
        %v2840 = vadd.f32 0.0, %v2839
        %v2841 = vpop.f32.mrf.mxu0
        %v2842 = vpop.f32.mrf.mxu0
        %v2843 = vadd.f32 0.0, %v2842
        %v2844 = vpop.f32.mrf.mxu0
        %2845 = vmatprep.mubr.bf16.mxu0 0
        %2846 = vmatmul.mubr.bf16.gmra.mxu0 %v2736
        %v2847 = vpop.f32.mrf.mxu0
        %v2848 = vadd.f32 0.0, %v2847
        %v2849 = vpop.f32.mrf.mxu0
        %v2850 = vpop.f32.mrf.mxu0
        %v2851 = vadd.f32 0.0, %v2850
        %v2852 = vpop.f32.mrf.mxu0
        %2853 = vmatprep.mubr.bf16.mxu0 0
        %2854 = vmatmul.mubr.bf16.gmra.mxu0 %v2738
        %v2855 = vpop.f32.mrf.mxu0
        %v2856 = vadd.f32 0.0, %v2855
        %v2857 = vpop.f32.mrf.mxu0
        %v2858 = vpop.f32.mrf.mxu0
        %v2859 = vadd.f32 0.0, %v2858
        %v2860 = vpop.f32.mrf.mxu0
        %2861 = vmatprep.mubr.bf16.mxu0 0
        %2862 = vmatmul.mubr.bf16.gmra.mxu0 %v2740
        %v2863 = vpop.f32.mrf.mxu0
        %v2864 = vadd.f32 0.0, %v2863
        %v2865 = vpop.f32.mrf.mxu0
        %v2866 = vpop.f32.mrf.mxu0
        %v2867 = vadd.f32 0.0, %v2866
        %v2868 = vpop.f32.mrf.mxu0
        %2869 = vmatprep.mubr.bf16.mxu0 0
        %2870 = vmatmul.mubr.bf16.gmra.mxu0 %v2742
        %v2871 = vpop.f32.mrf.mxu0
        %v2872 = vadd.f32 0.0, %v2871
        %v2873 = vpop.f32.mrf.mxu0
        %v2874 = vpop.f32.mrf.mxu0
        %v2875 = vadd.f32 0.0, %v2874
        %v2876 = vpop.f32.mrf.mxu0
        %2877 = vmatprep.mubr.bf16.mxu0 0
        %2878 = vmatmul.mubr.bf16.gmra.mxu0 %v2744
        %v2879 = vpop.f32.mrf.mxu0
        %v2880 = vadd.f32 0.0, %v2879
        %v2881 = vpop.f32.mrf.mxu0
        %v2882 = vpop.f32.mrf.mxu0
        %v2883 = vadd.f32 0.0, %v2882
        %v2884 = vpop.f32.mrf.mxu0
        %2885 = vmatprep.mubr.bf16.mxu0 0
        %2886 = vmatmul.mubr.bf16.gmra.mxu0 %v2746
        %v2887 = vpop.f32.mrf.mxu0
        %v2888 = vadd.f32 0.0, %v2887
        %v2889 = vpop.f32.mrf.mxu0
        %v2890 = vpop.f32.mrf.mxu0
        %v2891 = vadd.f32 0.0, %v2890
        %v2892 = vpop.f32.mrf.mxu0
        %2893 = vmatprep.mubr.bf16.mxu0 0
        %2894 = vmatmul.mubr.bf16.gmra.mxu0 %v2748
        %v2895 = vpop.f32.mrf.mxu0
        %v2896 = vadd.f32 0.0, %v2895
        %v2897 = vpop.f32.mrf.mxu0
        %v2898 = vpop.f32.mrf.mxu0
        %v2899 = vadd.f32 0.0, %v2898
        %v2900 = vpop.f32.mrf.mxu0
        %2901 = vdwg.mxu0
        %v2902 = vadd.f32 %v2638, %v2840
        %v2903 = vadd.f32 %v2639, %v2843
        %v2904 = vadd.f32 %v2640, %v2848
        %v2905 = vadd.f32 %v2641, %v2851
        %v2906 = vadd.f32 %v2642, %v2856
        %v2907 = vadd.f32 %v2643, %v2859
        %v2908 = vadd.f32 %v2644, %v2864
        %v2909 = vadd.f32 %v2645, %v2867
        %v2910 = vadd.f32 %v2646, %v2872
        %v2911 = vadd.f32 %v2647, %v2875
        %v2912 = vadd.f32 %v2648, %v2880
        %v2913 = vadd.f32 %v2649, %v2883
        %v2914 = vadd.f32 %v2650, %v2888
        %v2915 = vadd.f32 %v2651, %v2891
        %v2916 = vadd.f32 %v2652, %v2896
        %v2917 = vadd.f32 %v2653, %v2899
        %v2918 = vld [vmem:[#allocation2 + $0x10] sm:$0xf]
        %v2919 = vld [vmem:[#allocation2 + $0x14] sm:$0xf]
        %v2920 = vld [vmem:[#allocation2 + $0x18] sm:$0xf]
        %v2921 = vld [vmem:[#allocation2 + $0x1c] sm:$0xf]
        %v2922 = vld [vmem:[#allocation2 + $0x20] sm:$0xf]
        %v2923 = vld [vmem:[#allocation2 + $0x24] sm:$0xf]
        %v2924 = vld [vmem:[#allocation2 + $0x28] sm:$0xf]
        %v2925 = vld [vmem:[#allocation2 + $0x2c] sm:$0xf]
        %v2926 = vld [vmem:[#allocation2 + $0x30] sm:$0xf]
        %v2927 = vld [vmem:[#allocation2 + $0x34] sm:$0xf]
        %v2928 = vld [vmem:[#allocation2 + $0x38] sm:$0xf]
        %v2929 = vld [vmem:[#allocation2 + $0x3c] sm:$0xf]
        %v2930 = vld [vmem:[#allocation2 + $0x40] sm:$0xf]
        %v2931 = vld [vmem:[#allocation2 + $0x44] sm:$0xf]
        %v2932 = vld [vmem:[#allocation2 + $0x48] sm:$0xf]
        %v2933 = vld [vmem:[#allocation2 + $0x4c] sm:$0xf]
        %v2934 = vmul.bf16 %v2918, %v1001
        %v2935 = vmul.bf16 %v2919, %v1008
        %v2936 = vmul.bf16 %v2920, %v1015
        %v2937 = vmul.bf16 %v2921, %v1022
        %v2938 = vmul.bf16 %v2922, %v1029
        %v2939 = vmul.bf16 %v2923, %v1036
        %v2940 = vmul.bf16 %v2924, %v1043
        %v2941 = vmul.bf16 %v2925, %v1050
        %v2942 = vmul.bf16 %v2926, %v1057
        %v2943 = vmul.bf16 %v2927, %v1064
        %v2944 = vmul.bf16 %v2928, %v1071
        %v2945 = vmul.bf16 %v2929, %v1078
        %v2946 = vmul.bf16 %v2930, %v1085
        %v2947 = vmul.bf16 %v2931, %v1092
        %v2948 = vmul.bf16 %v2932, %v1099
        %v2949 = vmul.bf16 %v2933, %v1106
        %s2950 = scalar_lea.vmem [#allocation8], 384
        %v2951 = vld [vmem:[%s2950] sm:$0xf]
        %v2952 = vld [vmem:[%s2950 + $0x4] sm:$0xf]
        %v2953 = vld [vmem:[%s2950 + $0x8] sm:$0xf]
        %v2954 = vld [vmem:[%s2950 + $0xc] sm:$0xf]
        %v2955 = vld [vmem:[%s2950 + $0x10] sm:$0xf]
        %v2956 = vld [vmem:[%s2950 + $0x14] sm:$0xf]
        %v2957 = vld [vmem:[%s2950 + $0x18] sm:$0xf]
        %v2958 = vld [vmem:[%s2950 + $0x1c] sm:$0xf]
        %v2959 = vld [vmem:[%s2950 + $0x20] sm:$0xf]
        %v2960 = vld [vmem:[%s2950 + $0x24] sm:$0xf]
        %v2961 = vld [vmem:[%s2950 + $0x28] sm:$0xf]
        %v2962 = vld [vmem:[%s2950 + $0x2c] sm:$0xf]
        %v2963 = vld [vmem:[%s2950 + $0x30] sm:$0xf]
        %v2964 = vld [vmem:[%s2950 + $0x34] sm:$0xf]
        %v2965 = vld [vmem:[%s2950 + $0x38] sm:$0xf]
        %v2966 = vld [vmem:[%s2950 + $0x3c] sm:$0xf]
        %v2983 = vunpack.c.l.b16 %v2934
        %v2984 = vunpack.c.l.b16 %v2935
        %v2985 = vunpack.c.l.b16 %v2936
        %v2986 = vunpack.c.l.b16 %v2937
        %v2987 = vunpack.c.l.b16 %v2938
        %v2988 = vunpack.c.l.b16 %v2939
        %v2989 = vunpack.c.l.b16 %v2940
        %v2990 = vunpack.c.l.b16 %v2941
        %v2991 = vunpack.c.l.b16 %v2942
        %v2992 = vunpack.c.l.b16 %v2943
        %v2993 = vunpack.c.l.b16 %v2944
        %v2994 = vunpack.c.l.b16 %v2945
        %v2995 = vunpack.c.l.b16 %v2946
        %v2996 = vunpack.c.l.b16 %v2947
        %v2997 = vunpack.c.l.b16 %v2948
        %v2998 = vunpack.c.l.b16 %v2949
        %v2999 = vpack.c.b16 %v2984, %v2983
        %v3000 = vpack.c.b16 %v2986, %v2985
        %v3001 = vpack.c.b16 %v2988, %v2987
        %v3002 = vpack.c.b16 %v2990, %v2989
        %v3003 = vpack.c.b16 %v2992, %v2991
        %v3004 = vpack.c.b16 %v2994, %v2993
        %v3005 = vpack.c.b16 %v2996, %v2995
        %v3006 = vpack.c.b16 %v2998, %v2997
        %v3031 = vunpack.c.l.b16 %v2951
        %v3032 = vunpack.c.l.b16 %v2952
        %v3033 = vunpack.c.l.b16 %v2953
        %v3034 = vunpack.c.l.b16 %v2954
        %v3035 = vunpack.c.l.b16 %v2955
        %v3036 = vunpack.c.l.b16 %v2956
        %v3037 = vunpack.c.l.b16 %v2957
        %v3038 = vunpack.c.l.b16 %v2958
        %v3039 = vunpack.c.l.b16 %v2959
        %v3040 = vunpack.c.l.b16 %v2960
        %v3041 = vunpack.c.l.b16 %v2961
        %v3042 = vunpack.c.l.b16 %v2962
        %v3043 = vunpack.c.l.b16 %v2963
        %v3044 = vunpack.c.l.b16 %v2964
        %v3045 = vunpack.c.l.b16 %v2965
        %v3046 = vunpack.c.l.b16 %v2966
        %v3047 = vpack.c.b16 %v3032, %v3031
        %v3048 = vpack.c.b16 %v3034, %v3033
        %v3049 = vpack.c.b16 %v3036, %v3035
        %v3050 = vpack.c.b16 %v3038, %v3037
        %v3051 = vpack.c.b16 %v3040, %v3039
        %v3052 = vpack.c.b16 %v3042, %v3041
        %v3053 = vpack.c.b16 %v3044, %v3043
        %v3054 = vpack.c.b16 %v3046, %v3045
        %3063 = vmatprep.subr.bf16.mxu0 0
        %3064 = vmatpush1.bf16.msra.mxu0 %v3054
        %3065 = vmatprep.subr.bf16.mxu0 0
        %3066 = vmatpush1.bf16.msra.mxu0 %v3053
        %3067 = vmatprep.subr.bf16.mxu0 0
        %3068 = vmatpush1.bf16.msra.mxu0 %v3052
        %3069 = vmatprep.subr.bf16.mxu0 0
        %3070 = vmatpush1.bf16.msra.mxu0 %v3051
        %3071 = vmatprep.subr.bf16.mxu0 0
        %3072 = vmatpush1.bf16.msra.mxu0 %v3050
        %3073 = vmatprep.subr.bf16.mxu0 0
        %3074 = vmatpush1.bf16.msra.mxu0 %v3049
        %3075 = vmatprep.subr.bf16.mxu0 0
        %3076 = vmatpush1.bf16.msra.mxu0 %v3048
        %3077 = vmatprep.subr.bf16.mxu0 0
        %3078 = vmatpush1.bf16.msra.mxu0 %v3047
        %3079 = vmatprep.subr.bf16.mxu0 0
        %3080 = vmatpush2.bf16.msra.mxu0 0
        %3081 = vmatprep.subr.bf16.mxu0 0
        %3082 = vmatpush2.bf16.msra.mxu0 0
        %3083 = vmatprep.subr.bf16.mxu0 0
        %3084 = vmatpush2.bf16.msra.mxu0 0
        %3085 = vmatprep.subr.bf16.mxu0 0
        %3086 = vmatpush2.bf16.msra.mxu0 0
        %3087 = vmatprep.subr.bf16.mxu0 0
        %3088 = vmatpush2.bf16.msra.mxu0 0
        %3089 = vmatprep.subr.bf16.mxu0 0
        %3090 = vmatpush2.bf16.msra.mxu0 0
        %3091 = vmatprep.subr.bf16.mxu0 0
        %3092 = vmatpush2.bf16.msra.mxu0 0
        %3093 = vmatprep.subr.bf16.mxu0 0
        %3094 = vmatpush2.bf16.msra.mxu0 0
        %3095 = vmatprep.mubr.bf16.mxu0 0
        %3096 = vmatmul.mubr.bf16.gmra.mxu0 %v2999
        %v3097 = vpop.f32.mrf.mxu0
        %v3098 = vadd.f32 0.0, %v3097
        %v3099 = vpop.f32.mrf.mxu0
        %v3100 = vpop.f32.mrf.mxu0
        %v3101 = vadd.f32 0.0, %v3100
        %v3102 = vpop.f32.mrf.mxu0
        %3103 = vmatprep.mubr.bf16.mxu0 0
        %3104 = vmatmul.mubr.bf16.gmra.mxu0 %v3000
        %v3105 = vpop.f32.mrf.mxu0
        %v3106 = vadd.f32 0.0, %v3105
        %v3107 = vpop.f32.mrf.mxu0
        %v3108 = vpop.f32.mrf.mxu0
        %v3109 = vadd.f32 0.0, %v3108
        %v3110 = vpop.f32.mrf.mxu0
        %3111 = vmatprep.mubr.bf16.mxu0 0
        %3112 = vmatmul.mubr.bf16.gmra.mxu0 %v3001
        %v3113 = vpop.f32.mrf.mxu0
        %v3114 = vadd.f32 0.0, %v3113
        %v3115 = vpop.f32.mrf.mxu0
        %v3116 = vpop.f32.mrf.mxu0
        %v3117 = vadd.f32 0.0, %v3116
        %v3118 = vpop.f32.mrf.mxu0
        %3119 = vmatprep.mubr.bf16.mxu0 0
        %3120 = vmatmul.mubr.bf16.gmra.mxu0 %v3002
        %v3121 = vpop.f32.mrf.mxu0
        %v3122 = vadd.f32 0.0, %v3121
        %v3123 = vpop.f32.mrf.mxu0
        %v3124 = vpop.f32.mrf.mxu0
        %v3125 = vadd.f32 0.0, %v3124
        %v3126 = vpop.f32.mrf.mxu0
        %3127 = vmatprep.mubr.bf16.mxu0 0
        %3128 = vmatmul.mubr.bf16.gmra.mxu0 %v3003
        %v3129 = vpop.f32.mrf.mxu0
        %v3130 = vadd.f32 0.0, %v3129
        %v3131 = vpop.f32.mrf.mxu0
        %v3132 = vpop.f32.mrf.mxu0
        %v3133 = vadd.f32 0.0, %v3132
        %v3134 = vpop.f32.mrf.mxu0
        %3135 = vmatprep.mubr.bf16.mxu0 0
        %3136 = vmatmul.mubr.bf16.gmra.mxu0 %v3004
        %v3137 = vpop.f32.mrf.mxu0
        %v3138 = vadd.f32 0.0, %v3137
        %v3139 = vpop.f32.mrf.mxu0
        %v3140 = vpop.f32.mrf.mxu0
        %v3141 = vadd.f32 0.0, %v3140
        %v3142 = vpop.f32.mrf.mxu0
        %3143 = vmatprep.mubr.bf16.mxu0 0
        %3144 = vmatmul.mubr.bf16.gmra.mxu0 %v3005
        %v3145 = vpop.f32.mrf.mxu0
        %v3146 = vadd.f32 0.0, %v3145
        %v3147 = vpop.f32.mrf.mxu0
        %v3148 = vpop.f32.mrf.mxu0
        %v3149 = vadd.f32 0.0, %v3148
        %v3150 = vpop.f32.mrf.mxu0
        %3151 = vmatprep.mubr.bf16.mxu0 0
        %3152 = vmatmul.mubr.bf16.gmra.mxu0 %v3006
        %v3153 = vpop.f32.mrf.mxu0
        %v3154 = vadd.f32 0.0, %v3153
        %v3155 = vpop.f32.mrf.mxu0
        %v3156 = vpop.f32.mrf.mxu0
        %v3157 = vadd.f32 0.0, %v3156
        %v3158 = vpop.f32.mrf.mxu0
        %3159 = vdwg.mxu0
        %v3160 = vadd.f32 %v2902, %v3098
        %v3161 = vadd.f32 %v2903, %v3101
        %v3162 = vadd.f32 %v2904, %v3106
        %v3163 = vadd.f32 %v2905, %v3109
        %v3164 = vadd.f32 %v2906, %v3114
        %v3165 = vadd.f32 %v2907, %v3117
        %v3166 = vadd.f32 %v2908, %v3122
        %v3167 = vadd.f32 %v2909, %v3125
        %v3168 = vadd.f32 %v2910, %v3130
        %v3169 = vadd.f32 %v2911, %v3133
        %v3170 = vadd.f32 %v2912, %v3138
        %v3171 = vadd.f32 %v2913, %v3141
        %v3172 = vadd.f32 %v2914, %v3146
        %v3173 = vadd.f32 %v2915, %v3149
        %v3174 = vadd.f32 %v2916, %v3154
        %v3175 = vadd.f32 %v2917, %v3157
        %v3176 = vld [vmem:[#allocation2 + $0x10] sm:$0xf]
        %v3177 = vld [vmem:[#allocation2 + $0x14] sm:$0xf]
        %v3178 = vld [vmem:[#allocation2 + $0x18] sm:$0xf]
        %v3179 = vld [vmem:[#allocation2 + $0x1c] sm:$0xf]
        %v3180 = vld [vmem:[#allocation2 + $0x20] sm:$0xf]
        %v3181 = vld [vmem:[#allocation2 + $0x24] sm:$0xf]
        %v3182 = vld [vmem:[#allocation2 + $0x28] sm:$0xf]
        %v3183 = vld [vmem:[#allocation2 + $0x2c] sm:$0xf]
        %v3184 = vld [vmem:[#allocation2 + $0x30] sm:$0xf]
        %v3185 = vld [vmem:[#allocation2 + $0x34] sm:$0xf]
        %v3186 = vld [vmem:[#allocation2 + $0x38] sm:$0xf]
        %v3187 = vld [vmem:[#allocation2 + $0x3c] sm:$0xf]
        %v3188 = vld [vmem:[#allocation2 + $0x40] sm:$0xf]
        %v3189 = vld [vmem:[#allocation2 + $0x44] sm:$0xf]
        %v3190 = vld [vmem:[#allocation2 + $0x48] sm:$0xf]
        %v3191 = vld [vmem:[#allocation2 + $0x4c] sm:$0xf]
        %v3192 = vld [vmem:[#allocation2 + $0x50] sm:$0x1]
        %s3193 = scalar_lea.vmem [#allocation8], 448
        %v3194 = vld [vmem:[%s3193] sm:$0xf]
        %v3195 = vld [vmem:[%s3193 + $0x4] sm:$0xf]
        %v3196 = vld [vmem:[%s3193 + $0x8] sm:$0xf]
        %v3197 = vld [vmem:[%s3193 + $0xc] sm:$0xf]
        %v3198 = vld [vmem:[%s3193 + $0x10] sm:$0xf]
        %v3199 = vld [vmem:[%s3193 + $0x14] sm:$0xf]
        %v3200 = vld [vmem:[%s3193 + $0x18] sm:$0xf]
        %v3201 = vld [vmem:[%s3193 + $0x1c] sm:$0xf]
        %v3202 = vld [vmem:[%s3193 + $0x20] sm:$0xf]
        %v3203 = vld [vmem:[%s3193 + $0x24] sm:$0xf]
        %v3204 = vld [vmem:[%s3193 + $0x28] sm:$0xf]
        %v3205 = vld [vmem:[%s3193 + $0x2c] sm:$0xf]
        %v3206 = vld [vmem:[%s3193 + $0x30] sm:$0xf]
        %v3207 = vld [vmem:[%s3193 + $0x34] sm:$0xf]
        %v3208 = vld [vmem:[%s3193 + $0x38] sm:$0xf]
        %v3209 = vld [vmem:[%s3193 + $0x3c] sm:$0xf]
        %v3227 = vunpack.c.l.b16 %v3176
        %v3228 = vunpack.c.l.b16 %v3177
        %v3229 = vunpack.c.l.b16 %v3178
        %v3230 = vunpack.c.l.b16 %v3179
        %v3231 = vunpack.c.l.b16 %v3180
        %v3232 = vunpack.c.l.b16 %v3181
        %v3233 = vunpack.c.l.b16 %v3182
        %v3234 = vunpack.c.l.b16 %v3183
        %v3235 = vunpack.c.l.b16 %v3184
        %v3236 = vunpack.c.l.b16 %v3185
        %v3237 = vunpack.c.l.b16 %v3186
        %v3238 = vunpack.c.l.b16 %v3187
        %v3239 = vunpack.c.l.b16 %v3188
        %v3240 = vunpack.c.l.b16 %v3189
        %v3241 = vunpack.c.l.b16 %v3190
        %v3242 = vunpack.c.l.b16 %v3191
        %v3243 = vunpack.c.l.b16 %v3192
        %v3244 = vpack.c.b16 %v3228, %v3227
        %v3245 = vpack.c.b16 %v3230, %v3229
        %v3246 = vpack.c.b16 %v3232, %v3231
        %v3247 = vpack.c.b16 %v3234, %v3233
        %v3248 = vpack.c.b16 %v3236, %v3235
        %v3249 = vpack.c.b16 %v3238, %v3237
        %v3250 = vpack.c.b16 %v3240, %v3239
        %v3251 = vpack.c.b16 %v3242, %v3241
        %v3252 = vpack.c.b16 %v3243, %v3243
        %v3254 = vshrl.u32 %v3244, 16
        %v3256 = vshll.u32 %v3244, 16
        %v3258 = vrot.slane %v3256, 1
        %v3259 = vor.u32 %v3254, %v3258
        %v3261 = vshll.u32 %v3245, 16
        %v3263 = vrot.slane %v3261, 1
        %v3264 = vsel %vm1216, %v3259, %v3263
        %v3265 = vshrl.u32 %v3245, 16
        %v3267 = vor.u32 %v3265, %v3263
        %v3269 = vshll.u32 %v3246, 16
        %v3271 = vrot.slane %v3269, 1
        %v3272 = vsel %vm1216, %v3267, %v3271
        %v3273 = vshrl.u32 %v3246, 16
        %v3275 = vor.u32 %v3273, %v3271
        %v3277 = vshll.u32 %v3247, 16
        %v3279 = vrot.slane %v3277, 1
        %v3280 = vsel %vm1216, %v3275, %v3279
        %v3281 = vshrl.u32 %v3247, 16
        %v3283 = vor.u32 %v3281, %v3279
        %v3285 = vshll.u32 %v3248, 16
        %v3287 = vrot.slane %v3285, 1
        %v3288 = vsel %vm1216, %v3283, %v3287
        %v3289 = vshrl.u32 %v3248, 16
        %v3291 = vor.u32 %v3289, %v3287
        %v3293 = vshll.u32 %v3249, 16
        %v3295 = vrot.slane %v3293, 1
        %v3296 = vsel %vm1216, %v3291, %v3295
        %v3297 = vshrl.u32 %v3249, 16
        %v3299 = vor.u32 %v3297, %v3295
        %v3301 = vshll.u32 %v3250, 16
        %v3303 = vrot.slane %v3301, 1
        %v3304 = vsel %vm1216, %v3299, %v3303
        %v3305 = vshrl.u32 %v3250, 16
        %v3307 = vor.u32 %v3305, %v3303
        %v3309 = vshll.u32 %v3251, 16
        %v3311 = vrot.slane %v3309, 1
        %v3312 = vsel %vm1216, %v3307, %v3311
        %v3313 = vshrl.u32 %v3251, 16
        %v3315 = vor.u32 %v3313, %v3311
        %v3317 = vshll.u32 %v3252, 16
        %v3319 = vrot.slane %v3317, 1
        %v3320 = vsel %vm1216, %v3315, %v3319
        %v3345 = vunpack.c.l.b16 %v3194
        %v3346 = vunpack.c.l.b16 %v3195
        %v3347 = vunpack.c.l.b16 %v3196
        %v3348 = vunpack.c.l.b16 %v3197
        %v3349 = vunpack.c.l.b16 %v3198
        %v3350 = vunpack.c.l.b16 %v3199
        %v3351 = vunpack.c.l.b16 %v3200
        %v3352 = vunpack.c.l.b16 %v3201
        %v3353 = vunpack.c.l.b16 %v3202
        %v3354 = vunpack.c.l.b16 %v3203
        %v3355 = vunpack.c.l.b16 %v3204
        %v3356 = vunpack.c.l.b16 %v3205
        %v3357 = vunpack.c.l.b16 %v3206
        %v3358 = vunpack.c.l.b16 %v3207
        %v3359 = vunpack.c.l.b16 %v3208
        %v3360 = vunpack.c.l.b16 %v3209
        %v3361 = vpack.c.b16 %v3346, %v3345
        %v3362 = vpack.c.b16 %v3348, %v3347
        %v3363 = vpack.c.b16 %v3350, %v3349
        %v3364 = vpack.c.b16 %v3352, %v3351
        %v3365 = vpack.c.b16 %v3354, %v3353
        %v3366 = vpack.c.b16 %v3356, %v3355
        %v3367 = vpack.c.b16 %v3358, %v3357
        %v3368 = vpack.c.b16 %v3360, %v3359
        %3377 = vmatprep.subr.bf16.mxu0 0
        %3378 = vmatpush1.bf16.msra.mxu0 %v3368
        %3379 = vmatprep.subr.bf16.mxu0 0
        %3380 = vmatpush1.bf16.msra.mxu0 %v3367
        %3381 = vmatprep.subr.bf16.mxu0 0
        %3382 = vmatpush1.bf16.msra.mxu0 %v3366
        %3383 = vmatprep.subr.bf16.mxu0 0
        %3384 = vmatpush1.bf16.msra.mxu0 %v3365
        %3385 = vmatprep.subr.bf16.mxu0 0
        %3386 = vmatpush1.bf16.msra.mxu0 %v3364
        %3387 = vmatprep.subr.bf16.mxu0 0
        %3388 = vmatpush1.bf16.msra.mxu0 %v3363
        %3389 = vmatprep.subr.bf16.mxu0 0
        %3390 = vmatpush1.bf16.msra.mxu0 %v3362
        %3391 = vmatprep.subr.bf16.mxu0 0
        %3392 = vmatpush1.bf16.msra.mxu0 %v3361
        %3393 = vmatprep.subr.bf16.mxu0 0
        %3394 = vmatpush2.bf16.msra.mxu0 0
        %3395 = vmatprep.subr.bf16.mxu0 0
        %3396 = vmatpush2.bf16.msra.mxu0 0
        %3397 = vmatprep.subr.bf16.mxu0 0
        %3398 = vmatpush2.bf16.msra.mxu0 0
        %3399 = vmatprep.subr.bf16.mxu0 0
        %3400 = vmatpush2.bf16.msra.mxu0 0
        %3401 = vmatprep.subr.bf16.mxu0 0
        %3402 = vmatpush2.bf16.msra.mxu0 0
        %3403 = vmatprep.subr.bf16.mxu0 0
        %3404 = vmatpush2.bf16.msra.mxu0 0
        %3405 = vmatprep.subr.bf16.mxu0 0
        %3406 = vmatpush2.bf16.msra.mxu0 0
        %3407 = vmatprep.subr.bf16.mxu0 0
        %3408 = vmatpush2.bf16.msra.mxu0 0
        %3409 = vmatprep.mubr.bf16.mxu0 0
        %3410 = vmatmul.mubr.bf16.gmra.mxu0 %v3264
        %v3411 = vpop.f32.mrf.mxu0
        %v3412 = vadd.f32 0.0, %v3411
        %v3413 = vpop.f32.mrf.mxu0
        %v3414 = vpop.f32.mrf.mxu0
        %v3415 = vadd.f32 0.0, %v3414
        %v3416 = vpop.f32.mrf.mxu0
        %3417 = vmatprep.mubr.bf16.mxu0 0
        %3418 = vmatmul.mubr.bf16.gmra.mxu0 %v3272
        %v3419 = vpop.f32.mrf.mxu0
        %v3420 = vadd.f32 0.0, %v3419
        %v3421 = vpop.f32.mrf.mxu0
        %v3422 = vpop.f32.mrf.mxu0
        %v3423 = vadd.f32 0.0, %v3422
        %v3424 = vpop.f32.mrf.mxu0
        %3425 = vmatprep.mubr.bf16.mxu0 0
        %3426 = vmatmul.mubr.bf16.gmra.mxu0 %v3280
        %v3427 = vpop.f32.mrf.mxu0
        %v3428 = vadd.f32 0.0, %v3427
        %v3429 = vpop.f32.mrf.mxu0
        %v3430 = vpop.f32.mrf.mxu0
        %v3431 = vadd.f32 0.0, %v3430
        %v3432 = vpop.f32.mrf.mxu0
        %3433 = vmatprep.mubr.bf16.mxu0 0
        %3434 = vmatmul.mubr.bf16.gmra.mxu0 %v3288
        %v3435 = vpop.f32.mrf.mxu0
        %v3436 = vadd.f32 0.0, %v3435
        %v3437 = vpop.f32.mrf.mxu0
        %v3438 = vpop.f32.mrf.mxu0
        %v3439 = vadd.f32 0.0, %v3438
        %v3440 = vpop.f32.mrf.mxu0
        %3441 = vmatprep.mubr.bf16.mxu0 0
        %3442 = vmatmul.mubr.bf16.gmra.mxu0 %v3296
        %v3443 = vpop.f32.mrf.mxu0
        %v3444 = vadd.f32 0.0, %v3443
        %v3445 = vpop.f32.mrf.mxu0
        %v3446 = vpop.f32.mrf.mxu0
        %v3447 = vadd.f32 0.0, %v3446
        %v3448 = vpop.f32.mrf.mxu0
        %3449 = vmatprep.mubr.bf16.mxu0 0
        %3450 = vmatmul.mubr.bf16.gmra.mxu0 %v3304
        %v3451 = vpop.f32.mrf.mxu0
        %v3452 = vadd.f32 0.0, %v3451
        %v3453 = vpop.f32.mrf.mxu0
        %v3454 = vpop.f32.mrf.mxu0
        %v3455 = vadd.f32 0.0, %v3454
        %v3456 = vpop.f32.mrf.mxu0
        %3457 = vmatprep.mubr.bf16.mxu0 0
        %3458 = vmatmul.mubr.bf16.gmra.mxu0 %v3312
        %v3459 = vpop.f32.mrf.mxu0
        %v3460 = vadd.f32 0.0, %v3459
        %v3461 = vpop.f32.mrf.mxu0
        %v3462 = vpop.f32.mrf.mxu0
        %v3463 = vadd.f32 0.0, %v3462
        %v3464 = vpop.f32.mrf.mxu0
        %3465 = vmatprep.mubr.bf16.mxu0 0
        %3466 = vmatmul.mubr.bf16.gmra.mxu0 %v3320
        %v3467 = vpop.f32.mrf.mxu0
        %v3468 = vadd.f32 0.0, %v3467
        %v3469 = vpop.f32.mrf.mxu0
        %v3470 = vpop.f32.mrf.mxu0
        %v3471 = vadd.f32 0.0, %v3470
        %v3472 = vpop.f32.mrf.mxu0
        %3473 = vdwg.mxu0
        %v3474 = vadd.f32 %v3160, %v3412
        %v3475 = vadd.f32 %v3161, %v3415
        %v3476 = vadd.f32 %v3162, %v3420
        %v3477 = vadd.f32 %v3163, %v3423
        %v3478 = vadd.f32 %v3164, %v3428
        %v3479 = vadd.f32 %v3165, %v3431
        %v3480 = vadd.f32 %v3166, %v3436
        %v3481 = vadd.f32 %v3167, %v3439
        %v3482 = vadd.f32 %v3168, %v3444
        %v3483 = vadd.f32 %v3169, %v3447
        %v3484 = vadd.f32 %v3170, %v3452
        %v3485 = vadd.f32 %v3171, %v3455
        %v3486 = vadd.f32 %v3172, %v3460
        %v3487 = vadd.f32 %v3173, %v3463
        %v3488 = vadd.f32 %v3174, %v3468
        %v3489 = vadd.f32 %v3175, %v3471
        %v3490 = vld [vmem:[#allocation2 + $0x10] sm:$0xe]
        %v3491 = vmul.bf16 %v3490, %v1754
        %v3492 = vmul.bf16 %v3177, %v1757
        %v3493 = vmul.bf16 %v3178, %v1760
        %v3494 = vmul.bf16 %v3179, %v1763
        %v3495 = vmul.bf16 %v3180, %v1766
        %v3496 = vmul.bf16 %v3181, %v1769
        %v3497 = vmul.bf16 %v3182, %v1772
        %v3498 = vmul.bf16 %v3183, %v1775
        %v3499 = vmul.bf16 %v3184, %v1778
        %v3500 = vmul.bf16 %v3185, %v1781
        %v3501 = vmul.bf16 %v3186, %v1784
        %v3502 = vmul.bf16 %v3187, %v1787
        %v3503 = vmul.bf16 %v3188, %v1790
        %v3504 = vmul.bf16 %v3189, %v1793
        %v3505 = vmul.bf16 %v3190, %v1796
        %v3506 = vmul.bf16 %v3191, %v1799
        %v3507 = vmul.bf16 %v3192, %v1800
        %s3508 = scalar_lea.vmem [#allocation8], 512
        %v3509 = vld [vmem:[%s3508] sm:$0xf]
        %v3510 = vld [vmem:[%s3508 + $0x4] sm:$0xf]
        %v3511 = vld [vmem:[%s3508 + $0x8] sm:$0xf]
        %v3512 = vld [vmem:[%s3508 + $0xc] sm:$0xf]
        %v3513 = vld [vmem:[%s3508 + $0x10] sm:$0xf]
        %v3514 = vld [vmem:[%s3508 + $0x14] sm:$0xf]
        %v3515 = vld [vmem:[%s3508 + $0x18] sm:$0xf]
        %v3516 = vld [vmem:[%s3508 + $0x1c] sm:$0xf]
        %v3517 = vld [vmem:[%s3508 + $0x20] sm:$0xf]
        %v3518 = vld [vmem:[%s3508 + $0x24] sm:$0xf]
        %v3519 = vld [vmem:[%s3508 + $0x28] sm:$0xf]
        %v3520 = vld [vmem:[%s3508 + $0x2c] sm:$0xf]
        %v3521 = vld [vmem:[%s3508 + $0x30] sm:$0xf]
        %v3522 = vld [vmem:[%s3508 + $0x34] sm:$0xf]
        %v3523 = vld [vmem:[%s3508 + $0x38] sm:$0xf]
        %v3524 = vld [vmem:[%s3508 + $0x3c] sm:$0xf]
        %v3542 = vunpack.c.l.b16 %v3491
        %v3543 = vunpack.c.l.b16 %v3492
        %v3544 = vunpack.c.l.b16 %v3493
        %v3545 = vunpack.c.l.b16 %v3494
        %v3546 = vunpack.c.l.b16 %v3495
        %v3547 = vunpack.c.l.b16 %v3496
        %v3548 = vunpack.c.l.b16 %v3497
        %v3549 = vunpack.c.l.b16 %v3498
        %v3550 = vunpack.c.l.b16 %v3499
        %v3551 = vunpack.c.l.b16 %v3500
        %v3552 = vunpack.c.l.b16 %v3501
        %v3553 = vunpack.c.l.b16 %v3502
        %v3554 = vunpack.c.l.b16 %v3503
        %v3555 = vunpack.c.l.b16 %v3504
        %v3556 = vunpack.c.l.b16 %v3505
        %v3557 = vunpack.c.l.b16 %v3506
        %v3558 = vunpack.c.l.b16 %v3507
        %v3559 = vpack.c.b16 %v3543, %v3542
        %v3560 = vpack.c.b16 %v3545, %v3544
        %v3561 = vpack.c.b16 %v3547, %v3546
        %v3562 = vpack.c.b16 %v3549, %v3548
        %v3563 = vpack.c.b16 %v3551, %v3550
        %v3564 = vpack.c.b16 %v3553, %v3552
        %v3565 = vpack.c.b16 %v3555, %v3554
        %v3566 = vpack.c.b16 %v3557, %v3556
        %v3567 = vpack.c.b16 %v3558, %v3558
        %v3568 = vrot.slane %v3559, 1
        %v3569 = vrot.slane %v3560, 1
        %v3570 = vsel %vm1895, %v3568, %v3569
        %v3571 = vrot.slane %v3561, 1
        %v3572 = vsel %vm1895, %v3569, %v3571
        %v3573 = vrot.slane %v3562, 1
        %v3574 = vsel %vm1895, %v3571, %v3573
        %v3575 = vrot.slane %v3563, 1
        %v3576 = vsel %vm1895, %v3573, %v3575
        %v3577 = vrot.slane %v3564, 1
        %v3578 = vsel %vm1895, %v3575, %v3577
        %v3579 = vrot.slane %v3565, 1
        %v3580 = vsel %vm1895, %v3577, %v3579
        %v3581 = vrot.slane %v3566, 1
        %v3582 = vsel %vm1895, %v3579, %v3581
        %v3583 = vrot.slane %v3567, 1
        %v3584 = vsel %vm1895, %v3581, %v3583
        %v3609 = vunpack.c.l.b16 %v3509
        %v3610 = vunpack.c.l.b16 %v3510
        %v3611 = vunpack.c.l.b16 %v3511
        %v3612 = vunpack.c.l.b16 %v3512
        %v3613 = vunpack.c.l.b16 %v3513
        %v3614 = vunpack.c.l.b16 %v3514
        %v3615 = vunpack.c.l.b16 %v3515
        %v3616 = vunpack.c.l.b16 %v3516
        %v3617 = vunpack.c.l.b16 %v3517
        %v3618 = vunpack.c.l.b16 %v3518
        %v3619 = vunpack.c.l.b16 %v3519
        %v3620 = vunpack.c.l.b16 %v3520
        %v3621 = vunpack.c.l.b16 %v3521
        %v3622 = vunpack.c.l.b16 %v3522
        %v3623 = vunpack.c.l.b16 %v3523
        %v3624 = vunpack.c.l.b16 %v3524
        %v3625 = vpack.c.b16 %v3610, %v3609
        %v3626 = vpack.c.b16 %v3612, %v3611
        %v3627 = vpack.c.b16 %v3614, %v3613
        %v3628 = vpack.c.b16 %v3616, %v3615
        %v3629 = vpack.c.b16 %v3618, %v3617
        %v3630 = vpack.c.b16 %v3620, %v3619
        %v3631 = vpack.c.b16 %v3622, %v3621
        %v3632 = vpack.c.b16 %v3624, %v3623
        %3641 = vmatprep.subr.bf16.mxu0 0
        %3642 = vmatpush1.bf16.msra.mxu0 %v3632
        %3643 = vmatprep.subr.bf16.mxu0 0
        %3644 = vmatpush1.bf16.msra.mxu0 %v3631
        %3645 = vmatprep.subr.bf16.mxu0 0
        %3646 = vmatpush1.bf16.msra.mxu0 %v3630
        %3647 = vmatprep.subr.bf16.mxu0 0
        %3648 = vmatpush1.bf16.msra.mxu0 %v3629
        %3649 = vmatprep.subr.bf16.mxu0 0
        %3650 = vmatpush1.bf16.msra.mxu0 %v3628
        %3651 = vmatprep.subr.bf16.mxu0 0
        %3652 = vmatpush1.bf16.msra.mxu0 %v3627
        %3653 = vmatprep.subr.bf16.mxu0 0
        %3654 = vmatpush1.bf16.msra.mxu0 %v3626
        %3655 = vmatprep.subr.bf16.mxu0 0
        %3656 = vmatpush1.bf16.msra.mxu0 %v3625
        %3657 = vmatprep.subr.bf16.mxu0 0
        %3658 = vmatpush2.bf16.msra.mxu0 0
        %3659 = vmatprep.subr.bf16.mxu0 0
        %3660 = vmatpush2.bf16.msra.mxu0 0
        %3661 = vmatprep.subr.bf16.mxu0 0
        %3662 = vmatpush2.bf16.msra.mxu0 0
        %3663 = vmatprep.subr.bf16.mxu0 0
        %3664 = vmatpush2.bf16.msra.mxu0 0
        %3665 = vmatprep.subr.bf16.mxu0 0
        %3666 = vmatpush2.bf16.msra.mxu0 0
        %3667 = vmatprep.subr.bf16.mxu0 0
        %3668 = vmatpush2.bf16.msra.mxu0 0
        %3669 = vmatprep.subr.bf16.mxu0 0
        %3670 = vmatpush2.bf16.msra.mxu0 0
        %3671 = vmatprep.subr.bf16.mxu0 0
        %3672 = vmatpush2.bf16.msra.mxu0 0
        %3673 = vmatprep.mubr.bf16.mxu0 0
        %3674 = vmatmul.mubr.bf16.gmra.mxu0 %v3570
        %v3675 = vpop.f32.mrf.mxu0
        %v3676 = vadd.f32 0.0, %v3675
        %v3677 = vpop.f32.mrf.mxu0
        %v3678 = vpop.f32.mrf.mxu0
        %v3679 = vadd.f32 0.0, %v3678
        %v3680 = vpop.f32.mrf.mxu0
        %3681 = vmatprep.mubr.bf16.mxu0 0
        %3682 = vmatmul.mubr.bf16.gmra.mxu0 %v3572
        %v3683 = vpop.f32.mrf.mxu0
        %v3684 = vadd.f32 0.0, %v3683
        %v3685 = vpop.f32.mrf.mxu0
        %v3686 = vpop.f32.mrf.mxu0
        %v3687 = vadd.f32 0.0, %v3686
        %v3688 = vpop.f32.mrf.mxu0
        %3689 = vmatprep.mubr.bf16.mxu0 0
        %3690 = vmatmul.mubr.bf16.gmra.mxu0 %v3574
        %v3691 = vpop.f32.mrf.mxu0
        %v3692 = vadd.f32 0.0, %v3691
        %v3693 = vpop.f32.mrf.mxu0
        %v3694 = vpop.f32.mrf.mxu0
        %v3695 = vadd.f32 0.0, %v3694
        %v3696 = vpop.f32.mrf.mxu0
        %3697 = vmatprep.mubr.bf16.mxu0 0
        %3698 = vmatmul.mubr.bf16.gmra.mxu0 %v3576
        %v3699 = vpop.f32.mrf.mxu0
        %v3700 = vadd.f32 0.0, %v3699
        %v3701 = vpop.f32.mrf.mxu0
        %v3702 = vpop.f32.mrf.mxu0
        %v3703 = vadd.f32 0.0, %v3702
        %v3704 = vpop.f32.mrf.mxu0
        %3705 = vmatprep.mubr.bf16.mxu0 0
        %3706 = vmatmul.mubr.bf16.gmra.mxu0 %v3578
        %v3707 = vpop.f32.mrf.mxu0
        %v3708 = vadd.f32 0.0, %v3707
        %v3709 = vpop.f32.mrf.mxu0
        %v3710 = vpop.f32.mrf.mxu0
        %v3711 = vadd.f32 0.0, %v3710
        %v3712 = vpop.f32.mrf.mxu0
        %3713 = vmatprep.mubr.bf16.mxu0 0
        %3714 = vmatmul.mubr.bf16.gmra.mxu0 %v3580
        %v3715 = vpop.f32.mrf.mxu0
        %v3716 = vadd.f32 0.0, %v3715
        %v3717 = vpop.f32.mrf.mxu0
        %v3718 = vpop.f32.mrf.mxu0
        %v3719 = vadd.f32 0.0, %v3718
        %v3720 = vpop.f32.mrf.mxu0
        %3721 = vmatprep.mubr.bf16.mxu0 0
        %3722 = vmatmul.mubr.bf16.gmra.mxu0 %v3582
        %v3723 = vpop.f32.mrf.mxu0
        %v3724 = vadd.f32 0.0, %v3723
        %v3725 = vpop.f32.mrf.mxu0
        %v3726 = vpop.f32.mrf.mxu0
        %v3727 = vadd.f32 0.0, %v3726
        %v3728 = vpop.f32.mrf.mxu0
        %3729 = vmatprep.mubr.bf16.mxu0 0
        %3730 = vmatmul.mubr.bf16.gmra.mxu0 %v3584
        %v3731 = vpop.f32.mrf.mxu0
        %v3732 = vadd.f32 0.0, %v3731
        %v3733 = vpop.f32.mrf.mxu0
        %v3734 = vpop.f32.mrf.mxu0
        %v3735 = vadd.f32 0.0, %v3734
        %v3736 = vpop.f32.mrf.mxu0
        %3737 = vdwg.mxu0
        %v3738 = vadd.f32 %v3474, %v3676
        %v3739 = vadd.f32 %v3475, %v3679
        %v3740 = vadd.f32 %v3476, %v3684
        %v3741 = vadd.f32 %v3477, %v3687
        %v3742 = vadd.f32 %v3478, %v3692
        %v3743 = vadd.f32 %v3479, %v3695
        %v3744 = vadd.f32 %v3480, %v3700
        %v3745 = vadd.f32 %v3481, %v3703
        %v3746 = vadd.f32 %v3482, %v3708
        %v3747 = vadd.f32 %v3483, %v3711
        %v3748 = vadd.f32 %v3484, %v3716
        %v3749 = vadd.f32 %v3485, %v3719
        %v3750 = vadd.f32 %v3486, %v3724
        %v3751 = vadd.f32 %v3487, %v3727
        %v3752 = vadd.f32 %v3488, %v3732
        %v3753 = vadd.f32 %v3489, %v3735
        %v3755 = vlaneseq
        %v3756 = vshrl.u32 %v3755, 7
        %v3757 = vsub.s32 0, %v3756
        %v3758 = vrot.slane %v970, %v3757
        %v3760 = vadd.f32 %v3738, %v3758
        %v3761 = vadd.f32 %v3739, %v3758
        %v3762 = vadd.f32 %v3740, %v3758
        %v3763 = vadd.f32 %v3741, %v3758
        %v3764 = vadd.f32 %v3742, %v3758
        %v3765 = vadd.f32 %v3743, %v3758
        %v3766 = vadd.f32 %v3744, %v3758
        %v3767 = vadd.f32 %v3745, %v3758
        %v3768 = vadd.f32 %v3746, %v3758
        %v3769 = vadd.f32 %v3747, %v3758
        %v3770 = vadd.f32 %v3748, %v3758
        %v3771 = vadd.f32 %v3749, %v3758
        %v3772 = vadd.f32 %v3750, %v3758
        %v3773 = vadd.f32 %v3751, %v3758
        %v3774 = vadd.f32 %v3752, %v3758
        %v3775 = vadd.f32 %v3753, %v3758
        %v3776 = vmax.f32 %v3760, 0.0
        %v3777 = vmax.f32 %v3761, 0.0
        %v3778 = vmax.f32 %v3762, 0.0
        %v3779 = vmax.f32 %v3763, 0.0
        %v3780 = vmax.f32 %v3764, 0.0
        %v3781 = vmax.f32 %v3765, 0.0
        %v3782 = vmax.f32 %v3766, 0.0
        %v3783 = vmax.f32 %v3767, 0.0
        %v3784 = vmax.f32 %v3768, 0.0
        %v3785 = vmax.f32 %v3769, 0.0
        %v3786 = vmax.f32 %v3770, 0.0
        %v3787 = vmax.f32 %v3771, 0.0
        %v3788 = vmax.f32 %v3772, 0.0
        %v3789 = vmax.f32 %v3773, 0.0
        %v3790 = vmax.f32 %v3774, 0.0
        %v3791 = vmax.f32 %v3775, 0.0
        %v3792 = vpack.c.bf16 %v3777, %v3776
        %v3793 = vpack.c.bf16 %v3779, %v3778
        %v3794 = vpack.c.bf16 %v3781, %v3780
        %v3795 = vpack.c.bf16 %v3783, %v3782
        %v3796 = vpack.c.bf16 %v3785, %v3784
        %v3797 = vpack.c.bf16 %v3787, %v3786
        %v3798 = vpack.c.bf16 %v3789, %v3788
        %v3799 = vpack.c.bf16 %v3791, %v3790
        %v3808 = vunpack.c.l.b16 %v3792
        %v3809 = vunpack.c.h.b16 %v3792
        %v3810 = vunpack.c.l.b16 %v3793
        %v3811 = vunpack.c.h.b16 %v3793
        %v3812 = vunpack.c.l.b16 %v3794
        %v3813 = vunpack.c.h.b16 %v3794
        %v3814 = vunpack.c.l.b16 %v3795
        %v3815 = vunpack.c.h.b16 %v3795
        %v3816 = vunpack.c.l.b16 %v3796
        %v3817 = vunpack.c.h.b16 %v3796
        %v3818 = vunpack.c.l.b16 %v3797
        %v3819 = vunpack.c.h.b16 %v3797
        %v3820 = vunpack.c.l.b16 %v3798
        %v3821 = vunpack.c.h.b16 %v3798
        %v3822 = vunpack.c.l.b16 %v3799
        %v3823 = vunpack.c.h.b16 %v3799
        %v3824 = vpack.c.b16 %v3808, %v3808
        %v3825 = vpack.c.b16 %v3809, %v3809
        %v3826 = vpack.c.b16 %v3810, %v3810
        %v3827 = vpack.c.b16 %v3811, %v3811
        %v3828 = vpack.c.b16 %v3812, %v3812
        %v3829 = vpack.c.b16 %v3813, %v3813
        %v3830 = vpack.c.b16 %v3814, %v3814
        %v3831 = vpack.c.b16 %v3815, %v3815
        %v3832 = vpack.c.b16 %v3816, %v3816
        %v3833 = vpack.c.b16 %v3817, %v3817
        %v3834 = vpack.c.b16 %v3818, %v3818
        %v3835 = vpack.c.b16 %v3819, %v3819
        %v3836 = vpack.c.b16 %v3820, %v3820
        %v3837 = vpack.c.b16 %v3821, %v3821
        %v3838 = vpack.c.b16 %v3822, %v3822
        %v3839 = vpack.c.b16 %v3823, %v3823
        %3856 = vst [vmem:[%s283] sm:$0xf] %v3824
        %3857 = vst [vmem:[%s283 + $0x4] sm:$0xf] %v3825
        %3858 = vst [vmem:[%s283 + $0x8] sm:$0xf] %v3826
        %3859 = vst [vmem:[%s283 + $0xc] sm:$0xf] %v3827
        %3860 = vst [vmem:[%s283 + $0x10] sm:$0xf] %v3828
        %3861 = vst [vmem:[%s283 + $0x14] sm:$0xf] %v3829
        %3862 = vst [vmem:[%s283 + $0x18] sm:$0xf] %v3830
        %3863 = vst [vmem:[%s283 + $0x1c] sm:$0xf] %v3831
        %3864 = vst [vmem:[%s283 + $0x20] sm:$0xf] %v3832
        %3865 = vst [vmem:[%s283 + $0x24] sm:$0xf] %v3833
        %3866 = vst [vmem:[%s283 + $0x28] sm:$0xf] %v3834
        %3867 = vst [vmem:[%s283 + $0x2c] sm:$0xf] %v3835
        %3868 = vst [vmem:[%s283 + $0x30] sm:$0xf] %v3836
        %3869 = vst [vmem:[%s283 + $0x34] sm:$0xf] %v3837
        %3870 = vst [vmem:[%s283 + $0x38] sm:$0xf] %v3838
        %3871 = vst [vmem:[%s283 + $0x3c] sm:$0xf] %v3839
        %s3872 = sand.u32 %s140, 1
        %s3873 = scalar_lea.sflag [#allocation5], %s3872
        %s3874 = sand.u32 %s140, 1
        %s3875 = smul.addr %s3874, 64
        %s3876 = scalar_lea.vmem [#allocation9], %s3875
        // Predicated region
        $region65: #{tpu_custom_call.1} parent=35 // pred_check
          %p3877 = pneg %p150
        $region66: #{tpu_custom_call.1} parent=35 // pred_check_branch
          %3879 = sbr.rel (%p3877) target = $region68
        $region67: #{tpu_custom_call.1} parent=35 // pred_region
          %s3880 = smul.u32 16, %s29
          %s3882 = ssub.s32 1024, 1024
          %3883 = vsyncadd %s3873, %s3882
          %s3884 = smul.addr %s28, 16
          %s3885 = sadd.s32 %s3880, %s3884
          %s3886 = smul.addr %s3885, 64
          %s3887 = scalar_lea.hbm %s4, %s3886
          %s3888 = sshll.u32 %s3876, 4
          %s3889 = int_to_ptr.vmem [resolvable:$true] %s3888
          %3894 = dma.vmem_to_hbm [thread:$0]  %s3889, 1024, %s3887, %s3873, 64, 64, 4
        $region68: #{tpu_custom_call.1} parent=35 // pred_fallthru
          _
      $region36: #{tpu_custom_call.1} parent=5 // pred_fallthru
        _
      %p3895 = scmp.le.s32.totalorder 2, %s19
      // Predicated region
      $region69: #{tpu_custom_call.1} parent=5 // pred_check
        %p3896 = pneg %p3895
      $region70: #{tpu_custom_call.1} parent=5 // pred_check_branch
        %3898 = sbr.rel (%p3896) target = $region72
      $region71: #{tpu_custom_call.1} parent=5 // pred_region
        %s3899 = ssub.s32 %s19, 2
        // Predicated region
        $region73: #{tpu_custom_call.1} parent=71 // pred_check
          %p3900 = pneg %p156
        $region74: #{tpu_custom_call.1} parent=71 // pred_check_branch
          %3902 = sbr.rel (%p3900) target = $region76
        $region75: #{tpu_custom_call.1} parent=71 // pred_region
          %s3903 = sand.u32 %s141, 1
          %s3904 = scalar_lea.sflag [#allocation5], %s3903
          %s3905 = sand.u32 %s141, 1
          %s3906 = smul.addr %s3905, 64
          %s3907 = scalar_lea.vmem [#allocation9], %s3906
          %3908 = dma.done %s3904, 1024
        $region76: #{tpu_custom_call.1} parent=71 // pred_fallthru
          _
      $region72: #{tpu_custom_call.1} parent=5 // pred_fallthru
        _
    $region6: #{tpu_custom_call.1} parent=1 // loop_footer
      %s23 = sadd.s32 1, %s19
    $region7: #{tpu_custom_call.1} parent=1 // loop_footer_branch
      %18 = sbr.rel target = $region3
    $region8: #{tpu_custom_call.1} parent=1 // loop_exit
      _
    %3909 = vsyncpa [#allocation4], 1
    %s3910 = scalar_lea.sflag [#allocation4], 1
    %3911 = vsyncpa %s3910, 1
    %3912 = vsyncpa [#allocation7], 1
    %s3913 = scalar_lea.sflag [#allocation7], 1
    %3914 = vsyncpa %s3913, 1
    %3915 = vsyncpa [#allocation5], 1
    %s3916 = scalar_lea.sflag [#allocation5], 1
    %3917 = vsyncpa %s3916, 1

</llo_original>
